<compile_context>
chip_gen: v5e
topology: v5e:2x2
jax: 0.10.0
libtpu: 0.0.40
codegen_flags: <defaults>
</compile_context>

<pallas_src>
import jax
import jax.numpy as jnp
from jax.experimental import pallas as pl
from jax.experimental.pallas import tpu as pltpu

_SQRT2 = 1.4142135623730951
_LN_EPS = 1e-5
_BN_EPS = 1e-5
_MXU_DTYPE = jnp.bfloat16            # matmul operand dtype (f32 accumulation)
_VMEM_LIMIT = 64 * 1024 * 1024       # explicit scoped-VMEM limit (v5e default
                                     # is only 16 MiB; we want big row tiles)


def _gelu_exact(x):
    # nn.GELU() default is the exact erf formulation (keep parity with torch).
    return 0.5 * x * (1.0 + jax.lax.erf(x / _SQRT2))


def _row_tile(m, max_tile=1024):
    """Largest power-of-two row tile >=128 that divides m, else m itself."""
    t = max_tile
    while t >= 128:
        if m % t == 0:
            return t
        t //= 2
    return m


# ----------------------------------------------------------------------------
# Kernel 1: fused proj  =  (conv3x3/s2  ∘  conv1x1)  as im2col matmul + bias
# ----------------------------------------------------------------------------
def _matmul_bias_kernel(x_ref, w_ref, b_ref, o_ref):
    z = jnp.dot(x_ref[...], w_ref[...], preferred_element_type=jnp.float32)
    o_ref[...] = (z + b_ref[...]).astype(o_ref.dtype)


def matmul_bias(x, w, b):
    m, k = x.shape
    n = w.shape[1]
    tm = _row_tile(m)
    assert m % tm == 0, (m, tm)      # grid must cover all rows exactly
    # TODO(synk): add a K grid axis + VMEM f32 accumulator (pl.when init/fini)
    #             if K*N ever outgrows one resident weight block; at E=64 the
    #             (9C, E) weight is tiny so a single K block is optimal.
    # NOTE: output last-dim is E=64 (<128 lanes).  After fusion this kernel is
    #       MXU-bound (K=9C), so the masked half-lane stores are hidden; the
    #       (m/2, 128) repack was judged not worth the in-kernel relayout.
    return pl.pallas_call(
        _matmul_bias_kernel,
        out_shape=jax.ShapeDtypeStruct((m, n), jnp.float32),
        grid=(m // tm,),
        in_specs=[
            pl.BlockSpec((tm, k), lambda i: (i, 0)),
            pl.BlockSpec((k, n), lambda i: (0, 0)),
            pl.BlockSpec((1, n), lambda i: (0, 0)),
        ],
        out_specs=pl.BlockSpec((tm, n), lambda i: (i, 0)),
        compiler_params=pltpu.CompilerParams(
            dimension_semantics=("parallel",),
            vmem_limit_bytes=_VMEM_LIMIT),
    )(x, w, b)


# ----------------------------------------------------------------------------
# Kernel 2: fused tail (dwconv+GELU, LN+add, fc0 conv3x3+BN+GELU, turn_channel)
# ----------------------------------------------------------------------------
def _cee_tail_kernel(xp_ref, dw_w_ref, dw_b_ref, ln_g_ref, ln_b_ref,
                     fc0_w_ref, fc0_a_ref, fc0_s_ref,
                     tc_w1_ref, tc_w2_ref, tc_a_ref, tc_s_ref, o_ref):
    _, h, w, e = o_ref.shape
    hp, wp = h + 2, w + 2                       # x_0 domain incl. its zero ring
    xp = xp_ref[...][0].astype(jnp.float32)     # x_pe padded by 2: (h+4,w+4,e)

    # --- x_po = GELU(depthwise3x3(x_pe)), computed on the extended domain ---
    dw_w = dw_w_ref[...]                        # (9, e)
    acc = jnp.zeros((hp, wp, e), jnp.float32)
    for ky in range(3):
        for kx in range(3):
            acc = acc + xp[ky:ky + hp, kx:kx + wp, :] * dw_w[3 * ky + kx]
    x_po = _gelu_exact(acc + dw_b_ref[...][0])

    # --- x_0 = LayerNorm(x_pe) + x_po ; ring positions forced to zero so the
    #     (hp, wp, e) array IS the zero-padded x_0 needed by the fc0 conv. ----
    x_pe_ext = xp[1:1 + hp, 1:1 + wp, :]
    mu = jnp.mean(x_pe_ext, axis=-1, keepdims=True)
    var = jnp.mean(jnp.square(x_pe_ext - mu), axis=-1, keepdims=True)
    xn = (x_pe_ext - mu) * jax.lax.rsqrt(var + _LN_EPS)
    x0 = xn * ln_g_ref[...][0] + ln_b_ref[...][0] + x_po
    row = jax.lax.broadcasted_iota(jnp.int32, (hp, wp, e), 0)
    col = jax.lax.broadcasted_iota(jnp.int32, (hp, wp, e), 1)
    interior = (row >= 1) & (row <= h) & (col >= 1) & (col <= w)
    x0 = jnp.where(interior, x0, 0.0)

    # --- fc0: conv3x3 as 9 tap matmuls (bf16 MXU, f32 acc) + folded BN + GELU
    acc1 = jnp.zeros((h * w, e), jnp.float32)
    for t in range(9):
        ky, kx = t // 3, t % 3
        tap = x0[ky:ky + h, kx:kx + w, :].reshape(h * w, e).astype(_MXU_DTYPE)
        acc1 = acc1 + jnp.dot(tap, fc0_w_ref[t],
                              preferred_element_type=jnp.float32)
    x1 = _gelu_exact(acc1 * fc0_a_ref[...] + fc0_s_ref[...])

    # --- turn_channel: 1x1 conv on cat([x_1, x_pe]) without materializing the
    #     concat: split the (2E, E) weight and sum two matmuls. --------------
    x_pe_flat = xp[2:2 + h, 2:2 + w, :].reshape(h * w, e)
    z = jnp.dot(x1.astype(_MXU_DTYPE), tc_w1_ref[...],
                preferred_element_type=jnp.float32)
    z = z + jnp.dot(x_pe_flat.astype(_MXU_DTYPE), tc_w2_ref[...],
                    preferred_element_type=jnp.float32)
    out = _gelu_exact(z * tc_a_ref[...] + tc_s_ref[...])
    o_ref[...] = out.reshape(1, h, w, e).astype(o_ref.dtype)


def cee_tail(x_pe, p):
    b, ho, wo, e = x_pe.shape
    xpad = jnp.pad(x_pe, ((0, 0), (2, 2), (2, 2), (0, 0)))

    def bcast(a):
        return pl.BlockSpec(a.shape, lambda i, n=a.ndim: (0,) * n)

    # TODO(synk): for very large (ho, wo) the per-image block should be row-
    #             tiled with a 2-row halo (manual make_async_copy) to stay
    #             under v7x's 64 MiB VMEM; at CEE-typical post-stride sizes a
    #             whole image fits comfortably.
    return pl.pallas_call(
        _cee_tail_kernel,
        out_shape=jax.ShapeDtypeStruct((b, ho, wo, e), jnp.float32),
        grid=(b,),
        in_specs=[
            pl.BlockSpec((1, ho + 4, wo + 4, e), lambda i: (i, 0, 0, 0)),
            bcast(p["dw_w"]), bcast(p["dw_b"]),
            bcast(p["ln_g"]), bcast(p["ln_b"]),
            bcast(p["fc0_w"]), bcast(p["fc0_a"]), bcast(p["fc0_s"]),
            bcast(p["tc_w1"]), bcast(p["tc_w2"]),
            bcast(p["tc_a"]), bcast(p["tc_s"]),
        ],
        out_specs=pl.BlockSpec((1, ho, wo, e), lambda i: (i, 0, 0, 0)),
        compiler_params=pltpu.CompilerParams(
            dimension_semantics=("parallel",),
            vmem_limit_bytes=_VMEM_LIMIT),
    )(xpad, p["dw_w"], p["dw_b"], p["ln_g"], p["ln_b"],
      p["fc0_w"], p["fc0_a"], p["fc0_s"],
      p["tc_w1"], p["tc_w2"], p["tc_a"], p["tc_s"])


# ----------------------------------------------------------------------------
# JAX glue: im2col for the stride-2 proj conv, parameter setup, forward
# ----------------------------------------------------------------------------
def _im2col_3x3(x_nhwc, stride):
    """3x3, padding=1 patch extraction -> (B*Ho*Wo, 9*C)."""
    b, h, w, c = x_nhwc.shape
    xp = jnp.pad(x_nhwc, ((0, 0), (1, 1), (1, 1), (0, 0)))
    ho = (h + 2 - 3) // stride + 1
    wo = (w + 2 - 3) // stride + 1
    taps = []
    for ky in range(3):
        for kx in range(3):
            t = jax.lax.slice(
                xp,
                (0, ky, kx, 0),
                (b, ky + stride * (ho - 1) + 1, kx + stride * (wo - 1) + 1, c),
                (1, stride, stride, 1))
            taps.append(t)
    patches = jnp.concatenate(taps, axis=-1)          # (B, Ho, Wo, 9C)
    return patches.reshape(b * ho * wo, 9 * c), (ho, wo)


def init_params(key, in_chans, embed_dim):
    e = embed_dim
    ks = jax.random.split(key, 24)

    def rnd(k, shape, scale=0.1):
        return scale * jax.random.normal(k, shape, jnp.float32)

    def bn_fold(kg, kb, km, kv, n):
        gamma = 1.0 + 0.1 * jax.random.normal(kg, (n,), jnp.float32)
        beta = 0.1 * jax.random.normal(kb, (n,), jnp.float32)
        rmean = 0.1 * jax.random.normal(km, (n,), jnp.float32)
        rvar = 0.5 + jnp.abs(jax.random.normal(kv, (n,), jnp.float32))
        scale = gamma * jax.lax.rsqrt(rvar + _BN_EPS)
        shift = beta - rmean * scale
        return scale.reshape(1, n), shift.reshape(1, n)

    p = {}
    # proj[0]: Conv2d(in_chans, E, 3, s=2, p=1);  proj[1]: Conv2d(E, E, 1).
    w0 = rnd(ks[0], (3, 3, in_chans, e)).reshape(9 * in_chans, e)
    b0 = rnd(ks[1], (1, e))
    w1 = rnd(ks[2], (e, e))
    b1 = rnd(ks[3], (1, e))
    # Fold the 1x1 conv into the 3x3 conv offline (both linear, no act).
    p["proj_w"] = (w0 @ w1).astype(_MXU_DTYPE)
    p["proj_b"] = b0 @ w1 + b1
    # dwconv: depthwise Conv2d(E, E, 3, p=1, groups=E) + GELU.
    p["dw_w"] = rnd(ks[4], (3, 3, e)).reshape(9, e)
    p["dw_b"] = rnd(ks[5], (1, e))
    # norm: LayerNorm(E).
    p["ln_g"] = (1.0 + 0.1 * jax.random.normal(ks[6], (e,), jnp.float32)
                 ).reshape(1, e)
    p["ln_b"] = rnd(ks[7], (1, e))
    # fc0: Conv2d(E, E, 3, p=1) + BN + GELU  (conv bias folded into BN shift).
    fc0_w = rnd(ks[8], (3, 3, e, e)).reshape(9, e, e)
    fc0_b = rnd(ks[9], (1, e))
    s, t = bn_fold(ks[10], ks[11], ks[12], ks[13], e)
    p["fc0_w"] = fc0_w.astype(_MXU_DTYPE)
    p["fc0_a"] = s
    p["fc0_s"] = fc0_b * s + t
    # turn_channel: Conv2d(2E, E, 1) + BN + GELU, weight split over [x1, x_pe].
    tc_w = rnd(ks[14], (2 * e, e))
    tc_b = rnd(ks[15], (1, e))
    s, t = bn_fold(ks[16], ks[17], ks[18], ks[19], e)
    p["tc_w1"] = tc_w[:e].astype(_MXU_DTYPE)
    p["tc_w2"] = tc_w[e:].astype(_MXU_DTYPE)
    p["tc_a"] = s
    p["tc_s"] = tc_b * s + t
    return p


def cee_forward(x_nchw, p):
    """CEE.forward with use_att=0, smaller=0.  Input/output NCHW."""
    b = x_nchw.shape[0]
    e = p["proj_w"].shape[1]
    x = jnp.transpose(x_nchw, (0, 2, 3, 1))                     # NHWC

    # x_pe = proj(x): conv3x3/s2/p1 with the 1x1 conv folded in -> one matmul.
    patches, (ho, wo) = _im2col_3x3(x.astype(_MXU_DTYPE), stride=2)
    x_pe = matmul_bias(patches, p["proj_w"], p["proj_b"]).reshape(b, ho, wo, e)

    # Everything else (dwconv+GELU, LN+add, fc0, turn_channel) in one kernel.
    # TODO(synk): proj_c, dwconv_1, att (IRE), dwconv_2 and fc1 are dead code
    #             for (use_att=0, smaller=0) -- their results never reach the
    #             output -- so they are intentionally not computed here.
    out = cee_tail(x_pe, p)
    return jnp.transpose(out, (0, 3, 1, 2))                     # back to NCHW


if __name__ == "__main__":
    key = jax.random.PRNGKey(0)
    k_x, k_p = jax.random.split(key)

    B, C, H, W = 2, 64, 16, 16           # in_chans = embed_dim = 64 (defaults)
    EMBED = 64
    x = jax.random.normal(k_x, (B, C, H, W), jnp.float32)
    params = init_params(k_p, in_chans=C, embed_dim=EMBED)

    out = jax.jit(cee_forward)(x, params)
    out = jax.block_until_ready(out)

    assert out.shape == (B, EMBED, H // 2, W // 2), out.shape
    assert out.dtype == jnp.float32
    assert bool(jnp.all(jnp.isfinite(out)))
    print("KERNEL_OK")
</pallas_src>

<mosaic_0001>
module attributes {stable_mosaic.version = 11 : i64} {
  func.func @_matmul_bias_kernel(%arg0: i32, %arg1: memref<128x576xbf16, #tpu.memory_space<vmem>>, %arg2: memref<576x64xbf16, #tpu.memory_space<vmem>>, %arg3: memref<1x64xf32, #tpu.memory_space<vmem>>, %arg4: memref<128x64xf32, #tpu.memory_space<vmem>>) attributes {dimension_semantics = [#tpu.dimension_semantics<parallel>], iteration_bounds = array<i64: 1>, scalar_prefetch = 0 : i64, scratch_operands = 0 : i64, tpu.core_type = #tpu.core_type<tc>, window_params = [{transform_indices = @transform_0, window_bounds = array<i64: 128, 576>}, {pipeline_mode = #tpu.pipeline_mode<synchronous>, transform_indices = @transform_1, window_bounds = array<i64: 576, 64>}, {pipeline_mode = #tpu.pipeline_mode<synchronous>, transform_indices = @transform_2, window_bounds = array<i64: 1, 64>}, {transform_indices = @transform_3, window_bounds = array<i64: 128, 64>}]} {
    %c0 = arith.constant 0 : index
    %c0_0 = arith.constant 0 : index
    %0 = vector.load %arg1[%c0, %c0_0] : memref<128x576xbf16, #tpu.memory_space<vmem>>, vector<128x576xbf16>
    %c0_1 = arith.constant 0 : index
    %c0_2 = arith.constant 0 : index
    %1 = vector.load %arg2[%c0_1, %c0_2] : memref<576x64xbf16, #tpu.memory_space<vmem>>, vector<576x64xbf16>
    %cst = arith.constant dense<0.000000e+00> : vector<128x64xf32>
    %2 = tpu.matmul %0, %1, %cst {dimension_numbers = #tpu.dot_dimension_numbers<[1], [0], [0], [1], [0, 0, 1, 1], [], []>} : vector<128x576xbf16>, vector<576x64xbf16>, vector<128x64xf32> -> vector<128x64xf32>
    %c0_3 = arith.constant 0 : index
    %c0_4 = arith.constant 0 : index
    %3 = vector.load %arg3[%c0_3, %c0_4] : memref<1x64xf32, #tpu.memory_space<vmem>>, vector<1x64xf32>
    %4 = vector.broadcast %3 : vector<1x64xf32> to vector<128x64xf32>
    %5 = arith.addf %2, %4 : vector<128x64xf32>
    %c0_5 = arith.constant 0 : index
    %c0_6 = arith.constant 0 : index
    %6 = vector.load %arg4[%c0_5, %c0_6] : memref<128x64xf32, #tpu.memory_space<vmem>>, vector<128x64xf32>
    tpu.vector_store %arg4[%c0_5, %c0_6], %5 {strides = array<i32>} : memref<128x64xf32, #tpu.memory_space<vmem>>, vector<128x64xf32>,
    return
  }
  func.func @transform_0(%arg0: i32) -> (i32, i32) {
    %c0_i32 = arith.constant 0 : i32
    %c0_i32_0 = arith.constant 0 : i32
    return %arg0, %c0_i32 : i32, i32
  }
  func.func @transform_1(%arg0: i32) -> (i32, i32) {
    %c0_i32 = arith.constant 0 : i32
    %c0_i32_0 = arith.constant 0 : i32
    %c0_i32_1 = arith.constant 0 : i32
    return %c0_i32, %c0_i32_0 : i32, i32
  }
  func.func @transform_2(%arg0: i32) -> (i32, i32) {
    %c0_i32 = arith.constant 0 : i32
    %c0_i32_0 = arith.constant 0 : i32
    %c0_i32_1 = arith.constant 0 : i32
    return %c0_i32, %c0_i32_0 : i32, i32
  }
  func.func @transform_3(%arg0: i32) -> (i32, i32) {
    %c0_i32 = arith.constant 0 : i32
    %c0_i32_0 = arith.constant 0 : i32
    return %arg0, %c0_i32 : i32, i32
  }
}

module attributes {stable_mosaic.version = 11 : i64} {
  func.func @_cee_tail_kernel(%arg0: i32, %arg1: memref<1x12x12x64xf32, #tpu.memory_space<vmem>>, %arg2: memref<9x64xf32, #tpu.memory_space<vmem>>, %arg3: memref<1x64xf32, #tpu.memory_space<vmem>>, %arg4: memref<1x64xf32, #tpu.memory_space<vmem>>, %arg5: memref<1x64xf32, #tpu.memory_space<vmem>>, %arg6: memref<9x64x64xbf16, #tpu.memory_space<vmem>>, %arg7: memref<1x64xf32, #tpu.memory_space<vmem>>, %arg8: memref<1x64xf32, #tpu.memory_space<vmem>>, %arg9: memref<64x64xbf16, #tpu.memory_space<vmem>>, %arg10: memref<64x64xbf16, #tpu.memory_space<vmem>>, %arg11: memref<1x64xf32, #tpu.memory_space<vmem>>, %arg12: memref<1x64xf32, #tpu.memory_space<vmem>>, %arg13: memref<1x8x8x64xf32, #tpu.memory_space<vmem>>) attributes {dimension_semantics = [#tpu.dimension_semantics<parallel>], iteration_bounds = array<i64: 2>, scalar_prefetch = 0 : i64, scratch_operands = 0 : i64, tpu.core_type = #tpu.core_type<tc>, window_params = [{transform_indices = @transform_0, window_bounds = array<i64: 1, 12, 12, 64>}, {pipeline_mode = #tpu.pipeline_mode<synchronous>, transform_indices = @transform_1, window_bounds = array<i64: 9, 64>}, {pipeline_mode = #tpu.pipeline_mode<synchronous>, transform_indices = @transform_2, window_bounds = array<i64: 1, 64>}, {pipeline_mode = #tpu.pipeline_mode<synchronous>, transform_indices = @transform_3, window_bounds = array<i64: 1, 64>}, {pipeline_mode = #tpu.pipeline_mode<synchronous>, transform_indices = @transform_4, window_bounds = array<i64: 1, 64>}, {pipeline_mode = #tpu.pipeline_mode<synchronous>, transform_indices = @transform_5, window_bounds = array<i64: 9, 64, 64>}, {pipeline_mode = #tpu.pipeline_mode<synchronous>, transform_indices = @transform_6, window_bounds = array<i64: 1, 64>}, {pipeline_mode = #tpu.pipeline_mode<synchronous>, transform_indices = @transform_7, window_bounds = array<i64: 1, 64>}, {pipeline_mode = #tpu.pipeline_mode<synchronous>, transform_indices = @transform_8, window_bounds = array<i64: 64, 64>}, {pipeline_mode = #tpu.pipeline_mode<synchronous>, transform_indices = @transform_9, window_bounds = array<i64: 64, 64>}, {pipeline_mode = #tpu.pipeline_mode<synchronous>, transform_indices = @transform_10, window_bounds = array<i64: 1, 64>}, {pipeline_mode = #tpu.pipeline_mode<synchronous>, transform_indices = @transform_11, window_bounds = array<i64: 1, 64>}, {transform_indices = @transform_12, window_bounds = array<i64: 1, 8, 8, 64>}]} {
    %c0 = arith.constant 0 : index
    %c0_0 = arith.constant 0 : index
    %c0_1 = arith.constant 0 : index
    %c0_2 = arith.constant 0 : index
    %0 = vector.load %arg1[%c0, %c0_0, %c0_1, %c0_2] : memref<1x12x12x64xf32, #tpu.memory_space<vmem>>, vector<1x12x12x64xf32>
    %1 = vector.shape_cast %0 : vector<1x12x12x64xf32> to vector<12x12x64xf32>
    %c0_3 = arith.constant 0 : index
    %c0_4 = arith.constant 0 : index
    %2 = vector.load %arg2[%c0_3, %c0_4] : memref<9x64xf32, #tpu.memory_space<vmem>>, vector<9x64xf32>
    %cst = arith.constant 0.000000e+00 : f32
    %3 = vector.broadcast %cst : f32 to vector<10x10x64xf32>
    %4 = vector.extract_strided_slice %1 {offsets = [0, 0, 0], sizes = [10, 10, 64], strides = [1, 1, 1]} : vector<12x12x64xf32> to vector<10x10x64xf32>
    %5 = vector.extract_strided_slice %2 {offsets = [0, 0], sizes = [1, 64], strides = [1, 1]} : vector<9x64xf32> to vector<1x64xf32>
    %6 = vector.shape_cast %5 : vector<1x64xf32> to vector<64xf32>
    %7 = vector.shape_cast %6 : vector<64xf32> to vector<1x1x64xf32>
    %8 = vector.broadcast %7 : vector<1x1x64xf32> to vector<10x10x64xf32>
    %9 = arith.mulf %4, %8 : vector<10x10x64xf32>
    %10 = arith.addf %3, %9 : vector<10x10x64xf32>
    %11 = vector.extract_strided_slice %1 {offsets = [0, 1, 0], sizes = [10, 10, 64], strides = [1, 1, 1]} : vector<12x12x64xf32> to vector<10x10x64xf32>
    %12 = vector.extract_strided_slice %2 {offsets = [1, 0], sizes = [1, 64], strides = [1, 1]} : vector<9x64xf32> to vector<1x64xf32>
    %13 = vector.shape_cast %12 : vector<1x64xf32> to vector<64xf32>
    %14 = vector.shape_cast %13 : vector<64xf32> to vector<1x1x64xf32>
    %15 = vector.broadcast %14 : vector<1x1x64xf32> to vector<10x10x64xf32>
    %16 = arith.mulf %11, %15 : vector<10x10x64xf32>
    %17 = arith.addf %10, %16 : vector<10x10x64xf32>
    %18 = vector.extract_strided_slice %1 {offsets = [0, 2, 0], sizes = [10, 10, 64], strides = [1, 1, 1]} : vector<12x12x64xf32> to vector<10x10x64xf32>
    %19 = vector.extract_strided_slice %2 {offsets = [2, 0], sizes = [1, 64], strides = [1, 1]} : vector<9x64xf32> to vector<1x64xf32>
    %20 = vector.shape_cast %19 : vector<1x64xf32> to vector<64xf32>
    %21 = vector.shape_cast %20 : vector<64xf32> to vector<1x1x64xf32>
    %22 = vector.broadcast %21 : vector<1x1x64xf32> to vector<10x10x64xf32>
    %23 = arith.mulf %18, %22 : vector<10x10x64xf32>
    %24 = arith.addf %17, %23 : vector<10x10x64xf32>
    %25 = vector.extract_strided_slice %1 {offsets = [1, 0, 0], sizes = [10, 10, 64], strides = [1, 1, 1]} : vector<12x12x64xf32> to vector<10x10x64xf32>
    %26 = vector.extract_strided_slice %2 {offsets = [3, 0], sizes = [1, 64], strides = [1, 1]} : vector<9x64xf32> to vector<1x64xf32>
    %27 = vector.shape_cast %26 : vector<1x64xf32> to vector<64xf32>
    %28 = vector.shape_cast %27 : vector<64xf32> to vector<1x1x64xf32>
    %29 = vector.broadcast %28 : vector<1x1x64xf32> to vector<10x10x64xf32>
    %30 = arith.mulf %25, %29 : vector<10x10x64xf32>
    %31 = arith.addf %24, %30 : vector<10x10x64xf32>
    %32 = vector.extract_strided_slice %1 {offsets = [1, 1, 0], sizes = [10, 10, 64], strides = [1, 1, 1]} : vector<12x12x64xf32> to vector<10x10x64xf32>
    %33 = vector.extract_strided_slice %2 {offsets = [4, 0], sizes = [1, 64], strides = [1, 1]} : vector<9x64xf32> to vector<1x64xf32>
    %34 = vector.shape_cast %33 : vector<1x64xf32> to vector<64xf32>
    %35 = vector.shape_cast %34 : vector<64xf32> to vector<1x1x64xf32>
    %36 = vector.broadcast %35 : vector<1x1x64xf32> to vector<10x10x64xf32>
    %37 = arith.mulf %32, %36 : vector<10x10x64xf32>
    %38 = arith.addf %31, %37 : vector<10x10x64xf32>
    %39 = vector.extract_strided_slice %1 {offsets = [1, 2, 0], sizes = [10, 10, 64], strides = [1, 1, 1]} : vector<12x12x64xf32> to vector<10x10x64xf32>
    %40 = vector.extract_strided_slice %2 {offsets = [5, 0], sizes = [1, 64], strides = [1, 1]} : vector<9x64xf32> to vector<1x64xf32>
    %41 = vector.shape_cast %40 : vector<1x64xf32> to vector<64xf32>
    %42 = vector.shape_cast %41 : vector<64xf32> to vector<1x1x64xf32>
    %43 = vector.broadcast %42 : vector<1x1x64xf32> to vector<10x10x64xf32>
    %44 = arith.mulf %39, %43 : vector<10x10x64xf32>
    %45 = arith.addf %38, %44 : vector<10x10x64xf32>
    %46 = vector.extract_strided_slice %1 {offsets = [2, 0, 0], sizes = [10, 10, 64], strides = [1, 1, 1]} : vector<12x12x64xf32> to vector<10x10x64xf32>
    %47 = vector.extract_strided_slice %2 {offsets = [6, 0], sizes = [1, 64], strides = [1, 1]} : vector<9x64xf32> to vector<1x64xf32>
    %48 = vector.shape_cast %47 : vector<1x64xf32> to vector<64xf32>
    %49 = vector.shape_cast %48 : vector<64xf32> to vector<1x1x64xf32>
    %50 = vector.broadcast %49 : vector<1x1x64xf32> to vector<10x10x64xf32>
    %51 = arith.mulf %46, %50 : vector<10x10x64xf32>
    %52 = arith.addf %45, %51 : vector<10x10x64xf32>
    %53 = vector.extract_strided_slice %1 {offsets = [2, 1, 0], sizes = [10, 10, 64], strides = [1, 1, 1]} : vector<12x12x64xf32> to vector<10x10x64xf32>
    %54 = vector.extract_strided_slice %2 {offsets = [7, 0], sizes = [1, 64], strides = [1, 1]} : vector<9x64xf32> to vector<1x64xf32>
    %55 = vector.shape_cast %54 : vector<1x64xf32> to vector<64xf32>
    %56 = vector.shape_cast %55 : vector<64xf32> to vector<1x1x64xf32>
    %57 = vector.broadcast %56 : vector<1x1x64xf32> to vector<10x10x64xf32>
    %58 = arith.mulf %53, %57 : vector<10x10x64xf32>
    %59 = arith.addf %52, %58 : vector<10x10x64xf32>
    %60 = vector.extract_strided_slice %1 {offsets = [2, 2, 0], sizes = [10, 10, 64], strides = [1, 1, 1]} : vector<12x12x64xf32> to vector<10x10x64xf32>
    %61 = vector.extract_strided_slice %2 {offsets = [8, 0], sizes = [1, 64], strides = [1, 1]} : vector<9x64xf32> to vector<1x64xf32>
    %62 = vector.shape_cast %61 : vector<1x64xf32> to vector<64xf32>
    %63 = vector.shape_cast %62 : vector<64xf32> to vector<1x1x64xf32>
    %64 = vector.broadcast %63 : vector<1x1x64xf32> to vector<10x10x64xf32>
    %65 = arith.mulf %60, %64 : vector<10x10x64xf32>
    %66 = arith.addf %59, %65 : vector<10x10x64xf32>
    %c0_5 = arith.constant 0 : index
    %c0_6 = arith.constant 0 : index
    %67 = vector.load %arg3[%c0_5, %c0_6] : memref<1x64xf32, #tpu.memory_space<vmem>>, vector<1x64xf32>
    %68 = vector.shape_cast %67 : vector<1x64xf32> to vector<64xf32>
    %69 = vector.shape_cast %68 : vector<64xf32> to vector<1x1x64xf32>
    %70 = vector.broadcast %69 : vector<1x1x64xf32> to vector<10x10x64xf32>
    %71 = arith.addf %66, %70 : vector<10x10x64xf32>
    %cst_7 = arith.constant 5.000000e-01 : f32
    %72 = vector.broadcast %cst_7 : f32 to vector<10x10x64xf32>
    %73 = arith.mulf %72, %71 : vector<10x10x64xf32>
    %cst_8 = arith.constant 1.41421354 : f32
    %74 = vector.broadcast %cst_8 : f32 to vector<10x10x64xf32>
    %75 = arith.divf %71, %74 : vector<10x10x64xf32>
    %76 = math.erf %75 : vector<10x10x64xf32>
    %cst_9 = arith.constant 1.000000e+00 : f32
    %77 = vector.broadcast %cst_9 : f32 to vector<10x10x64xf32>
    %78 = arith.addf %77, %76 : vector<10x10x64xf32>
    %79 = arith.mulf %73, %78 : vector<10x10x64xf32>
    %80 = vector.extract_strided_slice %1 {offsets = [1, 1, 0], sizes = [10, 10, 64], strides = [1, 1, 1]} : vector<12x12x64xf32> to vector<10x10x64xf32>
    %cst_10 = arith.constant dense<0.000000e+00> : vector<10x10xf32>
    %81 = vector.multi_reduction <add>, %80, %cst_10 [2] : vector<10x10x64xf32> to vector<10x10xf32>
    %82 = vector.shape_cast %81 : vector<10x10xf32> to vector<10x10x1xf32>
    %cst_11 = arith.constant 6.400000e+01 : f32
    %83 = vector.broadcast %cst_11 : f32 to vector<10x10x1xf32>
    %84 = arith.divf %82, %83 : vector<10x10x1xf32>
    %85 = vector.broadcast %84 : vector<10x10x1xf32> to vector<10x10x64xf32>
    %86 = arith.subf %80, %85 : vector<10x10x64xf32>
    %87 = arith.mulf %86, %86 : vector<10x10x64xf32>
    %cst_12 = arith.constant dense<0.000000e+00> : vector<10x10xf32>
    %88 = vector.multi_reduction <add>, %87, %cst_12 [2] : vector<10x10x64xf32> to vector<10x10xf32>
    %89 = vector.shape_cast %88 : vector<10x10xf32> to vector<10x10x1xf32>
    %cst_13 = arith.constant 6.400000e+01 : f32
    %90 = vector.broadcast %cst_13 : f32 to vector<10x10x1xf32>
    %91 = arith.divf %89, %90 : vector<10x10x1xf32>
    %92 = vector.broadcast %84 : vector<10x10x1xf32> to vector<10x10x64xf32>
    %93 = arith.subf %80, %92 : vector<10x10x64xf32>
    %cst_14 = arith.constant 9.99999974E-6 : f32
    %94 = vector.broadcast %cst_14 : f32 to vector<10x10x1xf32>
    %95 = arith.addf %91, %94 : vector<10x10x1xf32>
    %96 = math.rsqrt %95 : vector<10x10x1xf32>
    %97 = vector.broadcast %96 : vector<10x10x1xf32> to vector<10x10x64xf32>
    %98 = arith.mulf %93, %97 : vector<10x10x64xf32>
    %c0_15 = arith.constant 0 : index
    %c0_16 = arith.constant 0 : index
    %99 = vector.load %arg4[%c0_15, %c0_16] : memref<1x64xf32, #tpu.memory_space<vmem>>, vector<1x64xf32>
    %100 = vector.shape_cast %99 : vector<1x64xf32> to vector<64xf32>
    %101 = vector.shape_cast %100 : vector<64xf32> to vector<1x1x64xf32>
    %102 = vector.broadcast %101 : vector<1x1x64xf32> to vector<10x10x64xf32>
    %103 = arith.mulf %98, %102 : vector<10x10x64xf32>
    %c0_17 = arith.constant 0 : index
    %c0_18 = arith.constant 0 : index
    %104 = vector.load %arg5[%c0_17, %c0_18] : memref<1x64xf32, #tpu.memory_space<vmem>>, vector<1x64xf32>
    %105 = vector.shape_cast %104 : vector<1x64xf32> to vector<64xf32>
    %106 = vector.shape_cast %105 : vector<64xf32> to vector<1x1x64xf32>
    %107 = vector.broadcast %106 : vector<1x1x64xf32> to vector<10x10x64xf32>
    %108 = arith.addf %103, %107 : vector<10x10x64xf32>
    %109 = arith.addf %108, %79 : vector<10x10x64xf32>
    %110 = tpu.iota {dimensions = array<i32: 0>} : vector<10x10x64xi32>
    %111 = tpu.iota {dimensions = array<i32: 1>} : vector<10x10x64xi32>
    %c1_i32 = arith.constant 1 : i32
    %112 = vector.broadcast %c1_i32 : i32 to vector<10x10x64xi32>
    %113 = arith.cmpi sge, %110, %112 : vector<10x10x64xi32>
    %c8_i32 = arith.constant 8 : i32
    %114 = vector.broadcast %c8_i32 : i32 to vector<10x10x64xi32>
    %115 = arith.cmpi sle, %110, %114 : vector<10x10x64xi32>
    %116 = arith.andi %113, %115 : vector<10x10x64xi1>
    %c1_i32_19 = arith.constant 1 : i32
    %117 = vector.broadcast %c1_i32_19 : i32 to vector<10x10x64xi32>
    %118 = arith.cmpi sge, %111, %117 : vector<10x10x64xi32>
    %119 = arith.andi %116, %118 : vector<10x10x64xi1>
    %c8_i32_20 = arith.constant 8 : i32
    %120 = vector.broadcast %c8_i32_20 : i32 to vector<10x10x64xi32>
    %121 = arith.cmpi sle, %111, %120 : vector<10x10x64xi32>
    %122 = arith.andi %119, %121 : vector<10x10x64xi1>
    %cst_21 = arith.constant 0.000000e+00 : f32
    %123 = vector.broadcast %cst_21 : f32 to vector<10x10x64xf32>
    %124 = arith.select %122, %109, %123 : vector<10x10x64xi1>, vector<10x10x64xf32>
    %cst_22 = arith.constant 0.000000e+00 : f32
    %125 = vector.broadcast %cst_22 : f32 to vector<64x64xf32>
    %126 = vector.extract_strided_slice %124 {offsets = [0, 0, 0], sizes = [8, 8, 64], strides = [1, 1, 1]} : vector<10x10x64xf32> to vector<8x8x64xf32>
    %127 = vector.shape_cast %126 : vector<8x8x64xf32> to vector<64x64xf32>
    %128 = arith.truncf %127 : vector<64x64xf32> to vector<64x64xbf16>
    %c0_23 = arith.constant 0 : index
    %c0_24 = arith.constant 0 : index
    %c0_25 = arith.constant 0 : index
    %129 = vector.load %arg6[%c0_23, %c0_24, %c0_25] : memref<9x64x64xbf16, #tpu.memory_space<vmem>>, vector<1x64x64xbf16>
    %130 = vector.shape_cast %129 : vector<1x64x64xbf16> to vector<64x64xbf16>
    %cst_26 = arith.constant dense<0.000000e+00> : vector<64x64xf32>
    %131 = tpu.matmul %128, %130, %cst_26 {dimension_numbers = #tpu.dot_dimension_numbers<[1], [0], [0], [1], [0, 0, 1, 1], [], []>} : vector<64x64xbf16>, vector<64x64xbf16>, vector<64x64xf32> -> vector<64x64xf32>
    %132 = arith.addf %125, %131 : vector<64x64xf32>
    %133 = vector.extract_strided_slice %124 {offsets = [0, 1, 0], sizes = [8, 8, 64], strides = [1, 1, 1]} : vector<10x10x64xf32> to vector<8x8x64xf32>
    %134 = vector.shape_cast %133 : vector<8x8x64xf32> to vector<64x64xf32>
    %135 = arith.truncf %134 : vector<64x64xf32> to vector<64x64xbf16>
    %c1 = arith.constant 1 : index
    %c0_27 = arith.constant 0 : index
    %c0_28 = arith.constant 0 : index
    %136 = vector.load %arg6[%c1, %c0_27, %c0_28] : memref<9x64x64xbf16, #tpu.memory_space<vmem>>, vector<1x64x64xbf16>
    %137 = vector.shape_cast %136 : vector<1x64x64xbf16> to vector<64x64xbf16>
    %cst_29 = arith.constant dense<0.000000e+00> : vector<64x64xf32>
    %138 = tpu.matmul %135, %137, %cst_29 {dimension_numbers = #tpu.dot_dimension_numbers<[1], [0], [0], [1], [0, 0, 1, 1], [], []>} : vector<64x64xbf16>, vector<64x64xbf16>, vector<64x64xf32> -> vector<64x64xf32>
    %139 = arith.addf %132, %138 : vector<64x64xf32>
    %140 = vector.extract_strided_slice %124 {offsets = [0, 2, 0], sizes = [8, 8, 64], strides = [1, 1, 1]} : vector<10x10x64xf32> to vector<8x8x64xf32>
    %141 = vector.shape_cast %140 : vector<8x8x64xf32> to vector<64x64xf32>
    %142 = arith.truncf %141 : vector<64x64xf32> to vector<64x64xbf16>
    %c2 = arith.constant 2 : index
    %c0_30 = arith.constant 0 : index
    %c0_31 = arith.constant 0 : index
    %143 = vector.load %arg6[%c2, %c0_30, %c0_31] : memref<9x64x64xbf16, #tpu.memory_space<vmem>>, vector<1x64x64xbf16>
    %144 = vector.shape_cast %143 : vector<1x64x64xbf16> to vector<64x64xbf16>
    %cst_32 = arith.constant dense<0.000000e+00> : vector<64x64xf32>
    %145 = tpu.matmul %142, %144, %cst_32 {dimension_numbers = #tpu.dot_dimension_numbers<[1], [0], [0], [1], [0, 0, 1, 1], [], []>} : vector<64x64xbf16>, vector<64x64xbf16>, vector<64x64xf32> -> vector<64x64xf32>
    %146 = arith.addf %139, %145 : vector<64x64xf32>
    %147 = vector.extract_strided_slice %124 {offsets = [1, 0, 0], sizes = [8, 8, 64], strides = [1, 1, 1]} : vector<10x10x64xf32> to vector<8x8x64xf32>
    %148 = vector.shape_cast %147 : vector<8x8x64xf32> to vector<64x64xf32>
    %149 = arith.truncf %148 : vector<64x64xf32> to vector<64x64xbf16>
    %c3 = arith.constant 3 : index
    %c0_33 = arith.constant 0 : index
    %c0_34 = arith.constant 0 : index
    %150 = vector.load %arg6[%c3, %c0_33, %c0_34] : memref<9x64x64xbf16, #tpu.memory_space<vmem>>, vector<1x64x64xbf16>
    %151 = vector.shape_cast %150 : vector<1x64x64xbf16> to vector<64x64xbf16>
    %cst_35 = arith.constant dense<0.000000e+00> : vector<64x64xf32>
    %152 = tpu.matmul %149, %151, %cst_35 {dimension_numbers = #tpu.dot_dimension_numbers<[1], [0], [0], [1], [0, 0, 1, 1], [], []>} : vector<64x64xbf16>, vector<64x64xbf16>, vector<64x64xf32> -> vector<64x64xf32>
    %153 = arith.addf %146, %152 : vector<64x64xf32>
    %154 = vector.extract_strided_slice %124 {offsets = [1, 1, 0], sizes = [8, 8, 64], strides = [1, 1, 1]} : vector<10x10x64xf32> to vector<8x8x64xf32>
    %155 = vector.shape_cast %154 : vector<8x8x64xf32> to vector<64x64xf32>
    %156 = arith.truncf %155 : vector<64x64xf32> to vector<64x64xbf16>
    %c4 = arith.constant 4 : index
    %c0_36 = arith.constant 0 : index
    %c0_37 = arith.constant 0 : index
    %157 = vector.load %arg6[%c4, %c0_36, %c0_37] : memref<9x64x64xbf16, #tpu.memory_space<vmem>>, vector<1x64x64xbf16>
    %158 = vector.shape_cast %157 : vector<1x64x64xbf16> to vector<64x64xbf16>
    %cst_38 = arith.constant dense<0.000000e+00> : vector<64x64xf32>
    %159 = tpu.matmul %156, %158, %cst_38 {dimension_numbers = #tpu.dot_dimension_numbers<[1], [0], [0], [1], [0, 0, 1, 1], [], []>} : vector<64x64xbf16>, vector<64x64xbf16>, vector<64x64xf32> -> vector<64x64xf32>
    %160 = arith.addf %153, %159 : vector<64x64xf32>
    %161 = vector.extract_strided_slice %124 {offsets = [1, 2, 0], sizes = [8, 8, 64], strides = [1, 1, 1]} : vector<10x10x64xf32> to vector<8x8x64xf32>
    %162 = vector.shape_cast %161 : vector<8x8x64xf32> to vector<64x64xf32>
    %163 = arith.truncf %162 : vector<64x64xf32> to vector<64x64xbf16>
    %c5 = arith.constant 5 : index
    %c0_39 = arith.constant 0 : index
    %c0_40 = arith.constant 0 : index
    %164 = vector.load %arg6[%c5, %c0_39, %c0_40] : memref<9x64x64xbf16, #tpu.memory_space<vmem>>, vector<1x64x64xbf16>
    %165 = vector.shape_cast %164 : vector<1x64x64xbf16> to vector<64x64xbf16>
    %cst_41 = arith.constant dense<0.000000e+00> : vector<64x64xf32>
    %166 = tpu.matmul %163, %165, %cst_41 {dimension_numbers = #tpu.dot_dimension_numbers<[1], [0], [0], [1], [0, 0, 1, 1], [], []>} : vector<64x64xbf16>, vector<64x64xbf16>, vector<64x64xf32> -> vector<64x64xf32>
    %167 = arith.addf %160, %166 : vector<64x64xf32>
    %168 = vector.extract_strided_slice %124 {offsets = [2, 0, 0], sizes = [8, 8, 64], strides = [1, 1, 1]} : vector<10x10x64xf32> to vector<8x8x64xf32>
    %169 = vector.shape_cast %168 : vector<8x8x64xf32> to vector<64x64xf32>
    %170 = arith.truncf %169 : vector<64x64xf32> to vector<64x64xbf16>
    %c6 = arith.constant 6 : index
    %c0_42 = arith.constant 0 : index
    %c0_43 = arith.constant 0 : index
    %171 = vector.load %arg6[%c6, %c0_42, %c0_43] : memref<9x64x64xbf16, #tpu.memory_space<vmem>>, vector<1x64x64xbf16>
    %172 = vector.shape_cast %171 : vector<1x64x64xbf16> to vector<64x64xbf16>
    %cst_44 = arith.constant dense<0.000000e+00> : vector<64x64xf32>
    %173 = tpu.matmul %170, %172, %cst_44 {dimension_numbers = #tpu.dot_dimension_numbers<[1], [0], [0], [1], [0, 0, 1, 1], [], []>} : vector<64x64xbf16>, vector<64x64xbf16>, vector<64x64xf32> -> vector<64x64xf32>
    %174 = arith.addf %167, %173 : vector<64x64xf32>
    %175 = vector.extract_strided_slice %124 {offsets = [2, 1, 0], sizes = [8, 8, 64], strides = [1, 1, 1]} : vector<10x10x64xf32> to vector<8x8x64xf32>
    %176 = vector.shape_cast %175 : vector<8x8x64xf32> to vector<64x64xf32>
    %177 = arith.truncf %176 : vector<64x64xf32> to vector<64x64xbf16>
    %c7 = arith.constant 7 : index
    %c0_45 = arith.constant 0 : index
    %c0_46 = arith.constant 0 : index
    %178 = vector.load %arg6[%c7, %c0_45, %c0_46] : memref<9x64x64xbf16, #tpu.memory_space<vmem>>, vector<1x64x64xbf16>
    %179 = vector.shape_cast %178 : vector<1x64x64xbf16> to vector<64x64xbf16>
    %cst_47 = arith.constant dense<0.000000e+00> : vector<64x64xf32>
    %180 = tpu.matmul %177, %179, %cst_47 {dimension_numbers = #tpu.dot_dimension_numbers<[1], [0], [0], [1], [0, 0, 1, 1], [], []>} : vector<64x64xbf16>, vector<64x64xbf16>, vector<64x64xf32> -> vector<64x64xf32>
    %181 = arith.addf %174, %180 : vector<64x64xf32>
    %182 = vector.extract_strided_slice %124 {offsets = [2, 2, 0], sizes = [8, 8, 64], strides = [1, 1, 1]} : vector<10x10x64xf32> to vector<8x8x64xf32>
    %183 = vector.shape_cast %182 : vector<8x8x64xf32> to vector<64x64xf32>
    %184 = arith.truncf %183 : vector<64x64xf32> to vector<64x64xbf16>
    %c8 = arith.constant 8 : index
    %c0_48 = arith.constant 0 : index
    %c0_49 = arith.constant 0 : index
    %185 = vector.load %arg6[%c8, %c0_48, %c0_49] : memref<9x64x64xbf16, #tpu.memory_space<vmem>>, vector<1x64x64xbf16>
    %186 = vector.shape_cast %185 : vector<1x64x64xbf16> to vector<64x64xbf16>
    %cst_50 = arith.constant dense<0.000000e+00> : vector<64x64xf32>
    %187 = tpu.matmul %184, %186, %cst_50 {dimension_numbers = #tpu.dot_dimension_numbers<[1], [0], [0], [1], [0, 0, 1, 1], [], []>} : vector<64x64xbf16>, vector<64x64xbf16>, vector<64x64xf32> -> vector<64x64xf32>
    %188 = arith.addf %181, %187 : vector<64x64xf32>
    %c0_51 = arith.constant 0 : index
    %c0_52 = arith.constant 0 : index
    %189 = vector.load %arg7[%c0_51, %c0_52] : memref<1x64xf32, #tpu.memory_space<vmem>>, vector<1x64xf32>
    %190 = vector.broadcast %189 : vector<1x64xf32> to vector<64x64xf32>
    %191 = arith.mulf %188, %190 : vector<64x64xf32>
    %c0_53 = arith.constant 0 : index
    %c0_54 = arith.constant 0 : index
    %192 = vector.load %arg8[%c0_53, %c0_54] : memref<1x64xf32, #tpu.memory_space<vmem>>, vector<1x64xf32>
    %193 = vector.broadcast %192 : vector<1x64xf32> to vector<64x64xf32>
    %194 = arith.addf %191, %193 : vector<64x64xf32>
    %cst_55 = arith.constant 5.000000e-01 : f32
    %195 = vector.broadcast %cst_55 : f32 to vector<64x64xf32>
    %196 = arith.mulf %195, %194 : vector<64x64xf32>
    %cst_56 = arith.constant 1.41421354 : f32
    %197 = vector.broadcast %cst_56 : f32 to vector<64x64xf32>
    %198 = arith.divf %194, %197 : vector<64x64xf32>
    %199 = math.erf %198 : vector<64x64xf32>
    %cst_57 = arith.constant 1.000000e+00 : f32
    %200 = vector.broadcast %cst_57 : f32 to vector<64x64xf32>
    %201 = arith.addf %200, %199 : vector<64x64xf32>
    %202 = arith.mulf %196, %201 : vector<64x64xf32>
    %203 = vector.extract_strided_slice %1 {offsets = [2, 2, 0], sizes = [8, 8, 64], strides = [1, 1, 1]} : vector<12x12x64xf32> to vector<8x8x64xf32>
    %204 = vector.shape_cast %203 : vector<8x8x64xf32> to vector<64x64xf32>
    %205 = arith.truncf %202 : vector<64x64xf32> to vector<64x64xbf16>
    %c0_58 = arith.constant 0 : index
    %c0_59 = arith.constant 0 : index
    %206 = vector.load %arg9[%c0_58, %c0_59] : memref<64x64xbf16, #tpu.memory_space<vmem>>, vector<64x64xbf16>
    %cst_60 = arith.constant dense<0.000000e+00> : vector<64x64xf32>
    %207 = tpu.matmul %205, %206, %cst_60 {dimension_numbers = #tpu.dot_dimension_numbers<[1], [0], [0], [1], [0, 0, 1, 1], [], []>} : vector<64x64xbf16>, vector<64x64xbf16>, vector<64x64xf32> -> vector<64x64xf32>
    %208 = arith.truncf %204 : vector<64x64xf32> to vector<64x64xbf16>
    %c0_61 = arith.constant 0 : index
    %c0_62 = arith.constant 0 : index
    %209 = vector.load %arg10[%c0_61, %c0_62] : memref<64x64xbf16, #tpu.memory_space<vmem>>, vector<64x64xbf16>
    %cst_63 = arith.constant dense<0.000000e+00> : vector<64x64xf32>
    %210 = tpu.matmul %208, %209, %cst_63 {dimension_numbers = #tpu.dot_dimension_numbers<[1], [0], [0], [1], [0, 0, 1, 1], [], []>} : vector<64x64xbf16>, vector<64x64xbf16>, vector<64x64xf32> -> vector<64x64xf32>
    %211 = arith.addf %207, %210 : vector<64x64xf32>
    %c0_64 = arith.constant 0 : index
    %c0_65 = arith.constant 0 : index
    %212 = vector.load %arg11[%c0_64, %c0_65] : memref<1x64xf32, #tpu.memory_space<vmem>>, vector<1x64xf32>
    %213 = vector.broadcast %212 : vector<1x64xf32> to vector<64x64xf32>
    %214 = arith.mulf %211, %213 : vector<64x64xf32>
    %c0_66 = arith.constant 0 : index
    %c0_67 = arith.constant 0 : index
    %215 = vector.load %arg12[%c0_66, %c0_67] : memref<1x64xf32, #tpu.memory_space<vmem>>, vector<1x64xf32>
    %216 = vector.broadcast %215 : vector<1x64xf32> to vector<64x64xf32>
    %217 = arith.addf %214, %216 : vector<64x64xf32>
    %cst_68 = arith.constant 5.000000e-01 : f32
    %218 = vector.broadcast %cst_68 : f32 to vector<64x64xf32>
    %219 = arith.mulf %218, %217 : vector<64x64xf32>
    %cst_69 = arith.constant 1.41421354 : f32
    %220 = vector.broadcast %cst_69 : f32 to vector<64x64xf32>
    %221 = arith.divf %217, %220 : vector<64x64xf32>
    %222 = math.erf %221 : vector<64x64xf32>
    %cst_70 = arith.constant 1.000000e+00 : f32
    %223 = vector.broadcast %cst_70 : f32 to vector<64x64xf32>
    %224 = arith.addf %223, %222 : vector<64x64xf32>
    %225 = arith.mulf %219, %224 : vector<64x64xf32>
    %226 = vector.shape_cast %225 : vector<64x64xf32> to vector<1x8x8x64xf32>
    %c0_71 = arith.constant 0 : index
    %c0_72 = arith.constant 0 : index
    %c0_73 = arith.constant 0 : index
    %c0_74 = arith.constant 0 : index
    %227 = vector.load %arg13[%c0_71, %c0_72, %c0_73, %c0_74] : memref<1x8x8x64xf32, #tpu.memory_space<vmem>>, vector<1x8x8x64xf32>
    tpu.vector_store %arg13[%c0_71, %c0_72, %c0_73, %c0_74], %226 {strides = array<i32>} : memref<1x8x8x64xf32, #tpu.memory_space<vmem>>, vector<1x8x8x64xf32>,
    return
  }
  func.func @transform_0(%arg0: i32) -> (i32, i32, i32, i32) {
    %c0_i32 = arith.constant 0 : i32
    %c0_i32_0 = arith.constant 0 : i32
    %c0_i32_1 = arith.constant 0 : i32
    %c0_i32_2 = arith.constant 0 : i32
    return %arg0, %c0_i32, %c0_i32_0, %c0_i32_1 : i32, i32, i32, i32
  }
  func.func @transform_1(%arg0: i32) -> (i32, i32) {
    %c0_i32 = arith.constant 0 : i32
    %c0_i32_0 = arith.constant 0 : i32
    %c0_i32_1 = arith.constant 0 : i32
    return %c0_i32, %c0_i32_0 : i32, i32
  }
  func.func @transform_2(%arg0: i32) -> (i32, i32) {
    %c0_i32 = arith.constant 0 : i32
    %c0_i32_0 = arith.constant 0 : i32
    %c0_i32_1 = arith.constant 0 : i32
    return %c0_i32, %c0_i32_0 : i32, i32
  }
  func.func @transform_3(%arg0: i32) -> (i32, i32) {
    %c0_i32 = arith.constant 0 : i32
    %c0_i32_0 = arith.constant 0 : i32
    %c0_i32_1 = arith.constant 0 : i32
    return %c0_i32, %c0_i32_0 : i32, i32
  }
  func.func @transform_4(%arg0: i32) -> (i32, i32) {
    %c0_i32 = arith.constant 0 : i32
    %c0_i32_0 = arith.constant 0 : i32
    %c0_i32_1 = arith.constant 0 : i32
    return %c0_i32, %c0_i32_0 : i32, i32
  }
  func.func @transform_5(%arg0: i32) -> (i32, i32, i32) {
    %c0_i32 = arith.constant 0 : i32
    %c0_i32_0 = arith.constant 0 : i32
    %c0_i32_1 = arith.constant 0 : i32
    %c0_i32_2 = arith.constant 0 : i32
    return %c0_i32, %c0_i32_0, %c0_i32_1 : i32, i32, i32
  }
  func.func @transform_6(%arg0: i32) -> (i32, i32) {
    %c0_i32 = arith.constant 0 : i32
    %c0_i32_0 = arith.constant 0 : i32
    %c0_i32_1 = arith.constant 0 : i32
    return %c0_i32, %c0_i32_0 : i32, i32
  }
  func.func @transform_7(%arg0: i32) -> (i32, i32) {
    %c0_i32 = arith.constant 0 : i32
    %c0_i32_0 = arith.constant 0 : i32
    %c0_i32_1 = arith.constant 0 : i32
    return %c0_i32, %c0_i32_0 : i32, i32
  }
  func.func @transform_8(%arg0: i32) -> (i32, i32) {
    %c0_i32 = arith.constant 0 : i32
    %c0_i32_0 = arith.constant 0 : i32
    %c0_i32_1 = arith.constant 0 : i32
    return %c0_i32, %c0_i32_0 : i32, i32
  }
  func.func @transform_9(%arg0: i32) -> (i32, i32) {
    %c0_i32 = arith.constant 0 : i32
    %c0_i32_0 = arith.constant 0 : i32
    %c0_i32_1 = arith.constant 0 : i32
    return %c0_i32, %c0_i32_0 : i32, i32
  }
  func.func @transform_10(%arg0: i32) -> (i32, i32) {
    %c0_i32 = arith.constant 0 : i32
    %c0_i32_0 = arith.constant 0 : i32
    %c0_i32_1 = arith.constant 0 : i32
    return %c0_i32, %c0_i32_0 : i32, i32
  }
  func.func @transform_11(%arg0: i32) -> (i32, i32) {
    %c0_i32 = arith.constant 0 : i32
    %c0_i32_0 = arith.constant 0 : i32
    %c0_i32_1 = arith.constant 0 : i32
    return %c0_i32, %c0_i32_0 : i32, i32
  }
  func.func @transform_12(%arg0: i32) -> (i32, i32, i32, i32) {
    %c0_i32 = arith.constant 0 : i32
    %c0_i32_0 = arith.constant 0 : i32
    %c0_i32_1 = arith.constant 0 : i32
    %c0_i32_2 = arith.constant 0 : i32
    return %arg0, %c0_i32, %c0_i32_0, %c0_i32_1 : i32, i32, i32, i32
  }
}

</mosaic_0001>

<llo_original>
// kernel: cee_forward.2
$region0: #{cee_forward.2}
  #allocation0 [shape = 'u32[]', space=smem, size = 0x4, offset = 0x4, fixed_abs, tag = 'smem constant byte address 0x4 - core index']
  #allocation1 [shape = 'u32[72,128]{1,0:T(1,128)}', space=vmem, size = 0x9000, scoped, tag = 'internal scratch']
  %s0 = inlined_call_operand.vmem [shape: bf16[128,576], index: 0, kind: input, shape index: {}]
  %s1 = inlined_call_operand.vmem [shape: bf16[576,64], index: 1, kind: input, shape index: {}]
  %s2 = inlined_call_operand.vmem [shape: f32[1,64], index: 2, kind: input, shape index: {}]
  %s3 = inlined_call_operand.vmem [shape: f32[128,64], index: 3, kind: output, shape index: {}]
  %s4 = sld [smem:[#allocation0]]
  $region22: #{cee_forward.2} parent=0
    _
  %s6 = ssub.s32 1, %s4
  %s7 = scalar_select 0, %s6, %s4
  // Predicated region
  $region2: #{cee_forward.2} parent=0 // pred_check
    _
  $region3: #{cee_forward.2} parent=0 // pred_check_branch
    %9 = sbr.rel (0) target = $region5
  $region4: #{cee_forward.2} parent=0 // pred_region
    _
  $region5: #{cee_forward.2} parent=0 // pred_fallthru
    _
  // Predicated region
  $region6: #{cee_forward.2} parent=0 // pred_check
    _
  $region7: #{cee_forward.2} parent=0 // pred_check_branch
    %11 = sbr.rel (0) target = $region9
  $region8: #{cee_forward.2} parent=0 // pred_region
    _
  $region9: #{cee_forward.2} parent=0 // pred_fallthru
    _
  // Predicated region
  $region10: #{cee_forward.2} parent=0 // pred_check
    _
  $region11: #{cee_forward.2} parent=0 // pred_check_branch
    %13 = sbr.rel (0) target = $region13
  $region12: #{cee_forward.2} parent=0 // pred_region
    _
  $region13: #{cee_forward.2} parent=0 // pred_fallthru
    _
  %v15 = vld [vmem:[%s0] sm:$0xff]
  %v16 = vld [vmem:[%s0 + $0x8] sm:$0xff]
  %v17 = vld [vmem:[%s0 + $0x10] sm:$0xf]
  %v18 = vld [vmem:[%s0 + $0x14] sm:$0xff]
  %v19 = vld [vmem:[%s0 + $0x1c] sm:$0xff]
  %v20 = vld [vmem:[%s0 + $0x24] sm:$0xf]
  %v21 = vld [vmem:[%s0 + $0x28] sm:$0xff]
  %v22 = vld [vmem:[%s0 + $0x30] sm:$0xff]
  %v23 = vld [vmem:[%s0 + $0x38] sm:$0xf]
  %v24 = vld [vmem:[%s0 + $0x3c] sm:$0xff]
  %v25 = vld [vmem:[%s0 + $0x44] sm:$0xff]
  %v26 = vld [vmem:[%s0 + $0x4c] sm:$0xf]
  %v27 = vld [vmem:[%s0 + $0x50] sm:$0xff]
  %v28 = vld [vmem:[%s0 + $0x58] sm:$0xff]
  %v29 = vld [vmem:[%s0 + $0x60] sm:$0xf]
  %v30 = vld [vmem:[%s0 + $0x64] sm:$0xff]
  %v31 = vld [vmem:[%s0 + $0x6c] sm:$0xff]
  %v32 = vld [vmem:[%s0 + $0x74] sm:$0xf]
  %v33 = vld [vmem:[%s0 + $0x78] sm:$0xff]
  %v34 = vld [vmem:[%s0 + $0x80] sm:$0xff]
  %v35 = vld [vmem:[%s0 + $0x88] sm:$0xf]
  %v36 = vld [vmem:[%s0 + $0x8c] sm:$0xff]
  %v37 = vld [vmem:[%s0 + $0x94] sm:$0xff]
  %v38 = vld [vmem:[%s0 + $0x9c] sm:$0xf]
  %v39 = vld [vmem:[%s0 + $0xa0] sm:$0xff]
  %v40 = vld [vmem:[%s0 + $0xa8] sm:$0xff]
  %v41 = vld [vmem:[%s0 + $0xb0] sm:$0xf]
  %v42 = vld [vmem:[%s0 + $0xb4] sm:$0xff]
  %v43 = vld [vmem:[%s0 + $0xbc] sm:$0xff]
  %v44 = vld [vmem:[%s0 + $0xc4] sm:$0xf]
  %v45 = vld [vmem:[%s0 + $0xc8] sm:$0xff]
  %v46 = vld [vmem:[%s0 + $0xd0] sm:$0xff]
  %v47 = vld [vmem:[%s0 + $0xd8] sm:$0xf]
  %v48 = vld [vmem:[%s0 + $0xdc] sm:$0xff]
  %v49 = vld [vmem:[%s0 + $0xe4] sm:$0xff]
  %v50 = vld [vmem:[%s0 + $0xec] sm:$0xf]
  %v51 = vld [vmem:[%s0 + $0xf0] sm:$0xff]
  %v52 = vld [vmem:[%s0 + $0xf8] sm:$0xff]
  %v53 = vld [vmem:[%s0 + $0x100] sm:$0xf]
  %v54 = vld [vmem:[%s0 + $0x104] sm:$0xff]
  %v55 = vld [vmem:[%s0 + $0x10c] sm:$0xff]
  %v56 = vld [vmem:[%s0 + $0x114] sm:$0xf]
  %v57 = vld [vmem:[%s0 + $0x118] sm:$0xff]
  %v58 = vld [vmem:[%s0 + $0x120] sm:$0xff]
  %v59 = vld [vmem:[%s0 + $0x128] sm:$0xf]
  %v60 = vld [vmem:[%s0 + $0x12c] sm:$0xff]
  %v61 = vld [vmem:[%s0 + $0x134] sm:$0xff]
  %v62 = vld [vmem:[%s0 + $0x13c] sm:$0xf]
  %v63 = vld [vmem:[%s1] sm:$0xf]
  %v64 = vld [vmem:[%s1 + $0x4] sm:$0xf]
  %v65 = vld [vmem:[%s1 + $0x8] sm:$0xf]
  %v66 = vld [vmem:[%s1 + $0xc] sm:$0xf]
  %v67 = vld [vmem:[%s1 + $0x10] sm:$0xf]
  %v68 = vld [vmem:[%s1 + $0x14] sm:$0xf]
  %v69 = vld [vmem:[%s1 + $0x18] sm:$0xf]
  %v70 = vld [vmem:[%s1 + $0x1c] sm:$0xf]
  %v71 = vld [vmem:[%s1 + $0x20] sm:$0xf]
  %v72 = vld [vmem:[%s1 + $0x24] sm:$0xf]
  %v73 = vld [vmem:[%s1 + $0x28] sm:$0xf]
  %v74 = vld [vmem:[%s1 + $0x2c] sm:$0xf]
  %v75 = vld [vmem:[%s1 + $0x30] sm:$0xf]
  %v76 = vld [vmem:[%s1 + $0x34] sm:$0xf]
  %v77 = vld [vmem:[%s1 + $0x38] sm:$0xf]
  %v78 = vld [vmem:[%s1 + $0x3c] sm:$0xf]
  %v79 = vld [vmem:[%s1 + $0x40] sm:$0xf]
  %v80 = vld [vmem:[%s1 + $0x44] sm:$0xf]
  %v81 = vld [vmem:[%s1 + $0x48] sm:$0xf]
  %v82 = vld [vmem:[%s1 + $0x4c] sm:$0xf]
  %v83 = vld [vmem:[%s1 + $0x50] sm:$0xf]
  %v84 = vld [vmem:[%s1 + $0x54] sm:$0xf]
  %v85 = vld [vmem:[%s1 + $0x58] sm:$0xf]
  %v86 = vld [vmem:[%s1 + $0x5c] sm:$0xf]
  %v87 = vld [vmem:[%s1 + $0x60] sm:$0xf]
  %v88 = vld [vmem:[%s1 + $0x64] sm:$0xf]
  %v89 = vld [vmem:[%s1 + $0x68] sm:$0xf]
  %v90 = vld [vmem:[%s1 + $0x6c] sm:$0xf]
  %v91 = vld [vmem:[%s1 + $0x70] sm:$0xf]
  %v92 = vld [vmem:[%s1 + $0x74] sm:$0xf]
  %v93 = vld [vmem:[%s1 + $0x78] sm:$0xf]
  %v94 = vld [vmem:[%s1 + $0x7c] sm:$0xf]
  %v95 = vld [vmem:[%s1 + $0x80] sm:$0xf]
  %v96 = vld [vmem:[%s1 + $0x84] sm:$0xf]
  %v97 = vld [vmem:[%s1 + $0x88] sm:$0xf]
  %v98 = vld [vmem:[%s1 + $0x8c] sm:$0xf]
  %v99 = vld [vmem:[%s1 + $0x90] sm:$0xf]
  %v100 = vld [vmem:[%s1 + $0x94] sm:$0xf]
  %v101 = vld [vmem:[%s1 + $0x98] sm:$0xf]
  %v102 = vld [vmem:[%s1 + $0x9c] sm:$0xf]
  %v103 = vld [vmem:[%s1 + $0xa0] sm:$0xf]
  %v104 = vld [vmem:[%s1 + $0xa4] sm:$0xf]
  %v105 = vld [vmem:[%s1 + $0xa8] sm:$0xf]
  %v106 = vld [vmem:[%s1 + $0xac] sm:$0xf]
  %v107 = vld [vmem:[%s1 + $0xb0] sm:$0xf]
  %v108 = vld [vmem:[%s1 + $0xb4] sm:$0xf]
  %v109 = vld [vmem:[%s1 + $0xb8] sm:$0xf]
  %v110 = vld [vmem:[%s1 + $0xbc] sm:$0xf]
  %v111 = vld [vmem:[%s1 + $0xc0] sm:$0xf]
  %v112 = vld [vmem:[%s1 + $0xc4] sm:$0xf]
  %v113 = vld [vmem:[%s1 + $0xc8] sm:$0xf]
  %v114 = vld [vmem:[%s1 + $0xcc] sm:$0xf]
  %v115 = vld [vmem:[%s1 + $0xd0] sm:$0xf]
  %v116 = vld [vmem:[%s1 + $0xd4] sm:$0xf]
  %v117 = vld [vmem:[%s1 + $0xd8] sm:$0xf]
  %v118 = vld [vmem:[%s1 + $0xdc] sm:$0xf]
  %v119 = vld [vmem:[%s1 + $0xe0] sm:$0xf]
  %v120 = vld [vmem:[%s1 + $0xe4] sm:$0xf]
  %v121 = vld [vmem:[%s1 + $0xe8] sm:$0xf]
  %v122 = vld [vmem:[%s1 + $0xec] sm:$0xf]
  %v123 = vld [vmem:[%s1 + $0xf0] sm:$0xf]
  %v124 = vld [vmem:[%s1 + $0xf4] sm:$0xf]
  %v125 = vld [vmem:[%s1 + $0xf8] sm:$0xf]
  %v126 = vld [vmem:[%s1 + $0xfc] sm:$0xf]
  %v127 = vld [vmem:[%s1 + $0x100] sm:$0xf]
  %v128 = vld [vmem:[%s1 + $0x104] sm:$0xf]
  %v129 = vld [vmem:[%s1 + $0x108] sm:$0xf]
  %v130 = vld [vmem:[%s1 + $0x10c] sm:$0xf]
  %v131 = vld [vmem:[%s1 + $0x110] sm:$0xf]
  %v132 = vld [vmem:[%s1 + $0x114] sm:$0xf]
  %v133 = vld [vmem:[%s1 + $0x118] sm:$0xf]
  %v134 = vld [vmem:[%s1 + $0x11c] sm:$0xf]
  %v135 = vld [vmem:[%s2] sm:$0x1]
  %v137 = vperm.slane %v135, 0
  %v187 = vunpack.c.l.b16 %v15
  %v188 = vunpack.c.h.b16 %v15
  %v189 = vunpack.c.l.b16 %v16
  %v190 = vunpack.c.h.b16 %v16
  %v191 = vunpack.c.l.b16 %v17
  %v192 = vunpack.c.l.b16 %v18
  %v193 = vunpack.c.h.b16 %v18
  %v194 = vunpack.c.l.b16 %v19
  %v195 = vunpack.c.h.b16 %v19
  %v196 = vunpack.c.l.b16 %v20
  %v197 = vunpack.c.l.b16 %v21
  %v198 = vunpack.c.h.b16 %v21
  %v199 = vunpack.c.l.b16 %v22
  %v200 = vunpack.c.h.b16 %v22
  %v201 = vunpack.c.l.b16 %v23
  %v202 = vunpack.c.l.b16 %v24
  %v203 = vunpack.c.h.b16 %v24
  %v204 = vunpack.c.l.b16 %v25
  %v205 = vunpack.c.h.b16 %v25
  %v206 = vunpack.c.l.b16 %v26
  %v207 = vunpack.c.l.b16 %v27
  %v208 = vunpack.c.h.b16 %v27
  %v209 = vunpack.c.l.b16 %v28
  %v210 = vunpack.c.h.b16 %v28
  %v211 = vunpack.c.l.b16 %v29
  %v212 = vunpack.c.l.b16 %v30
  %v213 = vunpack.c.h.b16 %v30
  %v214 = vunpack.c.l.b16 %v31
  %v215 = vunpack.c.h.b16 %v31
  %v216 = vunpack.c.l.b16 %v32
  %v217 = vunpack.c.l.b16 %v33
  %v218 = vunpack.c.h.b16 %v33
  %v219 = vunpack.c.l.b16 %v34
  %v220 = vunpack.c.h.b16 %v34
  %v221 = vunpack.c.l.b16 %v35
  %v222 = vunpack.c.l.b16 %v36
  %v223 = vunpack.c.h.b16 %v36
  %v224 = vunpack.c.l.b16 %v37
  %v225 = vunpack.c.h.b16 %v37
  %v226 = vunpack.c.l.b16 %v38
  %v227 = vunpack.c.l.b16 %v39
  %v228 = vunpack.c.h.b16 %v39
  %v229 = vunpack.c.l.b16 %v40
  %v230 = vunpack.c.h.b16 %v40
  %v231 = vunpack.c.l.b16 %v41
  %v232 = vunpack.c.l.b16 %v42
  %v233 = vunpack.c.h.b16 %v42
  %v234 = vunpack.c.l.b16 %v43
  %v235 = vunpack.c.h.b16 %v43
  %v236 = vunpack.c.l.b16 %v44
  %v237 = vunpack.c.l.b16 %v45
  %v238 = vunpack.c.h.b16 %v45
  %v239 = vunpack.c.l.b16 %v46
  %v240 = vunpack.c.h.b16 %v46
  %v241 = vunpack.c.l.b16 %v47
  %v242 = vunpack.c.l.b16 %v48
  %v243 = vunpack.c.h.b16 %v48
  %v244 = vunpack.c.l.b16 %v49
  %v245 = vunpack.c.h.b16 %v49
  %v246 = vunpack.c.l.b16 %v50
  %v247 = vunpack.c.l.b16 %v51
  %v248 = vunpack.c.h.b16 %v51
  %v249 = vunpack.c.l.b16 %v52
  %v250 = vunpack.c.h.b16 %v52
  %v251 = vunpack.c.l.b16 %v53
  %v252 = vunpack.c.l.b16 %v54
  %v253 = vunpack.c.h.b16 %v54
  %v254 = vunpack.c.l.b16 %v55
  %v255 = vunpack.c.h.b16 %v55
  %v256 = vunpack.c.l.b16 %v56
  %v257 = vunpack.c.l.b16 %v57
  %v258 = vunpack.c.h.b16 %v57
  %v259 = vunpack.c.l.b16 %v58
  %v260 = vunpack.c.h.b16 %v58
  %v261 = vunpack.c.l.b16 %v59
  %v262 = vunpack.c.l.b16 %v60
  %v263 = vunpack.c.h.b16 %v60
  %v264 = vunpack.c.l.b16 %v61
  %v265 = vunpack.c.h.b16 %v61
  %v266 = vunpack.c.l.b16 %v62
  %v267 = vpack.c.b16 %v192, %v187
  %v268 = vpack.c.b16 %v193, %v188
  %v269 = vpack.c.b16 %v194, %v189
  %v270 = vpack.c.b16 %v195, %v190
  %v271 = vpack.c.b16 %v196, %v191
  %v272 = vpack.c.b16 %v202, %v197
  %v273 = vpack.c.b16 %v203, %v198
  %v274 = vpack.c.b16 %v204, %v199
  %v275 = vpack.c.b16 %v205, %v200
  %v276 = vpack.c.b16 %v206, %v201
  %v277 = vpack.c.b16 %v212, %v207
  %v278 = vpack.c.b16 %v213, %v208
  %v279 = vpack.c.b16 %v214, %v209
  %v280 = vpack.c.b16 %v215, %v210
  %v281 = vpack.c.b16 %v216, %v211
  %v282 = vpack.c.b16 %v222, %v217
  %v283 = vpack.c.b16 %v223, %v218
  %v284 = vpack.c.b16 %v224, %v219
  %v285 = vpack.c.b16 %v225, %v220
  %v286 = vpack.c.b16 %v226, %v221
  %v287 = vpack.c.b16 %v232, %v227
  %v288 = vpack.c.b16 %v233, %v228
  %v289 = vpack.c.b16 %v234, %v229
  %v290 = vpack.c.b16 %v235, %v230
  %v291 = vpack.c.b16 %v236, %v231
  %v292 = vpack.c.b16 %v242, %v237
  %v293 = vpack.c.b16 %v243, %v238
  %v294 = vpack.c.b16 %v244, %v239
  %v295 = vpack.c.b16 %v245, %v240
  %v296 = vpack.c.b16 %v246, %v241
  %v297 = vpack.c.b16 %v252, %v247
  %v298 = vpack.c.b16 %v253, %v248
  %v299 = vpack.c.b16 %v254, %v249
  %v300 = vpack.c.b16 %v255, %v250
  %v301 = vpack.c.b16 %v256, %v251
  %v302 = vpack.c.b16 %v262, %v257
  %v303 = vpack.c.b16 %v263, %v258
  %v304 = vpack.c.b16 %v264, %v259
  %v305 = vpack.c.b16 %v265, %v260
  %v306 = vpack.c.b16 %v266, %v261
  %v411 = vunpack.c.l.b16 %v63
  %v412 = vunpack.c.l.b16 %v64
  %v413 = vunpack.c.l.b16 %v65
  %v414 = vunpack.c.l.b16 %v66
  %v415 = vunpack.c.l.b16 %v67
  %v416 = vunpack.c.l.b16 %v68
  %v417 = vunpack.c.l.b16 %v69
  %v418 = vunpack.c.l.b16 %v70
  %v419 = vunpack.c.l.b16 %v71
  %v420 = vunpack.c.l.b16 %v72
  %v421 = vunpack.c.l.b16 %v73
  %v422 = vunpack.c.l.b16 %v74
  %v423 = vunpack.c.l.b16 %v75
  %v424 = vunpack.c.l.b16 %v76
  %v425 = vunpack.c.l.b16 %v77
  %v426 = vunpack.c.l.b16 %v78
  %v427 = vunpack.c.l.b16 %v79
  %v428 = vunpack.c.l.b16 %v80
  %v429 = vunpack.c.l.b16 %v81
  %v430 = vunpack.c.l.b16 %v82
  %v431 = vunpack.c.l.b16 %v83
  %v432 = vunpack.c.l.b16 %v84
  %v433 = vunpack.c.l.b16 %v85
  %v434 = vunpack.c.l.b16 %v86
  %v435 = vunpack.c.l.b16 %v87
  %v436 = vunpack.c.l.b16 %v88
  %v437 = vunpack.c.l.b16 %v89
  %v438 = vunpack.c.l.b16 %v90
  %v439 = vunpack.c.l.b16 %v91
  %v440 = vunpack.c.l.b16 %v92
  %v441 = vunpack.c.l.b16 %v93
  %v442 = vunpack.c.l.b16 %v94
  %v443 = vunpack.c.l.b16 %v95
  %v444 = vunpack.c.l.b16 %v96
  %v445 = vunpack.c.l.b16 %v97
  %v446 = vunpack.c.l.b16 %v98
  %v447 = vunpack.c.l.b16 %v99
  %v448 = vunpack.c.l.b16 %v100
  %v449 = vunpack.c.l.b16 %v101
  %v450 = vunpack.c.l.b16 %v102
  %v451 = vunpack.c.l.b16 %v103
  %v452 = vunpack.c.l.b16 %v104
  %v453 = vunpack.c.l.b16 %v105
  %v454 = vunpack.c.l.b16 %v106
  %v455 = vunpack.c.l.b16 %v107
  %v456 = vunpack.c.l.b16 %v108
  %v457 = vunpack.c.l.b16 %v109
  %v458 = vunpack.c.l.b16 %v110
  %v459 = vunpack.c.l.b16 %v111
  %v460 = vunpack.c.l.b16 %v112
  %v461 = vunpack.c.l.b16 %v113
  %v462 = vunpack.c.l.b16 %v114
  %v463 = vunpack.c.l.b16 %v115
  %v464 = vunpack.c.l.b16 %v116
  %v465 = vunpack.c.l.b16 %v117
  %v466 = vunpack.c.l.b16 %v118
  %v467 = vunpack.c.l.b16 %v119
  %v468 = vunpack.c.l.b16 %v120
  %v469 = vunpack.c.l.b16 %v121
  %v470 = vunpack.c.l.b16 %v122
  %v471 = vunpack.c.l.b16 %v123
  %v472 = vunpack.c.l.b16 %v124
  %v473 = vunpack.c.l.b16 %v125
  %v474 = vunpack.c.l.b16 %v126
  %v475 = vunpack.c.l.b16 %v127
  %v476 = vunpack.c.l.b16 %v128
  %v477 = vunpack.c.l.b16 %v129
  %v478 = vunpack.c.l.b16 %v130
  %v479 = vunpack.c.l.b16 %v131
  %v480 = vunpack.c.l.b16 %v132
  %v481 = vunpack.c.l.b16 %v133
  %v482 = vunpack.c.l.b16 %v134
  %v483 = vpack.c.b16 %v412, %v411
  %v484 = vpack.c.b16 %v414, %v413
  %v485 = vpack.c.b16 %v416, %v415
  %v486 = vpack.c.b16 %v418, %v417
  %v487 = vpack.c.b16 %v420, %v419
  %v488 = vpack.c.b16 %v422, %v421
  %v489 = vpack.c.b16 %v424, %v423
  %v490 = vpack.c.b16 %v426, %v425
  %v491 = vpack.c.b16 %v428, %v427
  %v492 = vpack.c.b16 %v430, %v429
  %v493 = vpack.c.b16 %v432, %v431
  %v494 = vpack.c.b16 %v434, %v433
  %v495 = vpack.c.b16 %v436, %v435
  %v496 = vpack.c.b16 %v438, %v437
  %v497 = vpack.c.b16 %v440, %v439
  %v498 = vpack.c.b16 %v442, %v441
  %v499 = vpack.c.b16 %v444, %v443
  %v500 = vpack.c.b16 %v446, %v445
  %v501 = vpack.c.b16 %v448, %v447
  %v502 = vpack.c.b16 %v450, %v449
  %v503 = vpack.c.b16 %v452, %v451
  %v504 = vpack.c.b16 %v454, %v453
  %v505 = vpack.c.b16 %v456, %v455
  %v506 = vpack.c.b16 %v458, %v457
  %v507 = vpack.c.b16 %v460, %v459
  %v508 = vpack.c.b16 %v462, %v461
  %v509 = vpack.c.b16 %v464, %v463
  %v510 = vpack.c.b16 %v466, %v465
  %v511 = vpack.c.b16 %v468, %v467
  %v512 = vpack.c.b16 %v470, %v469
  %v513 = vpack.c.b16 %v472, %v471
  %v514 = vpack.c.b16 %v474, %v473
  %v515 = vpack.c.b16 %v476, %v475
  %v516 = vpack.c.b16 %v478, %v477
  %v517 = vpack.c.b16 %v480, %v479
  %v518 = vpack.c.b16 %v482, %v481
  %vm555 = vcmask 523264
  %v557 = vsel %vm555, %v271, 0
  %v560 = vsel %vm555, %v276, 0
  %v563 = vsel %vm555, %v281, 0
  %v566 = vsel %vm555, %v286, 0
  %v569 = vsel %vm555, %v291, 0
  %v572 = vsel %vm555, %v296, 0
  %v575 = vsel %vm555, %v301, 0
  %v578 = vsel %vm555, %v306, 0
  %580 = vmatpush.bf16.msra.mxu0 %v490
  %581 = vmatpush.bf16.msra.mxu0 %v489
  %582 = vmatpush.bf16.msra.mxu0 %v488
  %583 = vmatpush.bf16.msra.mxu0 %v487
  %584 = vmatpush.bf16.msra.mxu0 %v486
  %585 = vmatpush.bf16.msra.mxu0 %v485
  %586 = vmatpush.bf16.msra.mxu0 %v484
  %587 = vmatpush.bf16.msra.mxu0 %v483
  %588 = vmatmul.bf16.gmra.mxu0 %v267
  %v589 = vpop.f32.mrf.mxu0
  %v590 = vadd.f32 %v137, %v589
  %v591 = vpop.f32.mrf.mxu0
  %v592 = vadd.f32 %v137, %v591
  %593 = vmatmul.bf16.gmra.mxu0 %v272
  %v594 = vpop.f32.mrf.mxu0
  %v595 = vadd.f32 %v137, %v594
  %v596 = vpop.f32.mrf.mxu0
  %v597 = vadd.f32 %v137, %v596
  %598 = vmatmul.bf16.gmra.mxu0 %v277
  %v599 = vpop.f32.mrf.mxu0
  %v600 = vadd.f32 %v137, %v599
  %v601 = vpop.f32.mrf.mxu0
  %v602 = vadd.f32 %v137, %v601
  %603 = vmatmul.bf16.gmra.mxu0 %v282
  %v604 = vpop.f32.mrf.mxu0
  %v605 = vadd.f32 %v137, %v604
  %v606 = vpop.f32.mrf.mxu0
  %v607 = vadd.f32 %v137, %v606
  %608 = vmatmul.bf16.gmra.mxu0 %v287
  %v609 = vpop.f32.mrf.mxu0
  %v610 = vadd.f32 %v137, %v609
  %v611 = vpop.f32.mrf.mxu0
  %v612 = vadd.f32 %v137, %v611
  %613 = vmatmul.bf16.gmra.mxu0 %v292
  %v614 = vpop.f32.mrf.mxu0
  %v615 = vadd.f32 %v137, %v614
  %v616 = vpop.f32.mrf.mxu0
  %v617 = vadd.f32 %v137, %v616
  %618 = vmatmul.bf16.gmra.mxu0 %v297
  %v619 = vpop.f32.mrf.mxu0
  %v620 = vadd.f32 %v137, %v619
  %v621 = vpop.f32.mrf.mxu0
  %v622 = vadd.f32 %v137, %v621
  %623 = vmatmul.bf16.gmra.mxu0 %v302
  %v624 = vpop.f32.mrf.mxu0
  %v625 = vadd.f32 %v137, %v624
  %v626 = vpop.f32.mrf.mxu0
  %v627 = vadd.f32 %v137, %v626
  %628 = vdwg.mxu0
  %629 = vmatpush.bf16.msra.mxu0 %v498
  %630 = vmatpush.bf16.msra.mxu0 %v497
  %631 = vmatpush.bf16.msra.mxu0 %v496
  %632 = vmatpush.bf16.msra.mxu0 %v495
  %633 = vmatpush.bf16.msra.mxu0 %v494
  %634 = vmatpush.bf16.msra.mxu0 %v493
  %635 = vmatpush.bf16.msra.mxu0 %v492
  %636 = vmatpush.bf16.msra.mxu0 %v491
  %637 = vmatmul.bf16.gmra.mxu0 %v268
  %v638 = vpop.f32.mrf.mxu0
  %v639 = vadd.f32 %v590, %v638
  %v640 = vpop.f32.mrf.mxu0
  %v641 = vadd.f32 %v592, %v640
  %642 = vmatmul.bf16.gmra.mxu0 %v273
  %v643 = vpop.f32.mrf.mxu0
  %v644 = vadd.f32 %v595, %v643
  %v645 = vpop.f32.mrf.mxu0
  %v646 = vadd.f32 %v597, %v645
  %647 = vmatmul.bf16.gmra.mxu0 %v278
  %v648 = vpop.f32.mrf.mxu0
  %v649 = vadd.f32 %v600, %v648
  %v650 = vpop.f32.mrf.mxu0
  %v651 = vadd.f32 %v602, %v650
  %652 = vmatmul.bf16.gmra.mxu0 %v283
  %v653 = vpop.f32.mrf.mxu0
  %v654 = vadd.f32 %v605, %v653
  %v655 = vpop.f32.mrf.mxu0
  %v656 = vadd.f32 %v607, %v655
  %657 = vmatmul.bf16.gmra.mxu0 %v288
  %v658 = vpop.f32.mrf.mxu0
  %v659 = vadd.f32 %v610, %v658
  %v660 = vpop.f32.mrf.mxu0
  %v661 = vadd.f32 %v612, %v660
  %662 = vmatmul.bf16.gmra.mxu0 %v293
  %v663 = vpop.f32.mrf.mxu0
  %v664 = vadd.f32 %v615, %v663
  %v665 = vpop.f32.mrf.mxu0
  %v666 = vadd.f32 %v617, %v665
  %667 = vmatmul.bf16.gmra.mxu0 %v298
  %v668 = vpop.f32.mrf.mxu0
  %v669 = vadd.f32 %v620, %v668
  %v670 = vpop.f32.mrf.mxu0
  %v671 = vadd.f32 %v622, %v670
  %672 = vmatmul.bf16.gmra.mxu0 %v303
  %v673 = vpop.f32.mrf.mxu0
  %v674 = vadd.f32 %v625, %v673
  %v675 = vpop.f32.mrf.mxu0
  %v676 = vadd.f32 %v627, %v675
  %677 = vdwg.mxu0
  %678 = vmatpush.bf16.msra.mxu0 %v506
  %679 = vmatpush.bf16.msra.mxu0 %v505
  %680 = vmatpush.bf16.msra.mxu0 %v504
  %681 = vmatpush.bf16.msra.mxu0 %v503
  %682 = vmatpush.bf16.msra.mxu0 %v502
  %683 = vmatpush.bf16.msra.mxu0 %v501
  %684 = vmatpush.bf16.msra.mxu0 %v500
  %685 = vmatpush.bf16.msra.mxu0 %v499
  %686 = vmatmul.bf16.gmra.mxu0 %v269
  %v687 = vpop.f32.mrf.mxu0
  %v688 = vadd.f32 %v639, %v687
  %v689 = vpop.f32.mrf.mxu0
  %v690 = vadd.f32 %v641, %v689
  %691 = vmatmul.bf16.gmra.mxu0 %v274
  %v692 = vpop.f32.mrf.mxu0
  %v693 = vadd.f32 %v644, %v692
  %v694 = vpop.f32.mrf.mxu0
  %v695 = vadd.f32 %v646, %v694
  %696 = vmatmul.bf16.gmra.mxu0 %v279
  %v697 = vpop.f32.mrf.mxu0
  %v698 = vadd.f32 %v649, %v697
  %v699 = vpop.f32.mrf.mxu0
  %v700 = vadd.f32 %v651, %v699
  %701 = vmatmul.bf16.gmra.mxu0 %v284
  %v702 = vpop.f32.mrf.mxu0
  %v703 = vadd.f32 %v654, %v702
  %v704 = vpop.f32.mrf.mxu0
  %v705 = vadd.f32 %v656, %v704
  %706 = vmatmul.bf16.gmra.mxu0 %v289
  %v707 = vpop.f32.mrf.mxu0
  %v708 = vadd.f32 %v659, %v707
  %v709 = vpop.f32.mrf.mxu0
  %v710 = vadd.f32 %v661, %v709
  %711 = vmatmul.bf16.gmra.mxu0 %v294
  %v712 = vpop.f32.mrf.mxu0
  %v713 = vadd.f32 %v664, %v712
  %v714 = vpop.f32.mrf.mxu0
  %v715 = vadd.f32 %v666, %v714
  %716 = vmatmul.bf16.gmra.mxu0 %v299
  %v717 = vpop.f32.mrf.mxu0
  %v718 = vadd.f32 %v669, %v717
  %v719 = vpop.f32.mrf.mxu0
  %v720 = vadd.f32 %v671, %v719
  %721 = vmatmul.bf16.gmra.mxu0 %v304
  %v722 = vpop.f32.mrf.mxu0
  %v723 = vadd.f32 %v674, %v722
  %v724 = vpop.f32.mrf.mxu0
  %v725 = vadd.f32 %v676, %v724
  %726 = vdwg.mxu0
  %727 = vmatpush.bf16.msra.mxu0 %v514
  %728 = vmatpush.bf16.msra.mxu0 %v513
  %729 = vmatpush.bf16.msra.mxu0 %v512
  %730 = vmatpush.bf16.msra.mxu0 %v511
  %731 = vmatpush.bf16.msra.mxu0 %v510
  %732 = vmatpush.bf16.msra.mxu0 %v509
  %733 = vmatpush.bf16.msra.mxu0 %v508
  %734 = vmatpush.bf16.msra.mxu0 %v507
  %735 = vmatmul.bf16.gmra.mxu0 %v270
  %v736 = vpop.f32.mrf.mxu0
  %v737 = vadd.f32 %v688, %v736
  %v738 = vpop.f32.mrf.mxu0
  %v739 = vadd.f32 %v690, %v738
  %740 = vmatmul.bf16.gmra.mxu0 %v275
  %v741 = vpop.f32.mrf.mxu0
  %v742 = vadd.f32 %v693, %v741
  %v743 = vpop.f32.mrf.mxu0
  %v744 = vadd.f32 %v695, %v743
  %745 = vmatmul.bf16.gmra.mxu0 %v280
  %v746 = vpop.f32.mrf.mxu0
  %v747 = vadd.f32 %v698, %v746
  %v748 = vpop.f32.mrf.mxu0
  %v749 = vadd.f32 %v700, %v748
  %750 = vmatmul.bf16.gmra.mxu0 %v285
  %v751 = vpop.f32.mrf.mxu0
  %v752 = vadd.f32 %v703, %v751
  %v753 = vpop.f32.mrf.mxu0
  %v754 = vadd.f32 %v705, %v753
  %755 = vmatmul.bf16.gmra.mxu0 %v290
  %v756 = vpop.f32.mrf.mxu0
  %v757 = vadd.f32 %v708, %v756
  %v758 = vpop.f32.mrf.mxu0
  %v759 = vadd.f32 %v710, %v758
  %760 = vmatmul.bf16.gmra.mxu0 %v295
  %v761 = vpop.f32.mrf.mxu0
  %v762 = vadd.f32 %v713, %v761
  %v763 = vpop.f32.mrf.mxu0
  %v764 = vadd.f32 %v715, %v763
  %765 = vmatmul.bf16.gmra.mxu0 %v300
  %v766 = vpop.f32.mrf.mxu0
  %v767 = vadd.f32 %v718, %v766
  %v768 = vpop.f32.mrf.mxu0
  %v769 = vadd.f32 %v720, %v768
  %770 = vmatmul.bf16.gmra.mxu0 %v305
  %v771 = vpop.f32.mrf.mxu0
  %v772 = vadd.f32 %v723, %v771
  %v773 = vpop.f32.mrf.mxu0
  %v774 = vadd.f32 %v725, %v773
  %775 = vdwg.mxu0
  %776 = vmatpush.bf16.msra.mxu0 0
  %777 = vmatpush.bf16.msra.mxu0 0
  %778 = vmatpush.bf16.msra.mxu0 0
  %779 = vmatpush.bf16.msra.mxu0 0
  %780 = vmatpush.bf16.msra.mxu0 %v518
  %781 = vmatpush.bf16.msra.mxu0 %v517
  %782 = vmatpush.bf16.msra.mxu0 %v516
  %783 = vmatpush.bf16.msra.mxu0 %v515
  %784 = vmatmul.bf16.gmra.mxu0 %v557
  %v785 = vpop.f32.mrf.mxu0
  %v786 = vadd.f32 %v737, %v785
  %v787 = vpop.f32.mrf.mxu0
  %v788 = vadd.f32 %v739, %v787
  %789 = vmatmul.bf16.gmra.mxu0 %v560
  %v790 = vpop.f32.mrf.mxu0
  %v791 = vadd.f32 %v742, %v790
  %v792 = vpop.f32.mrf.mxu0
  %v793 = vadd.f32 %v744, %v792
  %794 = vmatmul.bf16.gmra.mxu0 %v563
  %v795 = vpop.f32.mrf.mxu0
  %v796 = vadd.f32 %v747, %v795
  %v797 = vpop.f32.mrf.mxu0
  %v798 = vadd.f32 %v749, %v797
  %799 = vmatmul.bf16.gmra.mxu0 %v566
  %v800 = vpop.f32.mrf.mxu0
  %v801 = vadd.f32 %v752, %v800
  %v802 = vpop.f32.mrf.mxu0
  %v803 = vadd.f32 %v754, %v802
  %804 = vmatmul.bf16.gmra.mxu0 %v569
  %v805 = vpop.f32.mrf.mxu0
  %v806 = vadd.f32 %v757, %v805
  %v807 = vpop.f32.mrf.mxu0
  %v808 = vadd.f32 %v759, %v807
  %809 = vmatmul.bf16.gmra.mxu0 %v572
  %v810 = vpop.f32.mrf.mxu0
  %v811 = vadd.f32 %v762, %v810
  %v812 = vpop.f32.mrf.mxu0
  %v813 = vadd.f32 %v764, %v812
  %814 = vmatmul.bf16.gmra.mxu0 %v575
  %v815 = vpop.f32.mrf.mxu0
  %v816 = vadd.f32 %v767, %v815
  %v817 = vpop.f32.mrf.mxu0
  %v818 = vadd.f32 %v769, %v817
  %819 = vmatmul.bf16.gmra.mxu0 %v578
  %v820 = vpop.f32.mrf.mxu0
  %v821 = vadd.f32 %v772, %v820
  %v822 = vpop.f32.mrf.mxu0
  %v823 = vadd.f32 %v774, %v822
  %824 = vdwg.mxu0
  %825 = vst.msk [vmem:[%s3] sm:$0xff] %vm555, %v786
  %826 = vst.msk [vmem:[%s3 + $0x8] sm:$0xff] %vm555, %v788
  %827 = vst.msk [vmem:[%s3 + $0x10] sm:$0xff] %vm555, %v791
  %828 = vst.msk [vmem:[%s3 + $0x18] sm:$0xff] %vm555, %v793
  %829 = vst.msk [vmem:[%s3 + $0x20] sm:$0xff] %vm555, %v796
  %830 = vst.msk [vmem:[%s3 + $0x28] sm:$0xff] %vm555, %v798
  %831 = vst.msk [vmem:[%s3 + $0x30] sm:$0xff] %vm555, %v801
  %832 = vst.msk [vmem:[%s3 + $0x38] sm:$0xff] %vm555, %v803
  %833 = vst.msk [vmem:[%s3 + $0x40] sm:$0xff] %vm555, %v806
  %834 = vst.msk [vmem:[%s3 + $0x48] sm:$0xff] %vm555, %v808
  %835 = vst.msk [vmem:[%s3 + $0x50] sm:$0xff] %vm555, %v811
  %836 = vst.msk [vmem:[%s3 + $0x58] sm:$0xff] %vm555, %v813
  %837 = vst.msk [vmem:[%s3 + $0x60] sm:$0xff] %vm555, %v816
  %838 = vst.msk [vmem:[%s3 + $0x68] sm:$0xff] %vm555, %v818
  %839 = vst.msk [vmem:[%s3 + $0x70] sm:$0xff] %vm555, %v821
  %840 = vst.msk [vmem:[%s3 + $0x78] sm:$0xff] %vm555, %v823
  // Predicated region
  $region14: #{cee_forward.2} parent=0 // pred_check
    _
  $region15: #{cee_forward.2} parent=0 // pred_check_branch
    %842 = sbr.rel (0) target = $region17
  $region16: #{cee_forward.2} parent=0 // pred_region
    _
  $region17: #{cee_forward.2} parent=0 // pred_fallthru
    _
  // Predicated region
  $region18: #{cee_forward.2} parent=0 // pred_check
    _
  $region19: #{cee_forward.2} parent=0 // pred_check_branch
    %844 = sbr.rel (0) target = $region21
  $region20: #{cee_forward.2} parent=0 // pred_region
    _
  $region21: #{cee_forward.2} parent=0 // pred_fallthru
    _

// kernel: cee_forward.3
$region0: #{cee_forward.3}
  #allocation0 [shape = 'u32[]', space=smem, size = 0x4, offset = 0x4, fixed_abs, tag = 'smem constant byte address 0x4 - core index']
  #allocation1 [shape = 'u32[72,128]{1,0:T(1,128)}', space=vmem, size = 0x9000, scoped, tag = 'internal scratch']
  %s0 = inlined_call_operand.vmem [shape: f32[2,12,12,64], index: 0, kind: input, shape index: {}]
  %s1 = inlined_call_operand.vmem [shape: f32[9,64], index: 1, kind: input, shape index: {}]
  %s2 = inlined_call_operand.vmem [shape: f32[1,64], index: 2, kind: input, shape index: {}]
  %s3 = inlined_call_operand.vmem [shape: f32[1,64], index: 3, kind: input, shape index: {}]
  %s4 = inlined_call_operand.vmem [shape: f32[1,64], index: 4, kind: input, shape index: {}]
  %s5 = inlined_call_operand.vmem [shape: bf16[9,64,64], index: 5, kind: input, shape index: {}]
  %s6 = inlined_call_operand.vmem [shape: f32[1,64], index: 6, kind: input, shape index: {}]
  %s7 = inlined_call_operand.vmem [shape: f32[1,64], index: 7, kind: input, shape index: {}]
  %s8 = inlined_call_operand.vmem [shape: bf16[64,64], index: 8, kind: input, shape index: {}]
  %s9 = inlined_call_operand.vmem [shape: bf16[64,64], index: 9, kind: input, shape index: {}]
  %s10 = inlined_call_operand.vmem [shape: f32[1,64], index: 10, kind: input, shape index: {}]
  %s11 = inlined_call_operand.vmem [shape: f32[1,64], index: 11, kind: input, shape index: {}]
  %s12 = inlined_call_operand.hbm [shape: f32[2,8,8,64], index: 12, kind: output, shape index: {}]
  %s13 = sld [smem:[#allocation0]]
  $region81: #{cee_forward.3} parent=0
    _
  %s15 = ssub.s32 1, %s13
  %s16 = scalar_select 0, %s15, %s13
  $region1: #{cee_forward.3} parent=0
    #allocation2 [shape = 'u8[65536]{0}', space=vmem, size = 0x10000, scoped, tag = 'output window, operand 0']
    #allocation3 [shape = 's32[2]{0}', space=sflag, size = 0x8, scoped, tag = 'scoped memory for cee_forward.3']
    %17 = vsyncpa [#allocation3], 0
    %s18 = scalar_lea.sflag [#allocation3], 1
    %19 = vsyncpa %s18, 0
    loop: start=0, step=1, limit=4
    $region2: #{cee_forward.3} parent=1 // loop_pre_header
      _
    $region3: #{cee_forward.3} parent=1 // loop_header
      %s21 = sphi 0, %s25
      %p22 = scmp.ge.s32.totalorder %s21, 4
      %s31 = sphi 0, %s33
      %s34 = sphi 0, %s31
      %s35 = sphi 0, %s34
      %s51 = sphi 0, %s35
      %s55 = sphi 0, %s55
      %s57 = sphi 0, %s55
      %s58 = sphi 0, %s57
      %s72 = sphi 0, %s58
      %s76 = sphi 0, %s76
      %s78 = sphi 0, %s76
      %s79 = sphi 0, %s78
      %s93 = sphi 0, %s79
      %s97 = sphi 0, %s97
      %s99 = sphi 0, %s97
      %s100 = sphi 0, %s99
      %s114 = sphi 0, %s100
      %s118 = sphi 0, %s118
      %s120 = sphi 0, %s118
      %s121 = sphi 0, %s120
      %s135 = sphi 0, %s121
      %s139 = sphi 0, %s139
      %s141 = sphi 0, %s139
      %s142 = sphi 0, %s141
      %s156 = sphi 0, %s142
      %s160 = sphi 0, %s160
      %s162 = sphi 0, %s160
      %s163 = sphi 0, %s162
      %s177 = sphi 0, %s163
      %s181 = sphi 0, %s181
      %s183 = sphi 0, %s181
      %s184 = sphi 0, %s183
      %s198 = sphi 0, %s184
      %s202 = sphi 0, %s202
      %s204 = sphi 0, %s202
      %s205 = sphi 0, %s204
      %s219 = sphi 0, %s205
      %s223 = sphi 0, %s223
      %s225 = sphi 0, %s223
      %s226 = sphi 0, %s225
      %s240 = sphi 0, %s226
      %s244 = sphi 0, %s244
      %s246 = sphi 0, %s244
      %s247 = sphi 0, %s246
      %s261 = sphi 0, %s247
      %s265 = sphi 0, %s265
      %s267 = sphi 0, %s265
      %s268 = sphi 0, %s267
      %s282 = sphi 0, %s268
      %s288 = sphi 0, %s290
      %s291 = sphi 0, %s288
      %s292 = sphi 0, %s291
      %s308 = sphi 0, %s292
    $region4: #{cee_forward.3} parent=1 // loop_header_branch
      %24 = sbr.rel (%p22) target = $region8
    $region5: #{cee_forward.3} parent=1 // loop_body
      %s26 = ssub.s32 %s21, 1
      %s27 = ssub.s32 %s21, 2
      %s28 = sadd.s32 %s21, 1
      %s29 = ssub.s32 %s21, %s28
      %p30 = scmp.eq.s32.totalorder %s29, 0
      %s32 = sadd.s32 %s31, 1
      %s33 = scalar_select %p30, %s31, %s32
      %p36 = pneg %p30
      %p37 = scmp.eq.s32.totalorder %s21, 1
      %p38 = por %p36, %p37
      %p39 = scmp.ne.s32.totalorder %s31, %s34
      %p40 = scmp.eq.s32.totalorder %s21, 0
      %p41 = por %p39, %p40
      %p42 = scmp.ne.s32.totalorder %s31, %s34
      %p43 = scmp.eq.s32.totalorder %s26, 1
      %p44 = por %p42, %p43
      %p45 = scmp.ne.s32.totalorder %s34, %s35
      %p46 = scmp.eq.s32.totalorder %s26, 0
      %p47 = por %p45, %p46
      %p48 = scmp.ne.s32.totalorder %s34, %s35
      %p49 = scmp.eq.s32.totalorder %s27, 1
      %p50 = por %p48, %p49
      %p52 = scmp.ne.s32.totalorder %s35, %s51
      %p53 = scmp.eq.s32.totalorder %s27, 0
      %p54 = por %p52, %p53
      %s56 = sadd.s32 %s55, 1
      %p59 = scmp.eq.s32.totalorder %s21, 1
      %p60 = scmp.ne.s32.totalorder %s55, %s57
      %p61 = scmp.eq.s32.totalorder %s21, 0
      %p62 = por %p60, %p61
      %p63 = scmp.ne.s32.totalorder %s55, %s57
      %p64 = scmp.eq.s32.totalorder %s26, 1
      %p65 = por %p63, %p64
      %p66 = scmp.ne.s32.totalorder %s57, %s58
      %p67 = scmp.eq.s32.totalorder %s26, 0
      %p68 = por %p66, %p67
      %p69 = scmp.ne.s32.totalorder %s57, %s58
      %p70 = scmp.eq.s32.totalorder %s27, 1
      %p71 = por %p69, %p70
      %p73 = scmp.ne.s32.totalorder %s58, %s72
      %p74 = scmp.eq.s32.totalorder %s27, 0
      %p75 = por %p73, %p74
      %s77 = sadd.s32 %s76, 1
      %p80 = scmp.eq.s32.totalorder %s21, 1
      %p81 = scmp.ne.s32.totalorder %s76, %s78
      %p82 = scmp.eq.s32.totalorder %s21, 0
      %p83 = por %p81, %p82
      %p84 = scmp.ne.s32.totalorder %s76, %s78
      %p85 = scmp.eq.s32.totalorder %s26, 1
      %p86 = por %p84, %p85
      %p87 = scmp.ne.s32.totalorder %s78, %s79
      %p88 = scmp.eq.s32.totalorder %s26, 0
      %p89 = por %p87, %p88
      %p90 = scmp.ne.s32.totalorder %s78, %s79
      %p91 = scmp.eq.s32.totalorder %s27, 1
      %p92 = por %p90, %p91
      %p94 = scmp.ne.s32.totalorder %s79, %s93
      %p95 = scmp.eq.s32.totalorder %s27, 0
      %p96 = por %p94, %p95
      %s98 = sadd.s32 %s97, 1
      %p101 = scmp.eq.s32.totalorder %s21, 1
      %p102 = scmp.ne.s32.totalorder %s97, %s99
      %p103 = scmp.eq.s32.totalorder %s21, 0
      %p104 = por %p102, %p103
      %p105 = scmp.ne.s32.totalorder %s97, %s99
      %p106 = scmp.eq.s32.totalorder %s26, 1
      %p107 = por %p105, %p106
      %p108 = scmp.ne.s32.totalorder %s99, %s100
      %p109 = scmp.eq.s32.totalorder %s26, 0
      %p110 = por %p108, %p109
      %p111 = scmp.ne.s32.totalorder %s99, %s100
      %p112 = scmp.eq.s32.totalorder %s27, 1
      %p113 = por %p111, %p112
      %p115 = scmp.ne.s32.totalorder %s100, %s114
      %p116 = scmp.eq.s32.totalorder %s27, 0
      %p117 = por %p115, %p116
      %s119 = sadd.s32 %s118, 1
      %p122 = scmp.eq.s32.totalorder %s21, 1
      %p123 = scmp.ne.s32.totalorder %s118, %s120
      %p124 = scmp.eq.s32.totalorder %s21, 0
      %p125 = por %p123, %p124
      %p126 = scmp.ne.s32.totalorder %s118, %s120
      %p127 = scmp.eq.s32.totalorder %s26, 1
      %p128 = por %p126, %p127
      %p129 = scmp.ne.s32.totalorder %s120, %s121
      %p130 = scmp.eq.s32.totalorder %s26, 0
      %p131 = por %p129, %p130
      %p132 = scmp.ne.s32.totalorder %s120, %s121
      %p133 = scmp.eq.s32.totalorder %s27, 1
      %p134 = por %p132, %p133
      %p136 = scmp.ne.s32.totalorder %s121, %s135
      %p137 = scmp.eq.s32.totalorder %s27, 0
      %p138 = por %p136, %p137
      %s140 = sadd.s32 %s139, 1
      %p143 = scmp.eq.s32.totalorder %s21, 1
      %p144 = scmp.ne.s32.totalorder %s139, %s141
      %p145 = scmp.eq.s32.totalorder %s21, 0
      %p146 = por %p144, %p145
      %p147 = scmp.ne.s32.totalorder %s139, %s141
      %p148 = scmp.eq.s32.totalorder %s26, 1
      %p149 = por %p147, %p148
      %p150 = scmp.ne.s32.totalorder %s141, %s142
      %p151 = scmp.eq.s32.totalorder %s26, 0
      %p152 = por %p150, %p151
      %p153 = scmp.ne.s32.totalorder %s141, %s142
      %p154 = scmp.eq.s32.totalorder %s27, 1
      %p155 = por %p153, %p154
      %p157 = scmp.ne.s32.totalorder %s142, %s156
      %p158 = scmp.eq.s32.totalorder %s27, 0
      %p159 = por %p157, %p158
      %s161 = sadd.s32 %s160, 1
      %p164 = scmp.eq.s32.totalorder %s21, 1
      %p165 = scmp.ne.s32.totalorder %s160, %s162
      %p166 = scmp.eq.s32.totalorder %s21, 0
      %p167 = por %p165, %p166
      %p168 = scmp.ne.s32.totalorder %s160, %s162
      %p169 = scmp.eq.s32.totalorder %s26, 1
      %p170 = por %p168, %p169
      %p171 = scmp.ne.s32.totalorder %s162, %s163
      %p172 = scmp.eq.s32.totalorder %s26, 0
      %p173 = por %p171, %p172
      %p174 = scmp.ne.s32.totalorder %s162, %s163
      %p175 = scmp.eq.s32.totalorder %s27, 1
      %p176 = por %p174, %p175
      %p178 = scmp.ne.s32.totalorder %s163, %s177
      %p179 = scmp.eq.s32.totalorder %s27, 0
      %p180 = por %p178, %p179
      %s182 = sadd.s32 %s181, 1
      %p185 = scmp.eq.s32.totalorder %s21, 1
      %p186 = scmp.ne.s32.totalorder %s181, %s183
      %p187 = scmp.eq.s32.totalorder %s21, 0
      %p188 = por %p186, %p187
      %p189 = scmp.ne.s32.totalorder %s181, %s183
      %p190 = scmp.eq.s32.totalorder %s26, 1
      %p191 = por %p189, %p190
      %p192 = scmp.ne.s32.totalorder %s183, %s184
      %p193 = scmp.eq.s32.totalorder %s26, 0
      %p194 = por %p192, %p193
      %p195 = scmp.ne.s32.totalorder %s183, %s184
      %p196 = scmp.eq.s32.totalorder %s27, 1
      %p197 = por %p195, %p196
      %p199 = scmp.ne.s32.totalorder %s184, %s198
      %p200 = scmp.eq.s32.totalorder %s27, 0
      %p201 = por %p199, %p200
      %s203 = sadd.s32 %s202, 1
      %p206 = scmp.eq.s32.totalorder %s21, 1
      %p207 = scmp.ne.s32.totalorder %s202, %s204
      %p208 = scmp.eq.s32.totalorder %s21, 0
      %p209 = por %p207, %p208
      %p210 = scmp.ne.s32.totalorder %s202, %s204
      %p211 = scmp.eq.s32.totalorder %s26, 1
      %p212 = por %p210, %p211
      %p213 = scmp.ne.s32.totalorder %s204, %s205
      %p214 = scmp.eq.s32.totalorder %s26, 0
      %p215 = por %p213, %p214
      %p216 = scmp.ne.s32.totalorder %s204, %s205
      %p217 = scmp.eq.s32.totalorder %s27, 1
      %p218 = por %p216, %p217
      %p220 = scmp.ne.s32.totalorder %s205, %s219
      %p221 = scmp.eq.s32.totalorder %s27, 0
      %p222 = por %p220, %p221
      %s224 = sadd.s32 %s223, 1
      %p227 = scmp.eq.s32.totalorder %s21, 1
      %p228 = scmp.ne.s32.totalorder %s223, %s225
      %p229 = scmp.eq.s32.totalorder %s21, 0
      %p230 = por %p228, %p229
      %p231 = scmp.ne.s32.totalorder %s223, %s225
      %p232 = scmp.eq.s32.totalorder %s26, 1
      %p233 = por %p231, %p232
      %p234 = scmp.ne.s32.totalorder %s225, %s226
      %p235 = scmp.eq.s32.totalorder %s26, 0
      %p236 = por %p234, %p235
      %p237 = scmp.ne.s32.totalorder %s225, %s226
      %p238 = scmp.eq.s32.totalorder %s27, 1
      %p239 = por %p237, %p238
      %p241 = scmp.ne.s32.totalorder %s226, %s240
      %p242 = scmp.eq.s32.totalorder %s27, 0
      %p243 = por %p241, %p242
      %s245 = sadd.s32 %s244, 1
      %p248 = scmp.eq.s32.totalorder %s21, 1
      %p249 = scmp.ne.s32.totalorder %s244, %s246
      %p250 = scmp.eq.s32.totalorder %s21, 0
      %p251 = por %p249, %p250
      %p252 = scmp.ne.s32.totalorder %s244, %s246
      %p253 = scmp.eq.s32.totalorder %s26, 1
      %p254 = por %p252, %p253
      %p255 = scmp.ne.s32.totalorder %s246, %s247
      %p256 = scmp.eq.s32.totalorder %s26, 0
      %p257 = por %p255, %p256
      %p258 = scmp.ne.s32.totalorder %s246, %s247
      %p259 = scmp.eq.s32.totalorder %s27, 1
      %p260 = por %p258, %p259
      %p262 = scmp.ne.s32.totalorder %s247, %s261
      %p263 = scmp.eq.s32.totalorder %s27, 0
      %p264 = por %p262, %p263
      %s266 = sadd.s32 %s265, 1
      %p269 = scmp.eq.s32.totalorder %s21, 1
      %p270 = scmp.ne.s32.totalorder %s265, %s267
      %p271 = scmp.eq.s32.totalorder %s21, 0
      %p272 = por %p270, %p271
      %p273 = scmp.ne.s32.totalorder %s265, %s267
      %p274 = scmp.eq.s32.totalorder %s26, 1
      %p275 = por %p273, %p274
      %p276 = scmp.ne.s32.totalorder %s267, %s268
      %p277 = scmp.eq.s32.totalorder %s26, 0
      %p278 = por %p276, %p277
      %p279 = scmp.ne.s32.totalorder %s267, %s268
      %p280 = scmp.eq.s32.totalorder %s27, 1
      %p281 = por %p279, %p280
      %p283 = scmp.ne.s32.totalorder %s268, %s282
      %p284 = scmp.eq.s32.totalorder %s27, 0
      %p285 = por %p283, %p284
      %s286 = ssub.s32 %s21, %s28
      %p287 = scmp.eq.s32.totalorder %s286, 0
      %s289 = sadd.s32 %s288, 1
      %s290 = scalar_select %p287, %s288, %s289
      %p293 = pneg %p287
      %p294 = scmp.eq.s32.totalorder %s21, 1
      %p295 = por %p293, %p294
      %p296 = scmp.ne.s32.totalorder %s288, %s291
      %p297 = scmp.eq.s32.totalorder %s21, 0
      %p298 = por %p296, %p297
      %p299 = scmp.ne.s32.totalorder %s288, %s291
      %p300 = scmp.eq.s32.totalorder %s26, 1
      %p301 = por %p299, %p300
      %p302 = scmp.ne.s32.totalorder %s291, %s292
      %p303 = scmp.eq.s32.totalorder %s26, 0
      %p304 = por %p302, %p303
      %p305 = scmp.ne.s32.totalorder %s291, %s292
      %p306 = scmp.eq.s32.totalorder %s27, 1
      %p307 = por %p305, %p306
      %p309 = scmp.ne.s32.totalorder %s292, %s308
      %p310 = scmp.eq.s32.totalorder %s27, 0
      %p311 = por %p309, %p310
      %p312 = scmp.le.s32.totalorder 1, %s21
      %p313 = scmp.lt.s32.totalorder %s21, 3
      %p314 = pnand %p312, %p313
      %p315 = pneg %p314
      // Predicated region
      $region9: #{cee_forward.3} parent=5 // pred_check
        _
      $region10: #{cee_forward.3} parent=5 // pred_check_branch
        %317 = sbr.rel (%p314) target = $region12
      $region11: #{cee_forward.3} parent=5 // pred_region
        %s318 = ssub.s32 %s21, 1
        // Predicated region
        $region13: #{cee_forward.3} parent=11 // pred_check
          %p319 = pneg %p68
        $region14: #{cee_forward.3} parent=11 // pred_check_branch
          %321 = sbr.rel (%p319) target = $region16
        $region15: #{cee_forward.3} parent=11 // pred_region
          _
        $region16: #{cee_forward.3} parent=11 // pred_fallthru
          _
        // Predicated region
        $region17: #{cee_forward.3} parent=11 // pred_check
          %p322 = pneg %p89
        $region18: #{cee_forward.3} parent=11 // pred_check_branch
          %324 = sbr.rel (%p322) target = $region20
        $region19: #{cee_forward.3} parent=11 // pred_region
          _
        $region20: #{cee_forward.3} parent=11 // pred_fallthru
          _
        // Predicated region
        $region21: #{cee_forward.3} parent=11 // pred_check
          %p325 = pneg %p110
        $region22: #{cee_forward.3} parent=11 // pred_check_branch
          %327 = sbr.rel (%p325) target = $region24
        $region23: #{cee_forward.3} parent=11 // pred_region
          _
        $region24: #{cee_forward.3} parent=11 // pred_fallthru
          _
        // Predicated region
        $region25: #{cee_forward.3} parent=11 // pred_check
          %p328 = pneg %p131
        $region26: #{cee_forward.3} parent=11 // pred_check_branch
          %330 = sbr.rel (%p328) target = $region28
        $region27: #{cee_forward.3} parent=11 // pred_region
          _
        $region28: #{cee_forward.3} parent=11 // pred_fallthru
          _
        // Predicated region
        $region29: #{cee_forward.3} parent=11 // pred_check
          %p331 = pneg %p152
        $region30: #{cee_forward.3} parent=11 // pred_check_branch
          %333 = sbr.rel (%p331) target = $region32
        $region31: #{cee_forward.3} parent=11 // pred_region
          _
        $region32: #{cee_forward.3} parent=11 // pred_fallthru
          _
        // Predicated region
        $region33: #{cee_forward.3} parent=11 // pred_check
          %p334 = pneg %p173
        $region34: #{cee_forward.3} parent=11 // pred_check_branch
          %336 = sbr.rel (%p334) target = $region36
        $region35: #{cee_forward.3} parent=11 // pred_region
          _
        $region36: #{cee_forward.3} parent=11 // pred_fallthru
          _
        // Predicated region
        $region37: #{cee_forward.3} parent=11 // pred_check
          %p337 = pneg %p194
        $region38: #{cee_forward.3} parent=11 // pred_check_branch
          %339 = sbr.rel (%p337) target = $region40
        $region39: #{cee_forward.3} parent=11 // pred_region
          _
        $region40: #{cee_forward.3} parent=11 // pred_fallthru
          _
        // Predicated region
        $region41: #{cee_forward.3} parent=11 // pred_check
          %p340 = pneg %p215
        $region42: #{cee_forward.3} parent=11 // pred_check_branch
          %342 = sbr.rel (%p340) target = $region44
        $region43: #{cee_forward.3} parent=11 // pred_region
          _
        $region44: #{cee_forward.3} parent=11 // pred_fallthru
          _
        // Predicated region
        $region45: #{cee_forward.3} parent=11 // pred_check
          %p343 = pneg %p236
        $region46: #{cee_forward.3} parent=11 // pred_check_branch
          %345 = sbr.rel (%p343) target = $region48
        $region47: #{cee_forward.3} parent=11 // pred_region
          _
        $region48: #{cee_forward.3} parent=11 // pred_fallthru
          _
        // Predicated region
        $region49: #{cee_forward.3} parent=11 // pred_check
          %p346 = pneg %p257
        $region50: #{cee_forward.3} parent=11 // pred_check_branch
          %348 = sbr.rel (%p346) target = $region52
        $region51: #{cee_forward.3} parent=11 // pred_region
          _
        $region52: #{cee_forward.3} parent=11 // pred_fallthru
          _
        // Predicated region
        $region53: #{cee_forward.3} parent=11 // pred_check
          %p349 = pneg %p278
        $region54: #{cee_forward.3} parent=11 // pred_check_branch
          %351 = sbr.rel (%p349) target = $region56
        $region55: #{cee_forward.3} parent=11 // pred_region
          _
        $region56: #{cee_forward.3} parent=11 // pred_fallthru
          _
      $region12: #{cee_forward.3} parent=5 // pred_fallthru
        _
      %p352 = scmp.lt.s32.totalorder %s21, 2
      // Predicated region
      $region57: #{cee_forward.3} parent=5 // pred_check
        %p353 = pneg %p352
      $region58: #{cee_forward.3} parent=5 // pred_check_branch
        %355 = sbr.rel (%p353) target = $region60
      $region59: #{cee_forward.3} parent=5 // pred_region
        // Predicated region
        $region61: #{cee_forward.3} parent=59 // pred_check
          %p356 = pneg %p41
        $region62: #{cee_forward.3} parent=59 // pred_check_branch
          %358 = sbr.rel (%p356) target = $region64
        $region63: #{cee_forward.3} parent=59 // pred_region
          %p359 = scmp.lt.s32.totalorder %s21, 1
          %s360 = scalar_select %p359, %s21, 1
          %s361 = smul.addr %s360, 24
          %s362 = smul.addr %s361, 8
          %s363 = scalar_lea.vmem %s0, %s362
        $region64: #{cee_forward.3} parent=59 // pred_fallthru
          _
      $region60: #{cee_forward.3} parent=5 // pred_fallthru
        _
      %p364 = scmp.le.s32.totalorder 1, %s21
      %p365 = scmp.lt.s32.totalorder %s21, 3
      %p366 = pnand %p364, %p365
      %p367 = pneg %p366
      // Predicated region
      $region65: #{cee_forward.3} parent=5 // pred_check
        _
      $region66: #{cee_forward.3} parent=5 // pred_check_branch
        %369 = sbr.rel (%p366) target = $region68
      $region67: #{cee_forward.3} parent=5 // pred_region
        %s370 = ssub.s32 %s21, 1
        %p371 = scmp.lt.s32.totalorder %s26, 1
        %s372 = scalar_select %p371, %s26, 1
        %s373 = smul.addr %s372, 24
        %s374 = smul.addr %s373, 8
        %s375 = scalar_lea.vmem %s0, %s374
        %p376 = pneg %p47
        %p377 = pneg %p44
        %p378 = pneg %p68
        %p379 = pneg %p65
        %p380 = pneg %p89
        %p381 = pneg %p86
        %p382 = pneg %p110
        %p383 = pneg %p107
        %p384 = pneg %p131
        %p385 = pneg %p128
        %p386 = pneg %p152
        %p387 = pneg %p149
        %p388 = pneg %p173
        %p389 = pneg %p170
        %p390 = pneg %p194
        %p391 = pneg %p191
        %p392 = pneg %p215
        %p393 = pneg %p212
        %p394 = pneg %p236
        %p395 = pneg %p233
        %p396 = pneg %p257
        %p397 = pneg %p254
        %p398 = pneg %p278
        %p399 = pneg %p275
        %p400 = pneg %p304
        %p401 = pneg %p301
        %s402 = sand.u32 %s291, 1
        %s403 = scalar_lea.sflag [#allocation3], %s402
        %s404 = sand.u32 %s291, 1
        %s405 = smul.addr %s404, 64
        %s406 = scalar_lea.vmem [#allocation2], %s405
        %p407 = scmp.lt.s32.totalorder %s26, 1
        %s408 = scalar_select %p407, %s26, 1
        %s409 = smul.addr %s408, 24
        %s410 = smul.addr %s409, 8
        %s411 = scalar_lea.vmem %s0, %s410
        %v413 = vld [vmem:[%s411] sm:$0xff]
        %v414 = vld [vmem:[%s411 + $0x8] sm:$0xf]
        %v415 = vld [vmem:[%s411 + $0x10] sm:$0xff]
        %v416 = vld [vmem:[%s411 + $0x18] sm:$0xf]
        %v417 = vld [vmem:[%s411 + $0x20] sm:$0xff]
        %v418 = vld [vmem:[%s411 + $0x28] sm:$0xf]
        %v419 = vld [vmem:[%s411 + $0x30] sm:$0xff]
        %v420 = vld [vmem:[%s411 + $0x38] sm:$0xf]
        %v421 = vld [vmem:[%s411 + $0x40] sm:$0xff]
        %v422 = vld [vmem:[%s411 + $0x48] sm:$0xf]
        %v423 = vld [vmem:[%s411 + $0x50] sm:$0xff]
        %v424 = vld [vmem:[%s411 + $0x58] sm:$0xf]
        %v425 = vld [vmem:[%s411 + $0x60] sm:$0xff]
        %v426 = vld [vmem:[%s411 + $0x68] sm:$0xf]
        %v427 = vld [vmem:[%s411 + $0x70] sm:$0xff]
        %v428 = vld [vmem:[%s411 + $0x78] sm:$0xf]
        %v429 = vld [vmem:[%s411 + $0x80] sm:$0xff]
        %v430 = vld [vmem:[%s411 + $0x88] sm:$0xf]
        %v431 = vld [vmem:[%s411 + $0x90] sm:$0xff]
        %v432 = vld [vmem:[%s411 + $0x98] sm:$0xf]
        %v433 = vld [vmem:[%s411 + $0xa0] sm:$0xff]
        %v434 = vld [vmem:[%s411 + $0xa8] sm:$0xf]
        %v435 = vld [vmem:[%s411 + $0xb0] sm:$0xff]
        %v436 = vld [vmem:[%s411 + $0xb8] sm:$0xf]
        %v437 = vld [vmem:[%s1] sm:$0xff]
        %v438 = vld [vmem:[%s1 + $0x8] sm:$0x1]
        %v439 = vperm.slane %v437, 0
        %v440 = vmul.f32 %v413, %v439
        %v441 = vmul.f32 %v414, %v439
        %v442 = vmul.f32 %v415, %v439
        %v443 = vmul.f32 %v416, %v439
        %v444 = vmul.f32 %v417, %v439
        %v445 = vmul.f32 %v418, %v439
        %v446 = vmul.f32 %v419, %v439
        %v447 = vmul.f32 %v420, %v439
        %v448 = vmul.f32 %v421, %v439
        %v449 = vmul.f32 %v422, %v439
        %v450 = vmul.f32 %v423, %v439
        %v451 = vmul.f32 %v424, %v439
        %v452 = vmul.f32 %v425, %v439
        %v453 = vmul.f32 %v426, %v439
        %v454 = vmul.f32 %v427, %v439
        %v455 = vmul.f32 %v428, %v439
        %v456 = vmul.f32 %v429, %v439
        %v457 = vmul.f32 %v430, %v439
        %v458 = vmul.f32 %v431, %v439
        %v459 = vmul.f32 %v432, %v439
        %v460 = vadd.f32 %v440, 0.0
        %v461 = vadd.f32 %v441, 0.0
        %v462 = vadd.f32 %v442, 0.0
        %v463 = vadd.f32 %v443, 0.0
        %v464 = vadd.f32 %v444, 0.0
        %v465 = vadd.f32 %v445, 0.0
        %v466 = vadd.f32 %v446, 0.0
        %v467 = vadd.f32 %v447, 0.0
        %v468 = vadd.f32 %v448, 0.0
        %v469 = vadd.f32 %v449, 0.0
        %v470 = vadd.f32 %v450, 0.0
        %v471 = vadd.f32 %v451, 0.0
        %v472 = vadd.f32 %v452, 0.0
        %v473 = vadd.f32 %v453, 0.0
        %v474 = vadd.f32 %v454, 0.0
        %v475 = vadd.f32 %v455, 0.0
        %v476 = vadd.f32 %v456, 0.0
        %v477 = vadd.f32 %v457, 0.0
        %v478 = vadd.f32 %v458, 0.0
        %v479 = vadd.f32 %v459, 0.0
        %v480 = vperm.slane %v437, 1
        %v481 = vmul.f32 %v413, %v480
        %v482 = vmul.f32 %v414, %v480
        %v483 = vmul.f32 %v415, %v480
        %v484 = vmul.f32 %v416, %v480
        %v485 = vmul.f32 %v417, %v480
        %v486 = vmul.f32 %v418, %v480
        %v487 = vmul.f32 %v419, %v480
        %v488 = vmul.f32 %v420, %v480
        %v489 = vmul.f32 %v421, %v480
        %v490 = vmul.f32 %v422, %v480
        %v491 = vmul.f32 %v423, %v480
        %v492 = vmul.f32 %v424, %v480
        %v493 = vmul.f32 %v425, %v480
        %v494 = vmul.f32 %v426, %v480
        %v495 = vmul.f32 %v427, %v480
        %v496 = vmul.f32 %v428, %v480
        %v497 = vmul.f32 %v429, %v480
        %v498 = vmul.f32 %v430, %v480
        %v499 = vmul.f32 %v431, %v480
        %v500 = vmul.f32 %v432, %v480
        %vm521 = vcmask 1046528
        %v522 = vrot.slane %v481, 1
        %v523 = vrot.slane %v482, 1
        %v524 = vsel %vm521, %v522, %v523
        %v525 = vrot.slane %v483, 1
        %v526 = vrot.slane %v484, 1
        %v527 = vsel %vm521, %v525, %v526
        %v528 = vrot.slane %v485, 1
        %v529 = vrot.slane %v486, 1
        %v530 = vsel %vm521, %v528, %v529
        %v531 = vrot.slane %v487, 1
        %v532 = vrot.slane %v488, 1
        %v533 = vsel %vm521, %v531, %v532
        %v534 = vrot.slane %v489, 1
        %v535 = vrot.slane %v490, 1
        %v536 = vsel %vm521, %v534, %v535
        %v537 = vrot.slane %v491, 1
        %v538 = vrot.slane %v492, 1
        %v539 = vsel %vm521, %v537, %v538
        %v540 = vrot.slane %v493, 1
        %v541 = vrot.slane %v494, 1
        %v542 = vsel %vm521, %v540, %v541
        %v543 = vrot.slane %v495, 1
        %v544 = vrot.slane %v496, 1
        %v545 = vsel %vm521, %v543, %v544
        %v546 = vrot.slane %v497, 1
        %v547 = vrot.slane %v498, 1
        %v548 = vsel %vm521, %v546, %v547
        %v549 = vrot.slane %v499, 1
        %v550 = vrot.slane %v500, 1
        %v551 = vsel %vm521, %v549, %v550
        %v572 = vadd.f32 %v460, %v524
        %v573 = vadd.f32 %v461, %v523
        %v574 = vadd.f32 %v462, %v527
        %v575 = vadd.f32 %v463, %v526
        %v576 = vadd.f32 %v464, %v530
        %v577 = vadd.f32 %v465, %v529
        %v578 = vadd.f32 %v466, %v533
        %v579 = vadd.f32 %v467, %v532
        %v580 = vadd.f32 %v468, %v536
        %v581 = vadd.f32 %v469, %v535
        %v582 = vadd.f32 %v470, %v539
        %v583 = vadd.f32 %v471, %v538
        %v584 = vadd.f32 %v472, %v542
        %v585 = vadd.f32 %v473, %v541
        %v586 = vadd.f32 %v474, %v545
        %v587 = vadd.f32 %v475, %v544
        %v588 = vadd.f32 %v476, %v548
        %v589 = vadd.f32 %v477, %v547
        %v590 = vadd.f32 %v478, %v551
        %v591 = vadd.f32 %v479, %v550
        %v592 = vperm.slane %v437, 2
        %v593 = vmul.f32 %v413, %v592
        %v594 = vmul.f32 %v414, %v592
        %v595 = vmul.f32 %v415, %v592
        %v596 = vmul.f32 %v416, %v592
        %v597 = vmul.f32 %v417, %v592
        %v598 = vmul.f32 %v418, %v592
        %v599 = vmul.f32 %v419, %v592
        %v600 = vmul.f32 %v420, %v592
        %v601 = vmul.f32 %v421, %v592
        %v602 = vmul.f32 %v422, %v592
        %v603 = vmul.f32 %v423, %v592
        %v604 = vmul.f32 %v424, %v592
        %v605 = vmul.f32 %v425, %v592
        %v606 = vmul.f32 %v426, %v592
        %v607 = vmul.f32 %v427, %v592
        %v608 = vmul.f32 %v428, %v592
        %v609 = vmul.f32 %v429, %v592
        %v610 = vmul.f32 %v430, %v592
        %v611 = vmul.f32 %v431, %v592
        %v612 = vmul.f32 %v432, %v592
        %vm633 = vcmask 1045504
        %v634 = vrot.slane %v593, 2
        %v635 = vrot.slane %v594, 2
        %v636 = vsel %vm633, %v634, %v635
        %v637 = vrot.slane %v595, 2
        %v638 = vrot.slane %v596, 2
        %v639 = vsel %vm633, %v637, %v638
        %v640 = vrot.slane %v597, 2
        %v641 = vrot.slane %v598, 2
        %v642 = vsel %vm633, %v640, %v641
        %v643 = vrot.slane %v599, 2
        %v644 = vrot.slane %v600, 2
        %v645 = vsel %vm633, %v643, %v644
        %v646 = vrot.slane %v601, 2
        %v647 = vrot.slane %v602, 2
        %v648 = vsel %vm633, %v646, %v647
        %v649 = vrot.slane %v603, 2
        %v650 = vrot.slane %v604, 2
        %v651 = vsel %vm633, %v649, %v650
        %v652 = vrot.slane %v605, 2
        %v653 = vrot.slane %v606, 2
        %v654 = vsel %vm633, %v652, %v653
        %v655 = vrot.slane %v607, 2
        %v656 = vrot.slane %v608, 2
        %v657 = vsel %vm633, %v655, %v656
        %v658 = vrot.slane %v609, 2
        %v659 = vrot.slane %v610, 2
        %v660 = vsel %vm633, %v658, %v659
        %v661 = vrot.slane %v611, 2
        %v662 = vrot.slane %v612, 2
        %v663 = vsel %vm633, %v661, %v662
        %v684 = vadd.f32 %v572, %v636
        %v685 = vadd.f32 %v573, %v635
        %v686 = vadd.f32 %v574, %v639
        %v687 = vadd.f32 %v575, %v638
        %v688 = vadd.f32 %v576, %v642
        %v689 = vadd.f32 %v577, %v641
        %v690 = vadd.f32 %v578, %v645
        %v691 = vadd.f32 %v579, %v644
        %v692 = vadd.f32 %v580, %v648
        %v693 = vadd.f32 %v581, %v647
        %v694 = vadd.f32 %v582, %v651
        %v695 = vadd.f32 %v583, %v650
        %v696 = vadd.f32 %v584, %v654
        %v697 = vadd.f32 %v585, %v653
        %v698 = vadd.f32 %v586, %v657
        %v699 = vadd.f32 %v587, %v656
        %v700 = vadd.f32 %v588, %v660
        %v701 = vadd.f32 %v589, %v659
        %v702 = vadd.f32 %v590, %v663
        %v703 = vadd.f32 %v591, %v662
        %v704 = vperm.slane %v437, 3
        %v705 = vmul.f32 %v415, %v704
        %v706 = vmul.f32 %v416, %v704
        %v707 = vmul.f32 %v417, %v704
        %v708 = vmul.f32 %v418, %v704
        %v709 = vmul.f32 %v419, %v704
        %v710 = vmul.f32 %v420, %v704
        %v711 = vmul.f32 %v421, %v704
        %v712 = vmul.f32 %v422, %v704
        %v713 = vmul.f32 %v423, %v704
        %v714 = vmul.f32 %v424, %v704
        %v715 = vmul.f32 %v425, %v704
        %v716 = vmul.f32 %v426, %v704
        %v717 = vmul.f32 %v427, %v704
        %v718 = vmul.f32 %v428, %v704
        %v719 = vmul.f32 %v429, %v704
        %v720 = vmul.f32 %v430, %v704
        %v721 = vmul.f32 %v431, %v704
        %v722 = vmul.f32 %v432, %v704
        %v723 = vmul.f32 %v433, %v704
        %v724 = vmul.f32 %v434, %v704
        %v725 = vadd.f32 %v684, %v705
        %v726 = vadd.f32 %v685, %v706
        %v727 = vadd.f32 %v686, %v707
        %v728 = vadd.f32 %v687, %v708
        %v729 = vadd.f32 %v688, %v709
        %v730 = vadd.f32 %v689, %v710
        %v731 = vadd.f32 %v690, %v711
        %v732 = vadd.f32 %v691, %v712
        %v733 = vadd.f32 %v692, %v713
        %v734 = vadd.f32 %v693, %v714
        %v735 = vadd.f32 %v694, %v715
        %v736 = vadd.f32 %v695, %v716
        %v737 = vadd.f32 %v696, %v717
        %v738 = vadd.f32 %v697, %v718
        %v739 = vadd.f32 %v698, %v719
        %v740 = vadd.f32 %v699, %v720
        %v741 = vadd.f32 %v700, %v721
        %v742 = vadd.f32 %v701, %v722
        %v743 = vadd.f32 %v702, %v723
        %v744 = vadd.f32 %v703, %v724
        %v745 = vperm.slane %v437, 4
        %v746 = vmul.f32 %v415, %v745
        %v747 = vmul.f32 %v416, %v745
        %v748 = vmul.f32 %v417, %v745
        %v749 = vmul.f32 %v418, %v745
        %v750 = vmul.f32 %v419, %v745
        %v751 = vmul.f32 %v420, %v745
        %v752 = vmul.f32 %v421, %v745
        %v753 = vmul.f32 %v422, %v745
        %v754 = vmul.f32 %v423, %v745
        %v755 = vmul.f32 %v424, %v745
        %v756 = vmul.f32 %v425, %v745
        %v757 = vmul.f32 %v426, %v745
        %v758 = vmul.f32 %v427, %v745
        %v759 = vmul.f32 %v428, %v745
        %v760 = vmul.f32 %v429, %v745
        %v761 = vmul.f32 %v430, %v745
        %v762 = vmul.f32 %v431, %v745
        %v763 = vmul.f32 %v432, %v745
        %v764 = vmul.f32 %v433, %v745
        %v765 = vmul.f32 %v434, %v745
        %v786 = vrot.slane %v746, 1
        %v787 = vrot.slane %v747, 1
        %v788 = vsel %vm521, %v786, %v787
        %v789 = vrot.slane %v748, 1
        %v790 = vrot.slane %v749, 1
        %v791 = vsel %vm521, %v789, %v790
        %v792 = vrot.slane %v750, 1
        %v793 = vrot.slane %v751, 1
        %v794 = vsel %vm521, %v792, %v793
        %v795 = vrot.slane %v752, 1
        %v796 = vrot.slane %v753, 1
        %v797 = vsel %vm521, %v795, %v796
        %v798 = vrot.slane %v754, 1
        %v799 = vrot.slane %v755, 1
        %v800 = vsel %vm521, %v798, %v799
        %v801 = vrot.slane %v756, 1
        %v802 = vrot.slane %v757, 1
        %v803 = vsel %vm521, %v801, %v802
        %v804 = vrot.slane %v758, 1
        %v805 = vrot.slane %v759, 1
        %v806 = vsel %vm521, %v804, %v805
        %v807 = vrot.slane %v760, 1
        %v808 = vrot.slane %v761, 1
        %v809 = vsel %vm521, %v807, %v808
        %v810 = vrot.slane %v762, 1
        %v811 = vrot.slane %v763, 1
        %v812 = vsel %vm521, %v810, %v811
        %v813 = vrot.slane %v764, 1
        %v814 = vrot.slane %v765, 1
        %v815 = vsel %vm521, %v813, %v814
        %v836 = vadd.f32 %v725, %v788
        %v837 = vadd.f32 %v726, %v787
        %v838 = vadd.f32 %v727, %v791
        %v839 = vadd.f32 %v728, %v790
        %v840 = vadd.f32 %v729, %v794
        %v841 = vadd.f32 %v730, %v793
        %v842 = vadd.f32 %v731, %v797
        %v843 = vadd.f32 %v732, %v796
        %v844 = vadd.f32 %v733, %v800
        %v845 = vadd.f32 %v734, %v799
        %v846 = vadd.f32 %v735, %v803
        %v847 = vadd.f32 %v736, %v802
        %v848 = vadd.f32 %v737, %v806
        %v849 = vadd.f32 %v738, %v805
        %v850 = vadd.f32 %v739, %v809
        %v851 = vadd.f32 %v740, %v808
        %v852 = vadd.f32 %v741, %v812
        %v853 = vadd.f32 %v742, %v811
        %v854 = vadd.f32 %v743, %v815
        %v855 = vadd.f32 %v744, %v814
        %v856 = vperm.slane %v437, 5
        %v857 = vmul.f32 %v415, %v856
        %v858 = vmul.f32 %v416, %v856
        %v859 = vmul.f32 %v417, %v856
        %v860 = vmul.f32 %v418, %v856
        %v861 = vmul.f32 %v419, %v856
        %v862 = vmul.f32 %v420, %v856
        %v863 = vmul.f32 %v421, %v856
        %v864 = vmul.f32 %v422, %v856
        %v865 = vmul.f32 %v423, %v856
        %v866 = vmul.f32 %v424, %v856
        %v867 = vmul.f32 %v425, %v856
        %v868 = vmul.f32 %v426, %v856
        %v869 = vmul.f32 %v427, %v856
        %v870 = vmul.f32 %v428, %v856
        %v871 = vmul.f32 %v429, %v856
        %v872 = vmul.f32 %v430, %v856
        %v873 = vmul.f32 %v431, %v856
        %v874 = vmul.f32 %v432, %v856
        %v875 = vmul.f32 %v433, %v856
        %v876 = vmul.f32 %v434, %v856
        %v897 = vrot.slane %v857, 2
        %v898 = vrot.slane %v858, 2
        %v899 = vsel %vm633, %v897, %v898
        %v900 = vrot.slane %v859, 2
        %v901 = vrot.slane %v860, 2
        %v902 = vsel %vm633, %v900, %v901
        %v903 = vrot.slane %v861, 2
        %v904 = vrot.slane %v862, 2
        %v905 = vsel %vm633, %v903, %v904
        %v906 = vrot.slane %v863, 2
        %v907 = vrot.slane %v864, 2
        %v908 = vsel %vm633, %v906, %v907
        %v909 = vrot.slane %v865, 2
        %v910 = vrot.slane %v866, 2
        %v911 = vsel %vm633, %v909, %v910
        %v912 = vrot.slane %v867, 2
        %v913 = vrot.slane %v868, 2
        %v914 = vsel %vm633, %v912, %v913
        %v915 = vrot.slane %v869, 2
        %v916 = vrot.slane %v870, 2
        %v917 = vsel %vm633, %v915, %v916
        %v918 = vrot.slane %v871, 2
        %v919 = vrot.slane %v872, 2
        %v920 = vsel %vm633, %v918, %v919
        %v921 = vrot.slane %v873, 2
        %v922 = vrot.slane %v874, 2
        %v923 = vsel %vm633, %v921, %v922
        %v924 = vrot.slane %v875, 2
        %v925 = vrot.slane %v876, 2
        %v926 = vsel %vm633, %v924, %v925
        %v947 = vadd.f32 %v836, %v899
        %v948 = vadd.f32 %v837, %v898
        %v949 = vadd.f32 %v838, %v902
        %v950 = vadd.f32 %v839, %v901
        %v951 = vadd.f32 %v840, %v905
        %v952 = vadd.f32 %v841, %v904
        %v953 = vadd.f32 %v842, %v908
        %v954 = vadd.f32 %v843, %v907
        %v955 = vadd.f32 %v844, %v911
        %v956 = vadd.f32 %v845, %v910
        %v957 = vadd.f32 %v846, %v914
        %v958 = vadd.f32 %v847, %v913
        %v959 = vadd.f32 %v848, %v917
        %v960 = vadd.f32 %v849, %v916
        %v961 = vadd.f32 %v850, %v920
        %v962 = vadd.f32 %v851, %v919
        %v963 = vadd.f32 %v852, %v923
        %v964 = vadd.f32 %v853, %v922
        %v965 = vadd.f32 %v854, %v926
        %v966 = vadd.f32 %v855, %v925
        %v967 = vperm.slane %v437, 6
        %v968 = vmul.f32 %v417, %v967
        %v969 = vmul.f32 %v418, %v967
        %v970 = vmul.f32 %v419, %v967
        %v971 = vmul.f32 %v420, %v967
        %v972 = vmul.f32 %v421, %v967
        %v973 = vmul.f32 %v422, %v967
        %v974 = vmul.f32 %v423, %v967
        %v975 = vmul.f32 %v424, %v967
        %v976 = vmul.f32 %v425, %v967
        %v977 = vmul.f32 %v426, %v967
        %v978 = vmul.f32 %v427, %v967
        %v979 = vmul.f32 %v428, %v967
        %v980 = vmul.f32 %v429, %v967
        %v981 = vmul.f32 %v430, %v967
        %v982 = vmul.f32 %v431, %v967
        %v983 = vmul.f32 %v432, %v967
        %v984 = vmul.f32 %v433, %v967
        %v985 = vmul.f32 %v434, %v967
        %v986 = vmul.f32 %v435, %v967
        %v987 = vmul.f32 %v436, %v967
        %v988 = vadd.f32 %v947, %v968
        %v989 = vadd.f32 %v948, %v969
        %v990 = vadd.f32 %v949, %v970
        %v991 = vadd.f32 %v950, %v971
        %v992 = vadd.f32 %v951, %v972
        %v993 = vadd.f32 %v952, %v973
        %v994 = vadd.f32 %v953, %v974
        %v995 = vadd.f32 %v954, %v975
        %v996 = vadd.f32 %v955, %v976
        %v997 = vadd.f32 %v956, %v977
        %v998 = vadd.f32 %v957, %v978
        %v999 = vadd.f32 %v958, %v979
        %v1000 = vadd.f32 %v959, %v980
        %v1001 = vadd.f32 %v960, %v981
        %v1002 = vadd.f32 %v961, %v982
        %v1003 = vadd.f32 %v962, %v983
        %v1004 = vadd.f32 %v963, %v984
        %v1005 = vadd.f32 %v964, %v985
        %v1006 = vadd.f32 %v965, %v986
        %v1007 = vadd.f32 %v966, %v987
        %v1008 = vperm.slane %v437, 7
        %v1009 = vmul.f32 %v417, %v1008
        %v1010 = vmul.f32 %v418, %v1008
        %v1011 = vmul.f32 %v419, %v1008
        %v1012 = vmul.f32 %v420, %v1008
        %v1013 = vmul.f32 %v421, %v1008
        %v1014 = vmul.f32 %v422, %v1008
        %v1015 = vmul.f32 %v423, %v1008
        %v1016 = vmul.f32 %v424, %v1008
        %v1017 = vmul.f32 %v425, %v1008
        %v1018 = vmul.f32 %v426, %v1008
        %v1019 = vmul.f32 %v427, %v1008
        %v1020 = vmul.f32 %v428, %v1008
        %v1021 = vmul.f32 %v429, %v1008
        %v1022 = vmul.f32 %v430, %v1008
        %v1023 = vmul.f32 %v431, %v1008
        %v1024 = vmul.f32 %v432, %v1008
        %v1025 = vmul.f32 %v433, %v1008
        %v1026 = vmul.f32 %v434, %v1008
        %v1027 = vmul.f32 %v435, %v1008
        %v1028 = vmul.f32 %v436, %v1008
        %v1049 = vrot.slane %v1009, 1
        %v1050 = vrot.slane %v1010, 1
        %v1051 = vsel %vm521, %v1049, %v1050
        %v1052 = vrot.slane %v1011, 1
        %v1053 = vrot.slane %v1012, 1
        %v1054 = vsel %vm521, %v1052, %v1053
        %v1055 = vrot.slane %v1013, 1
        %v1056 = vrot.slane %v1014, 1
        %v1057 = vsel %vm521, %v1055, %v1056
        %v1058 = vrot.slane %v1015, 1
        %v1059 = vrot.slane %v1016, 1
        %v1060 = vsel %vm521, %v1058, %v1059
        %v1061 = vrot.slane %v1017, 1
        %v1062 = vrot.slane %v1018, 1
        %v1063 = vsel %vm521, %v1061, %v1062
        %v1064 = vrot.slane %v1019, 1
        %v1065 = vrot.slane %v1020, 1
        %v1066 = vsel %vm521, %v1064, %v1065
        %v1067 = vrot.slane %v1021, 1
        %v1068 = vrot.slane %v1022, 1
        %v1069 = vsel %vm521, %v1067, %v1068
        %v1070 = vrot.slane %v1023, 1
        %v1071 = vrot.slane %v1024, 1
        %v1072 = vsel %vm521, %v1070, %v1071
        %v1073 = vrot.slane %v1025, 1
        %v1074 = vrot.slane %v1026, 1
        %v1075 = vsel %vm521, %v1073, %v1074
        %v1076 = vrot.slane %v1027, 1
        %v1077 = vrot.slane %v1028, 1
        %v1078 = vsel %vm521, %v1076, %v1077
        %v1099 = vadd.f32 %v988, %v1051
        %v1100 = vadd.f32 %v989, %v1050
        %v1101 = vadd.f32 %v990, %v1054
        %v1102 = vadd.f32 %v991, %v1053
        %v1103 = vadd.f32 %v992, %v1057
        %v1104 = vadd.f32 %v993, %v1056
        %v1105 = vadd.f32 %v994, %v1060
        %v1106 = vadd.f32 %v995, %v1059
        %v1107 = vadd.f32 %v996, %v1063
        %v1108 = vadd.f32 %v997, %v1062
        %v1109 = vadd.f32 %v998, %v1066
        %v1110 = vadd.f32 %v999, %v1065
        %v1111 = vadd.f32 %v1000, %v1069
        %v1112 = vadd.f32 %v1001, %v1068
        %v1113 = vadd.f32 %v1002, %v1072
        %v1114 = vadd.f32 %v1003, %v1071
        %v1115 = vadd.f32 %v1004, %v1075
        %v1116 = vadd.f32 %v1005, %v1074
        %v1117 = vadd.f32 %v1006, %v1078
        %v1118 = vadd.f32 %v1007, %v1077
        %v1119 = vperm.slane %v438, 0
        %v1120 = vmul.f32 %v417, %v1119
        %v1121 = vmul.f32 %v418, %v1119
        %v1122 = vmul.f32 %v419, %v1119
        %v1123 = vmul.f32 %v420, %v1119
        %v1124 = vmul.f32 %v421, %v1119
        %v1125 = vmul.f32 %v422, %v1119
        %v1126 = vmul.f32 %v423, %v1119
        %v1127 = vmul.f32 %v424, %v1119
        %v1128 = vmul.f32 %v425, %v1119
        %v1129 = vmul.f32 %v426, %v1119
        %v1130 = vmul.f32 %v427, %v1119
        %v1131 = vmul.f32 %v428, %v1119
        %v1132 = vmul.f32 %v429, %v1119
        %v1133 = vmul.f32 %v430, %v1119
        %v1134 = vmul.f32 %v431, %v1119
        %v1135 = vmul.f32 %v432, %v1119
        %v1136 = vmul.f32 %v433, %v1119
        %v1137 = vmul.f32 %v434, %v1119
        %v1138 = vmul.f32 %v435, %v1119
        %v1139 = vmul.f32 %v436, %v1119
        %v1160 = vrot.slane %v1120, 2
        %v1161 = vrot.slane %v1121, 2
        %v1162 = vsel %vm633, %v1160, %v1161
        %v1163 = vrot.slane %v1122, 2
        %v1164 = vrot.slane %v1123, 2
        %v1165 = vsel %vm633, %v1163, %v1164
        %v1166 = vrot.slane %v1124, 2
        %v1167 = vrot.slane %v1125, 2
        %v1168 = vsel %vm633, %v1166, %v1167
        %v1169 = vrot.slane %v1126, 2
        %v1170 = vrot.slane %v1127, 2
        %v1171 = vsel %vm633, %v1169, %v1170
        %v1172 = vrot.slane %v1128, 2
        %v1173 = vrot.slane %v1129, 2
        %v1174 = vsel %vm633, %v1172, %v1173
        %v1175 = vrot.slane %v1130, 2
        %v1176 = vrot.slane %v1131, 2
        %v1177 = vsel %vm633, %v1175, %v1176
        %v1178 = vrot.slane %v1132, 2
        %v1179 = vrot.slane %v1133, 2
        %v1180 = vsel %vm633, %v1178, %v1179
        %v1181 = vrot.slane %v1134, 2
        %v1182 = vrot.slane %v1135, 2
        %v1183 = vsel %vm633, %v1181, %v1182
        %v1184 = vrot.slane %v1136, 2
        %v1185 = vrot.slane %v1137, 2
        %v1186 = vsel %vm633, %v1184, %v1185
        %v1187 = vrot.slane %v1138, 2
        %v1188 = vrot.slane %v1139, 2
        %v1189 = vsel %vm633, %v1187, %v1188
        %v1210 = vadd.f32 %v1099, %v1162
        %v1211 = vadd.f32 %v1100, %v1161
        %v1212 = vadd.f32 %v1101, %v1165
        %v1213 = vadd.f32 %v1102, %v1164
        %v1214 = vadd.f32 %v1103, %v1168
        %v1215 = vadd.f32 %v1104, %v1167
        %v1216 = vadd.f32 %v1105, %v1171
        %v1217 = vadd.f32 %v1106, %v1170
        %v1218 = vadd.f32 %v1107, %v1174
        %v1219 = vadd.f32 %v1108, %v1173
        %v1220 = vadd.f32 %v1109, %v1177
        %v1221 = vadd.f32 %v1110, %v1176
        %v1222 = vadd.f32 %v1111, %v1180
        %v1223 = vadd.f32 %v1112, %v1179
        %v1224 = vadd.f32 %v1113, %v1183
        %v1225 = vadd.f32 %v1114, %v1182
        %v1226 = vadd.f32 %v1115, %v1186
        %v1227 = vadd.f32 %v1116, %v1185
        %v1228 = vadd.f32 %v1117, %v1189
        %v1229 = vadd.f32 %v1118, %v1188
        %v1230 = vld [vmem:[%s2] sm:$0x1]
        %v1232 = vperm.slane %v1230, 0
        %v1234 = vadd.f32 %v1210, %v1232
        %v1235 = vadd.f32 %v1211, %v1232
        %v1236 = vadd.f32 %v1212, %v1232
        %v1237 = vadd.f32 %v1213, %v1232
        %v1238 = vadd.f32 %v1214, %v1232
        %v1239 = vadd.f32 %v1215, %v1232
        %v1240 = vadd.f32 %v1216, %v1232
        %v1241 = vadd.f32 %v1217, %v1232
        %v1242 = vadd.f32 %v1218, %v1232
        %v1243 = vadd.f32 %v1219, %v1232
        %v1244 = vadd.f32 %v1220, %v1232
        %v1245 = vadd.f32 %v1221, %v1232
        %v1246 = vadd.f32 %v1222, %v1232
        %v1247 = vadd.f32 %v1223, %v1232
        %v1248 = vadd.f32 %v1224, %v1232
        %v1249 = vadd.f32 %v1225, %v1232
        %v1250 = vadd.f32 %v1226, %v1232
        %v1251 = vadd.f32 %v1227, %v1232
        %v1252 = vadd.f32 %v1228, %v1232
        %v1253 = vadd.f32 %v1229, %v1232
        %v1254 = vmul.f32 %v1234, 0.5
        %v1255 = vmul.f32 %v1235, 0.5
        %v1256 = vmul.f32 %v1236, 0.5
        %v1257 = vmul.f32 %v1237, 0.5
        %v1258 = vmul.f32 %v1238, 0.5
        %v1259 = vmul.f32 %v1239, 0.5
        %v1260 = vmul.f32 %v1240, 0.5
        %v1261 = vmul.f32 %v1241, 0.5
        %v1262 = vmul.f32 %v1242, 0.5
        %v1263 = vmul.f32 %v1243, 0.5
        %v1264 = vmul.f32 %v1244, 0.5
        %v1265 = vmul.f32 %v1245, 0.5
        %v1266 = vmul.f32 %v1246, 0.5
        %v1267 = vmul.f32 %v1247, 0.5
        %v1268 = vmul.f32 %v1248, 0.5
        %v1269 = vmul.f32 %v1249, 0.5
        %v1270 = vmul.f32 %v1250, 0.5
        %v1271 = vmul.f32 %v1251, 0.5
        %v1272 = vmul.f32 %v1252, 0.5
        %v1273 = vmul.f32 %v1253, 0.5
        %v1274 = vrcp.pop 1.4142135
        %v1275 = vmul.f32 1.4142135, %v1274
        %v1276 = vsub.f32 1.0, %v1275
        %v1277 = vmul.f32 %v1274, %v1276
        %v1278 = vadd.f32 %v1274, %v1277
        %vm1279 = vweird.f32 %v1274
        %v1280 = vsel %vm1279, %v1274, %v1278
        %v1281 = vmul.f32 %v1234, %v1280
        %v1282 = vmul.f32 %v1235, %v1280
        %v1283 = vmul.f32 %v1236, %v1280
        %v1284 = vmul.f32 %v1237, %v1280
        %v1285 = vmul.f32 %v1238, %v1280
        %v1286 = vmul.f32 %v1239, %v1280
        %v1287 = vmul.f32 %v1240, %v1280
        %v1288 = vmul.f32 %v1241, %v1280
        %v1289 = vmul.f32 %v1242, %v1280
        %v1290 = vmul.f32 %v1243, %v1280
        %v1291 = vmul.f32 %v1244, %v1280
        %v1292 = vmul.f32 %v1245, %v1280
        %v1293 = vmul.f32 %v1246, %v1280
        %v1294 = vmul.f32 %v1247, %v1280
        %v1295 = vmul.f32 %v1248, %v1280
        %v1296 = vmul.f32 %v1249, %v1280
        %v1297 = vmul.f32 %v1250, %v1280
        %v1298 = vmul.f32 %v1251, %v1280
        %v1299 = vmul.f32 %v1252, %v1280
        %v1300 = vmul.f32 %v1253, %v1280
        %v1301 = vmul.f32 %v1281, %v1281
        %v1302 = vmin.f32 16.0, %v1301
        %v1303 = vmul.f32 %v1302, 2.1237322e-06
        %v1304 = vadd.f32 %v1303, 0.00028619796
        %v1305 = vmul.f32 %v1302, %v1304
        %v1306 = vadd.f32 %v1305, 0.0036580483
        %v1307 = vmul.f32 %v1302, %v1306
        %v1308 = vadd.f32 %v1307, 0.05243302
        %v1309 = vmul.f32 %v1302, %v1308
        %v1310 = vadd.f32 %v1309, 0.18741608
        %v1311 = vmul.f32 %v1302, %v1310
        %v1312 = vadd.f32 %v1311, 1.1283791
        %v1313 = vmul.f32 %v1281, %v1312
        %v1314 = vmul.f32 %v1302, 3.8918573e-05
        %v1315 = vadd.f32 %v1314, 0.001143296
        %v1316 = vmul.f32 %v1302, %v1315
        %v1317 = vadd.f32 %v1316, 0.014752088
        %v1318 = vmul.f32 %v1302, %v1317
        %v1319 = vadd.f32 %v1318, 0.112945676
        %v1320 = vmul.f32 %v1302, %v1319
        %v1321 = vadd.f32 %v1320, 0.4994258
        %v1322 = vmul.f32 %v1302, %v1321
        %v1323 = vadd.f32 %v1322, 1.0
        %v1324 = vrcp.pop %v1323
        %v1325 = vmul.f32 %v1323, %v1324
        %v1326 = vsub.f32 1.0, %v1325
        %v1327 = vmul.f32 %v1324, %v1326
        %v1328 = vadd.f32 %v1324, %v1327
        %vm1329 = vweird.f32 %v1323
        %vm1330 = vweird.f32 %v1324
        %vm1331 = vmor %vm1329, %vm1330
        %v1332 = vsel %vm1331, %v1324, %v1328
        %v1333 = vand.u32 2147483647, %v1323
        %vm1334 = vcmp.eq.f32.partialorder %v1333, 8.507059e+37
        %v1335 = vand.u32 %v1323, 2147483648
        %v1336 = vor.u32 1.1754944e-38, %v1335
        %v1337 = vsel %vm1334, %v1336, %v1332
        %v1338 = vmul.f32 %v1313, %v1337
        %v1339 = vmin.f32 %v1338, 1.0
        %v1340 = vmax.f32 %v1339, -1.0
        %v1341 = vmul.f32 %v1282, %v1282
        %v1342 = vmin.f32 16.0, %v1341
        %v1343 = vmul.f32 %v1342, 2.1237322e-06
        %v1344 = vadd.f32 %v1343, 0.00028619796
        %v1345 = vmul.f32 %v1342, %v1344
        %v1346 = vadd.f32 %v1345, 0.0036580483
        %v1347 = vmul.f32 %v1342, %v1346
        %v1348 = vadd.f32 %v1347, 0.05243302
        %v1349 = vmul.f32 %v1342, %v1348
        %v1350 = vadd.f32 %v1349, 0.18741608
        %v1351 = vmul.f32 %v1342, %v1350
        %v1352 = vadd.f32 %v1351, 1.1283791
        %v1353 = vmul.f32 %v1282, %v1352
        %v1354 = vmul.f32 %v1342, 3.8918573e-05
        %v1355 = vadd.f32 %v1354, 0.001143296
        %v1356 = vmul.f32 %v1342, %v1355
        %v1357 = vadd.f32 %v1356, 0.014752088
        %v1358 = vmul.f32 %v1342, %v1357
        %v1359 = vadd.f32 %v1358, 0.112945676
        %v1360 = vmul.f32 %v1342, %v1359
        %v1361 = vadd.f32 %v1360, 0.4994258
        %v1362 = vmul.f32 %v1342, %v1361
        %v1363 = vadd.f32 %v1362, 1.0
        %v1364 = vrcp.pop %v1363
        %v1365 = vmul.f32 %v1363, %v1364
        %v1366 = vsub.f32 1.0, %v1365
        %v1367 = vmul.f32 %v1364, %v1366
        %v1368 = vadd.f32 %v1364, %v1367
        %vm1369 = vweird.f32 %v1363
        %vm1370 = vweird.f32 %v1364
        %vm1371 = vmor %vm1369, %vm1370
        %v1372 = vsel %vm1371, %v1364, %v1368
        %v1373 = vand.u32 2147483647, %v1363
        %vm1374 = vcmp.eq.f32.partialorder %v1373, 8.507059e+37
        %v1375 = vand.u32 %v1363, 2147483648
        %v1376 = vor.u32 1.1754944e-38, %v1375
        %v1377 = vsel %vm1374, %v1376, %v1372
        %v1378 = vmul.f32 %v1353, %v1377
        %v1379 = vmin.f32 %v1378, 1.0
        %v1380 = vmax.f32 %v1379, -1.0
        %v1381 = vmul.f32 %v1283, %v1283
        %v1382 = vmin.f32 16.0, %v1381
        %v1383 = vmul.f32 %v1382, 2.1237322e-06
        %v1384 = vadd.f32 %v1383, 0.00028619796
        %v1385 = vmul.f32 %v1382, %v1384
        %v1386 = vadd.f32 %v1385, 0.0036580483
        %v1387 = vmul.f32 %v1382, %v1386
        %v1388 = vadd.f32 %v1387, 0.05243302
        %v1389 = vmul.f32 %v1382, %v1388
        %v1390 = vadd.f32 %v1389, 0.18741608
        %v1391 = vmul.f32 %v1382, %v1390
        %v1392 = vadd.f32 %v1391, 1.1283791
        %v1393 = vmul.f32 %v1283, %v1392
        %v1394 = vmul.f32 %v1382, 3.8918573e-05
        %v1395 = vadd.f32 %v1394, 0.001143296
        %v1396 = vmul.f32 %v1382, %v1395
        %v1397 = vadd.f32 %v1396, 0.014752088
        %v1398 = vmul.f32 %v1382, %v1397
        %v1399 = vadd.f32 %v1398, 0.112945676
        %v1400 = vmul.f32 %v1382, %v1399
        %v1401 = vadd.f32 %v1400, 0.4994258
        %v1402 = vmul.f32 %v1382, %v1401
        %v1403 = vadd.f32 %v1402, 1.0
        %v1404 = vrcp.pop %v1403
        %v1405 = vmul.f32 %v1403, %v1404
        %v1406 = vsub.f32 1.0, %v1405
        %v1407 = vmul.f32 %v1404, %v1406
        %v1408 = vadd.f32 %v1404, %v1407
        %vm1409 = vweird.f32 %v1403
        %vm1410 = vweird.f32 %v1404
        %vm1411 = vmor %vm1409, %vm1410
        %v1412 = vsel %vm1411, %v1404, %v1408
        %v1413 = vand.u32 2147483647, %v1403
        %vm1414 = vcmp.eq.f32.partialorder %v1413, 8.507059e+37
        %v1415 = vand.u32 %v1403, 2147483648
        %v1416 = vor.u32 1.1754944e-38, %v1415
        %v1417 = vsel %vm1414, %v1416, %v1412
        %v1418 = vmul.f32 %v1393, %v1417
        %v1419 = vmin.f32 %v1418, 1.0
        %v1420 = vmax.f32 %v1419, -1.0
        %v1421 = vmul.f32 %v1284, %v1284
        %v1422 = vmin.f32 16.0, %v1421
        %v1423 = vmul.f32 %v1422, 2.1237322e-06
        %v1424 = vadd.f32 %v1423, 0.00028619796
        %v1425 = vmul.f32 %v1422, %v1424
        %v1426 = vadd.f32 %v1425, 0.0036580483
        %v1427 = vmul.f32 %v1422, %v1426
        %v1428 = vadd.f32 %v1427, 0.05243302
        %v1429 = vmul.f32 %v1422, %v1428
        %v1430 = vadd.f32 %v1429, 0.18741608
        %v1431 = vmul.f32 %v1422, %v1430
        %v1432 = vadd.f32 %v1431, 1.1283791
        %v1433 = vmul.f32 %v1284, %v1432
        %v1434 = vmul.f32 %v1422, 3.8918573e-05
        %v1435 = vadd.f32 %v1434, 0.001143296
        %v1436 = vmul.f32 %v1422, %v1435
        %v1437 = vadd.f32 %v1436, 0.014752088
        %v1438 = vmul.f32 %v1422, %v1437
        %v1439 = vadd.f32 %v1438, 0.112945676
        %v1440 = vmul.f32 %v1422, %v1439
        %v1441 = vadd.f32 %v1440, 0.4994258
        %v1442 = vmul.f32 %v1422, %v1441
        %v1443 = vadd.f32 %v1442, 1.0
        %v1444 = vrcp.pop %v1443
        %v1445 = vmul.f32 %v1443, %v1444
        %v1446 = vsub.f32 1.0, %v1445
        %v1447 = vmul.f32 %v1444, %v1446
        %v1448 = vadd.f32 %v1444, %v1447
        %vm1449 = vweird.f32 %v1443
        %vm1450 = vweird.f32 %v1444
        %vm1451 = vmor %vm1449, %vm1450
        %v1452 = vsel %vm1451, %v1444, %v1448
        %v1453 = vand.u32 2147483647, %v1443
        %vm1454 = vcmp.eq.f32.partialorder %v1453, 8.507059e+37
        %v1455 = vand.u32 %v1443, 2147483648
        %v1456 = vor.u32 1.1754944e-38, %v1455
        %v1457 = vsel %vm1454, %v1456, %v1452
        %v1458 = vmul.f32 %v1433, %v1457
        %v1459 = vmin.f32 %v1458, 1.0
        %v1460 = vmax.f32 %v1459, -1.0
        %v1461 = vmul.f32 %v1285, %v1285
        %v1462 = vmin.f32 16.0, %v1461
        %v1463 = vmul.f32 %v1462, 2.1237322e-06
        %v1464 = vadd.f32 %v1463, 0.00028619796
        %v1465 = vmul.f32 %v1462, %v1464
        %v1466 = vadd.f32 %v1465, 0.0036580483
        %v1467 = vmul.f32 %v1462, %v1466
        %v1468 = vadd.f32 %v1467, 0.05243302
        %v1469 = vmul.f32 %v1462, %v1468
        %v1470 = vadd.f32 %v1469, 0.18741608
        %v1471 = vmul.f32 %v1462, %v1470
        %v1472 = vadd.f32 %v1471, 1.1283791
        %v1473 = vmul.f32 %v1285, %v1472
        %v1474 = vmul.f32 %v1462, 3.8918573e-05
        %v1475 = vadd.f32 %v1474, 0.001143296
        %v1476 = vmul.f32 %v1462, %v1475
        %v1477 = vadd.f32 %v1476, 0.014752088
        %v1478 = vmul.f32 %v1462, %v1477
        %v1479 = vadd.f32 %v1478, 0.112945676
        %v1480 = vmul.f32 %v1462, %v1479
        %v1481 = vadd.f32 %v1480, 0.4994258
        %v1482 = vmul.f32 %v1462, %v1481
        %v1483 = vadd.f32 %v1482, 1.0
        %v1484 = vrcp.pop %v1483
        %v1485 = vmul.f32 %v1483, %v1484
        %v1486 = vsub.f32 1.0, %v1485
        %v1487 = vmul.f32 %v1484, %v1486
        %v1488 = vadd.f32 %v1484, %v1487
        %vm1489 = vweird.f32 %v1483
        %vm1490 = vweird.f32 %v1484
        %vm1491 = vmor %vm1489, %vm1490
        %v1492 = vsel %vm1491, %v1484, %v1488
        %v1493 = vand.u32 2147483647, %v1483
        %vm1494 = vcmp.eq.f32.partialorder %v1493, 8.507059e+37
        %v1495 = vand.u32 %v1483, 2147483648
        %v1496 = vor.u32 1.1754944e-38, %v1495
        %v1497 = vsel %vm1494, %v1496, %v1492
        %v1498 = vmul.f32 %v1473, %v1497
        %v1499 = vmin.f32 %v1498, 1.0
        %v1500 = vmax.f32 %v1499, -1.0
        %v1501 = vmul.f32 %v1286, %v1286
        %v1502 = vmin.f32 16.0, %v1501
        %v1503 = vmul.f32 %v1502, 2.1237322e-06
        %v1504 = vadd.f32 %v1503, 0.00028619796
        %v1505 = vmul.f32 %v1502, %v1504
        %v1506 = vadd.f32 %v1505, 0.0036580483
        %v1507 = vmul.f32 %v1502, %v1506
        %v1508 = vadd.f32 %v1507, 0.05243302
        %v1509 = vmul.f32 %v1502, %v1508
        %v1510 = vadd.f32 %v1509, 0.18741608
        %v1511 = vmul.f32 %v1502, %v1510
        %v1512 = vadd.f32 %v1511, 1.1283791
        %v1513 = vmul.f32 %v1286, %v1512
        %v1514 = vmul.f32 %v1502, 3.8918573e-05
        %v1515 = vadd.f32 %v1514, 0.001143296
        %v1516 = vmul.f32 %v1502, %v1515
        %v1517 = vadd.f32 %v1516, 0.014752088
        %v1518 = vmul.f32 %v1502, %v1517
        %v1519 = vadd.f32 %v1518, 0.112945676
        %v1520 = vmul.f32 %v1502, %v1519
        %v1521 = vadd.f32 %v1520, 0.4994258
        %v1522 = vmul.f32 %v1502, %v1521
        %v1523 = vadd.f32 %v1522, 1.0
        %v1524 = vrcp.pop %v1523
        %v1525 = vmul.f32 %v1523, %v1524
        %v1526 = vsub.f32 1.0, %v1525
        %v1527 = vmul.f32 %v1524, %v1526
        %v1528 = vadd.f32 %v1524, %v1527
        %vm1529 = vweird.f32 %v1523
        %vm1530 = vweird.f32 %v1524
        %vm1531 = vmor %vm1529, %vm1530
        %v1532 = vsel %vm1531, %v1524, %v1528
        %v1533 = vand.u32 2147483647, %v1523
        %vm1534 = vcmp.eq.f32.partialorder %v1533, 8.507059e+37
        %v1535 = vand.u32 %v1523, 2147483648
        %v1536 = vor.u32 1.1754944e-38, %v1535
        %v1537 = vsel %vm1534, %v1536, %v1532
        %v1538 = vmul.f32 %v1513, %v1537
        %v1539 = vmin.f32 %v1538, 1.0
        %v1540 = vmax.f32 %v1539, -1.0
        %v1541 = vmul.f32 %v1287, %v1287
        %v1542 = vmin.f32 16.0, %v1541
        %v1543 = vmul.f32 %v1542, 2.1237322e-06
        %v1544 = vadd.f32 %v1543, 0.00028619796
        %v1545 = vmul.f32 %v1542, %v1544
        %v1546 = vadd.f32 %v1545, 0.0036580483
        %v1547 = vmul.f32 %v1542, %v1546
        %v1548 = vadd.f32 %v1547, 0.05243302
        %v1549 = vmul.f32 %v1542, %v1548
        %v1550 = vadd.f32 %v1549, 0.18741608
        %v1551 = vmul.f32 %v1542, %v1550
        %v1552 = vadd.f32 %v1551, 1.1283791
        %v1553 = vmul.f32 %v1287, %v1552
        %v1554 = vmul.f32 %v1542, 3.8918573e-05
        %v1555 = vadd.f32 %v1554, 0.001143296
        %v1556 = vmul.f32 %v1542, %v1555
        %v1557 = vadd.f32 %v1556, 0.014752088
        %v1558 = vmul.f32 %v1542, %v1557
        %v1559 = vadd.f32 %v1558, 0.112945676
        %v1560 = vmul.f32 %v1542, %v1559
        %v1561 = vadd.f32 %v1560, 0.4994258
        %v1562 = vmul.f32 %v1542, %v1561
        %v1563 = vadd.f32 %v1562, 1.0
        %v1564 = vrcp.pop %v1563
        %v1565 = vmul.f32 %v1563, %v1564
        %v1566 = vsub.f32 1.0, %v1565
        %v1567 = vmul.f32 %v1564, %v1566
        %v1568 = vadd.f32 %v1564, %v1567
        %vm1569 = vweird.f32 %v1563
        %vm1570 = vweird.f32 %v1564
        %vm1571 = vmor %vm1569, %vm1570
        %v1572 = vsel %vm1571, %v1564, %v1568
        %v1573 = vand.u32 2147483647, %v1563
        %vm1574 = vcmp.eq.f32.partialorder %v1573, 8.507059e+37
        %v1575 = vand.u32 %v1563, 2147483648
        %v1576 = vor.u32 1.1754944e-38, %v1575
        %v1577 = vsel %vm1574, %v1576, %v1572
        %v1578 = vmul.f32 %v1553, %v1577
        %v1579 = vmin.f32 %v1578, 1.0
        %v1580 = vmax.f32 %v1579, -1.0
        %v1581 = vmul.f32 %v1288, %v1288
        %v1582 = vmin.f32 16.0, %v1581
        %v1583 = vmul.f32 %v1582, 2.1237322e-06
        %v1584 = vadd.f32 %v1583, 0.00028619796
        %v1585 = vmul.f32 %v1582, %v1584
        %v1586 = vadd.f32 %v1585, 0.0036580483
        %v1587 = vmul.f32 %v1582, %v1586
        %v1588 = vadd.f32 %v1587, 0.05243302
        %v1589 = vmul.f32 %v1582, %v1588
        %v1590 = vadd.f32 %v1589, 0.18741608
        %v1591 = vmul.f32 %v1582, %v1590
        %v1592 = vadd.f32 %v1591, 1.1283791
        %v1593 = vmul.f32 %v1288, %v1592
        %v1594 = vmul.f32 %v1582, 3.8918573e-05
        %v1595 = vadd.f32 %v1594, 0.001143296
        %v1596 = vmul.f32 %v1582, %v1595
        %v1597 = vadd.f32 %v1596, 0.014752088
        %v1598 = vmul.f32 %v1582, %v1597
        %v1599 = vadd.f32 %v1598, 0.112945676
        %v1600 = vmul.f32 %v1582, %v1599
        %v1601 = vadd.f32 %v1600, 0.4994258
        %v1602 = vmul.f32 %v1582, %v1601
        %v1603 = vadd.f32 %v1602, 1.0
        %v1604 = vrcp.pop %v1603
        %v1605 = vmul.f32 %v1603, %v1604
        %v1606 = vsub.f32 1.0, %v1605
        %v1607 = vmul.f32 %v1604, %v1606
        %v1608 = vadd.f32 %v1604, %v1607
        %vm1609 = vweird.f32 %v1603
        %vm1610 = vweird.f32 %v1604
        %vm1611 = vmor %vm1609, %vm1610
        %v1612 = vsel %vm1611, %v1604, %v1608
        %v1613 = vand.u32 2147483647, %v1603
        %vm1614 = vcmp.eq.f32.partialorder %v1613, 8.507059e+37
        %v1615 = vand.u32 %v1603, 2147483648
        %v1616 = vor.u32 1.1754944e-38, %v1615
        %v1617 = vsel %vm1614, %v1616, %v1612
        %v1618 = vmul.f32 %v1593, %v1617
        %v1619 = vmin.f32 %v1618, 1.0
        %v1620 = vmax.f32 %v1619, -1.0
        %v1621 = vmul.f32 %v1289, %v1289
        %v1622 = vmin.f32 16.0, %v1621
        %v1623 = vmul.f32 %v1622, 2.1237322e-06
        %v1624 = vadd.f32 %v1623, 0.00028619796
        %v1625 = vmul.f32 %v1622, %v1624
        %v1626 = vadd.f32 %v1625, 0.0036580483
        %v1627 = vmul.f32 %v1622, %v1626
        %v1628 = vadd.f32 %v1627, 0.05243302
        %v1629 = vmul.f32 %v1622, %v1628
        %v1630 = vadd.f32 %v1629, 0.18741608
        %v1631 = vmul.f32 %v1622, %v1630
        %v1632 = vadd.f32 %v1631, 1.1283791
        %v1633 = vmul.f32 %v1289, %v1632
        %v1634 = vmul.f32 %v1622, 3.8918573e-05
        %v1635 = vadd.f32 %v1634, 0.001143296
        %v1636 = vmul.f32 %v1622, %v1635
        %v1637 = vadd.f32 %v1636, 0.014752088
        %v1638 = vmul.f32 %v1622, %v1637
        %v1639 = vadd.f32 %v1638, 0.112945676
        %v1640 = vmul.f32 %v1622, %v1639
        %v1641 = vadd.f32 %v1640, 0.4994258
        %v1642 = vmul.f32 %v1622, %v1641
        %v1643 = vadd.f32 %v1642, 1.0
        %v1644 = vrcp.pop %v1643
        %v1645 = vmul.f32 %v1643, %v1644
        %v1646 = vsub.f32 1.0, %v1645
        %v1647 = vmul.f32 %v1644, %v1646
        %v1648 = vadd.f32 %v1644, %v1647
        %vm1649 = vweird.f32 %v1643
        %vm1650 = vweird.f32 %v1644
        %vm1651 = vmor %vm1649, %vm1650
        %v1652 = vsel %vm1651, %v1644, %v1648
        %v1653 = vand.u32 2147483647, %v1643
        %vm1654 = vcmp.eq.f32.partialorder %v1653, 8.507059e+37
        %v1655 = vand.u32 %v1643, 2147483648
        %v1656 = vor.u32 1.1754944e-38, %v1655
        %v1657 = vsel %vm1654, %v1656, %v1652
        %v1658 = vmul.f32 %v1633, %v1657
        %v1659 = vmin.f32 %v1658, 1.0
        %v1660 = vmax.f32 %v1659, -1.0
        %v1661 = vmul.f32 %v1290, %v1290
        %v1662 = vmin.f32 16.0, %v1661
        %v1663 = vmul.f32 %v1662, 2.1237322e-06
        %v1664 = vadd.f32 %v1663, 0.00028619796
        %v1665 = vmul.f32 %v1662, %v1664
        %v1666 = vadd.f32 %v1665, 0.0036580483
        %v1667 = vmul.f32 %v1662, %v1666
        %v1668 = vadd.f32 %v1667, 0.05243302
        %v1669 = vmul.f32 %v1662, %v1668
        %v1670 = vadd.f32 %v1669, 0.18741608
        %v1671 = vmul.f32 %v1662, %v1670
        %v1672 = vadd.f32 %v1671, 1.1283791
        %v1673 = vmul.f32 %v1290, %v1672
        %v1674 = vmul.f32 %v1662, 3.8918573e-05
        %v1675 = vadd.f32 %v1674, 0.001143296
        %v1676 = vmul.f32 %v1662, %v1675
        %v1677 = vadd.f32 %v1676, 0.014752088
        %v1678 = vmul.f32 %v1662, %v1677
        %v1679 = vadd.f32 %v1678, 0.112945676
        %v1680 = vmul.f32 %v1662, %v1679
        %v1681 = vadd.f32 %v1680, 0.4994258
        %v1682 = vmul.f32 %v1662, %v1681
        %v1683 = vadd.f32 %v1682, 1.0
        %v1684 = vrcp.pop %v1683
        %v1685 = vmul.f32 %v1683, %v1684
        %v1686 = vsub.f32 1.0, %v1685
        %v1687 = vmul.f32 %v1684, %v1686
        %v1688 = vadd.f32 %v1684, %v1687
        %vm1689 = vweird.f32 %v1683
        %vm1690 = vweird.f32 %v1684
        %vm1691 = vmor %vm1689, %vm1690
        %v1692 = vsel %vm1691, %v1684, %v1688
        %v1693 = vand.u32 2147483647, %v1683
        %vm1694 = vcmp.eq.f32.partialorder %v1693, 8.507059e+37
        %v1695 = vand.u32 %v1683, 2147483648
        %v1696 = vor.u32 1.1754944e-38, %v1695
        %v1697 = vsel %vm1694, %v1696, %v1692
        %v1698 = vmul.f32 %v1673, %v1697
        %v1699 = vmin.f32 %v1698, 1.0
        %v1700 = vmax.f32 %v1699, -1.0
        %v1701 = vmul.f32 %v1291, %v1291
        %v1702 = vmin.f32 16.0, %v1701
        %v1703 = vmul.f32 %v1702, 2.1237322e-06
        %v1704 = vadd.f32 %v1703, 0.00028619796
        %v1705 = vmul.f32 %v1702, %v1704
        %v1706 = vadd.f32 %v1705, 0.0036580483
        %v1707 = vmul.f32 %v1702, %v1706
        %v1708 = vadd.f32 %v1707, 0.05243302
        %v1709 = vmul.f32 %v1702, %v1708
        %v1710 = vadd.f32 %v1709, 0.18741608
        %v1711 = vmul.f32 %v1702, %v1710
        %v1712 = vadd.f32 %v1711, 1.1283791
        %v1713 = vmul.f32 %v1291, %v1712
        %v1714 = vmul.f32 %v1702, 3.8918573e-05
        %v1715 = vadd.f32 %v1714, 0.001143296
        %v1716 = vmul.f32 %v1702, %v1715
        %v1717 = vadd.f32 %v1716, 0.014752088
        %v1718 = vmul.f32 %v1702, %v1717
        %v1719 = vadd.f32 %v1718, 0.112945676
        %v1720 = vmul.f32 %v1702, %v1719
        %v1721 = vadd.f32 %v1720, 0.4994258
        %v1722 = vmul.f32 %v1702, %v1721
        %v1723 = vadd.f32 %v1722, 1.0
        %v1724 = vrcp.pop %v1723
        %v1725 = vmul.f32 %v1723, %v1724
        %v1726 = vsub.f32 1.0, %v1725
        %v1727 = vmul.f32 %v1724, %v1726
        %v1728 = vadd.f32 %v1724, %v1727
        %vm1729 = vweird.f32 %v1723
        %vm1730 = vweird.f32 %v1724
        %vm1731 = vmor %vm1729, %vm1730
        %v1732 = vsel %vm1731, %v1724, %v1728
        %v1733 = vand.u32 2147483647, %v1723
        %vm1734 = vcmp.eq.f32.partialorder %v1733, 8.507059e+37
        %v1735 = vand.u32 %v1723, 2147483648
        %v1736 = vor.u32 1.1754944e-38, %v1735
        %v1737 = vsel %vm1734, %v1736, %v1732
        %v1738 = vmul.f32 %v1713, %v1737
        %v1739 = vmin.f32 %v1738, 1.0
        %v1740 = vmax.f32 %v1739, -1.0
        %v1741 = vmul.f32 %v1292, %v1292
        %v1742 = vmin.f32 16.0, %v1741
        %v1743 = vmul.f32 %v1742, 2.1237322e-06
        %v1744 = vadd.f32 %v1743, 0.00028619796
        %v1745 = vmul.f32 %v1742, %v1744
        %v1746 = vadd.f32 %v1745, 0.0036580483
        %v1747 = vmul.f32 %v1742, %v1746
        %v1748 = vadd.f32 %v1747, 0.05243302
        %v1749 = vmul.f32 %v1742, %v1748
        %v1750 = vadd.f32 %v1749, 0.18741608
        %v1751 = vmul.f32 %v1742, %v1750
        %v1752 = vadd.f32 %v1751, 1.1283791
        %v1753 = vmul.f32 %v1292, %v1752
        %v1754 = vmul.f32 %v1742, 3.8918573e-05
        %v1755 = vadd.f32 %v1754, 0.001143296
        %v1756 = vmul.f32 %v1742, %v1755
        %v1757 = vadd.f32 %v1756, 0.014752088
        %v1758 = vmul.f32 %v1742, %v1757
        %v1759 = vadd.f32 %v1758, 0.112945676
        %v1760 = vmul.f32 %v1742, %v1759
        %v1761 = vadd.f32 %v1760, 0.4994258
        %v1762 = vmul.f32 %v1742, %v1761
        %v1763 = vadd.f32 %v1762, 1.0
        %v1764 = vrcp.pop %v1763
        %v1765 = vmul.f32 %v1763, %v1764
        %v1766 = vsub.f32 1.0, %v1765
        %v1767 = vmul.f32 %v1764, %v1766
        %v1768 = vadd.f32 %v1764, %v1767
        %vm1769 = vweird.f32 %v1763
        %vm1770 = vweird.f32 %v1764
        %vm1771 = vmor %vm1769, %vm1770
        %v1772 = vsel %vm1771, %v1764, %v1768
        %v1773 = vand.u32 2147483647, %v1763
        %vm1774 = vcmp.eq.f32.partialorder %v1773, 8.507059e+37
        %v1775 = vand.u32 %v1763, 2147483648
        %v1776 = vor.u32 1.1754944e-38, %v1775
        %v1777 = vsel %vm1774, %v1776, %v1772
        %v1778 = vmul.f32 %v1753, %v1777
        %v1779 = vmin.f32 %v1778, 1.0
        %v1780 = vmax.f32 %v1779, -1.0
        %v1781 = vmul.f32 %v1293, %v1293
        %v1782 = vmin.f32 16.0, %v1781
        %v1783 = vmul.f32 %v1782, 2.1237322e-06
        %v1784 = vadd.f32 %v1783, 0.00028619796
        %v1785 = vmul.f32 %v1782, %v1784
        %v1786 = vadd.f32 %v1785, 0.0036580483
        %v1787 = vmul.f32 %v1782, %v1786
        %v1788 = vadd.f32 %v1787, 0.05243302
        %v1789 = vmul.f32 %v1782, %v1788
        %v1790 = vadd.f32 %v1789, 0.18741608
        %v1791 = vmul.f32 %v1782, %v1790
        %v1792 = vadd.f32 %v1791, 1.1283791
        %v1793 = vmul.f32 %v1293, %v1792
        %v1794 = vmul.f32 %v1782, 3.8918573e-05
        %v1795 = vadd.f32 %v1794, 0.001143296
        %v1796 = vmul.f32 %v1782, %v1795
        %v1797 = vadd.f32 %v1796, 0.014752088
        %v1798 = vmul.f32 %v1782, %v1797
        %v1799 = vadd.f32 %v1798, 0.112945676
        %v1800 = vmul.f32 %v1782, %v1799
        %v1801 = vadd.f32 %v1800, 0.4994258
        %v1802 = vmul.f32 %v1782, %v1801
        %v1803 = vadd.f32 %v1802, 1.0
        %v1804 = vrcp.pop %v1803
        %v1805 = vmul.f32 %v1803, %v1804
        %v1806 = vsub.f32 1.0, %v1805
        %v1807 = vmul.f32 %v1804, %v1806
        %v1808 = vadd.f32 %v1804, %v1807
        %vm1809 = vweird.f32 %v1803
        %vm1810 = vweird.f32 %v1804
        %vm1811 = vmor %vm1809, %vm1810
        %v1812 = vsel %vm1811, %v1804, %v1808
        %v1813 = vand.u32 2147483647, %v1803
        %vm1814 = vcmp.eq.f32.partialorder %v1813, 8.507059e+37
        %v1815 = vand.u32 %v1803, 2147483648
        %v1816 = vor.u32 1.1754944e-38, %v1815
        %v1817 = vsel %vm1814, %v1816, %v1812
        %v1818 = vmul.f32 %v1793, %v1817
        %v1819 = vmin.f32 %v1818, 1.0
        %v1820 = vmax.f32 %v1819, -1.0
        %v1821 = vmul.f32 %v1294, %v1294
        %v1822 = vmin.f32 16.0, %v1821
        %v1823 = vmul.f32 %v1822, 2.1237322e-06
        %v1824 = vadd.f32 %v1823, 0.00028619796
        %v1825 = vmul.f32 %v1822, %v1824
        %v1826 = vadd.f32 %v1825, 0.0036580483
        %v1827 = vmul.f32 %v1822, %v1826
        %v1828 = vadd.f32 %v1827, 0.05243302
        %v1829 = vmul.f32 %v1822, %v1828
        %v1830 = vadd.f32 %v1829, 0.18741608
        %v1831 = vmul.f32 %v1822, %v1830
        %v1832 = vadd.f32 %v1831, 1.1283791
        %v1833 = vmul.f32 %v1294, %v1832
        %v1834 = vmul.f32 %v1822, 3.8918573e-05
        %v1835 = vadd.f32 %v1834, 0.001143296
        %v1836 = vmul.f32 %v1822, %v1835
        %v1837 = vadd.f32 %v1836, 0.014752088
        %v1838 = vmul.f32 %v1822, %v1837
        %v1839 = vadd.f32 %v1838, 0.112945676
        %v1840 = vmul.f32 %v1822, %v1839
        %v1841 = vadd.f32 %v1840, 0.4994258
        %v1842 = vmul.f32 %v1822, %v1841
        %v1843 = vadd.f32 %v1842, 1.0
        %v1844 = vrcp.pop %v1843
        %v1845 = vmul.f32 %v1843, %v1844
        %v1846 = vsub.f32 1.0, %v1845
        %v1847 = vmul.f32 %v1844, %v1846
        %v1848 = vadd.f32 %v1844, %v1847
        %vm1849 = vweird.f32 %v1843
        %vm1850 = vweird.f32 %v1844
        %vm1851 = vmor %vm1849, %vm1850
        %v1852 = vsel %vm1851, %v1844, %v1848
        %v1853 = vand.u32 2147483647, %v1843
        %vm1854 = vcmp.eq.f32.partialorder %v1853, 8.507059e+37
        %v1855 = vand.u32 %v1843, 2147483648
        %v1856 = vor.u32 1.1754944e-38, %v1855
        %v1857 = vsel %vm1854, %v1856, %v1852
        %v1858 = vmul.f32 %v1833, %v1857
        %v1859 = vmin.f32 %v1858, 1.0
        %v1860 = vmax.f32 %v1859, -1.0
        %v1861 = vmul.f32 %v1295, %v1295
        %v1862 = vmin.f32 16.0, %v1861
        %v1863 = vmul.f32 %v1862, 2.1237322e-06
        %v1864 = vadd.f32 %v1863, 0.00028619796
        %v1865 = vmul.f32 %v1862, %v1864
        %v1866 = vadd.f32 %v1865, 0.0036580483
        %v1867 = vmul.f32 %v1862, %v1866
        %v1868 = vadd.f32 %v1867, 0.05243302
        %v1869 = vmul.f32 %v1862, %v1868
        %v1870 = vadd.f32 %v1869, 0.18741608
        %v1871 = vmul.f32 %v1862, %v1870
        %v1872 = vadd.f32 %v1871, 1.1283791
        %v1873 = vmul.f32 %v1295, %v1872
        %v1874 = vmul.f32 %v1862, 3.8918573e-05
        %v1875 = vadd.f32 %v1874, 0.001143296
        %v1876 = vmul.f32 %v1862, %v1875
        %v1877 = vadd.f32 %v1876, 0.014752088
        %v1878 = vmul.f32 %v1862, %v1877
        %v1879 = vadd.f32 %v1878, 0.112945676
        %v1880 = vmul.f32 %v1862, %v1879
        %v1881 = vadd.f32 %v1880, 0.4994258
        %v1882 = vmul.f32 %v1862, %v1881
        %v1883 = vadd.f32 %v1882, 1.0
        %v1884 = vrcp.pop %v1883
        %v1885 = vmul.f32 %v1883, %v1884
        %v1886 = vsub.f32 1.0, %v1885
        %v1887 = vmul.f32 %v1884, %v1886
        %v1888 = vadd.f32 %v1884, %v1887
        %vm1889 = vweird.f32 %v1883
        %vm1890 = vweird.f32 %v1884
        %vm1891 = vmor %vm1889, %vm1890
        %v1892 = vsel %vm1891, %v1884, %v1888
        %v1893 = vand.u32 2147483647, %v1883
        %vm1894 = vcmp.eq.f32.partialorder %v1893, 8.507059e+37
        %v1895 = vand.u32 %v1883, 2147483648
        %v1896 = vor.u32 1.1754944e-38, %v1895
        %v1897 = vsel %vm1894, %v1896, %v1892
        %v1898 = vmul.f32 %v1873, %v1897
        %v1899 = vmin.f32 %v1898, 1.0
        %v1900 = vmax.f32 %v1899, -1.0
        %v1901 = vmul.f32 %v1296, %v1296
        %v1902 = vmin.f32 16.0, %v1901
        %v1903 = vmul.f32 %v1902, 2.1237322e-06
        %v1904 = vadd.f32 %v1903, 0.00028619796
        %v1905 = vmul.f32 %v1902, %v1904
        %v1906 = vadd.f32 %v1905, 0.0036580483
        %v1907 = vmul.f32 %v1902, %v1906
        %v1908 = vadd.f32 %v1907, 0.05243302
        %v1909 = vmul.f32 %v1902, %v1908
        %v1910 = vadd.f32 %v1909, 0.18741608
        %v1911 = vmul.f32 %v1902, %v1910
        %v1912 = vadd.f32 %v1911, 1.1283791
        %v1913 = vmul.f32 %v1296, %v1912
        %v1914 = vmul.f32 %v1902, 3.8918573e-05
        %v1915 = vadd.f32 %v1914, 0.001143296
        %v1916 = vmul.f32 %v1902, %v1915
        %v1917 = vadd.f32 %v1916, 0.014752088
        %v1918 = vmul.f32 %v1902, %v1917
        %v1919 = vadd.f32 %v1918, 0.112945676
        %v1920 = vmul.f32 %v1902, %v1919
        %v1921 = vadd.f32 %v1920, 0.4994258
        %v1922 = vmul.f32 %v1902, %v1921
        %v1923 = vadd.f32 %v1922, 1.0
        %v1924 = vrcp.pop %v1923
        %v1925 = vmul.f32 %v1923, %v1924
        %v1926 = vsub.f32 1.0, %v1925
        %v1927 = vmul.f32 %v1924, %v1926
        %v1928 = vadd.f32 %v1924, %v1927
        %vm1929 = vweird.f32 %v1923
        %vm1930 = vweird.f32 %v1924
        %vm1931 = vmor %vm1929, %vm1930
        %v1932 = vsel %vm1931, %v1924, %v1928
        %v1933 = vand.u32 2147483647, %v1923
        %vm1934 = vcmp.eq.f32.partialorder %v1933, 8.507059e+37
        %v1935 = vand.u32 %v1923, 2147483648
        %v1936 = vor.u32 1.1754944e-38, %v1935
        %v1937 = vsel %vm1934, %v1936, %v1932
        %v1938 = vmul.f32 %v1913, %v1937
        %v1939 = vmin.f32 %v1938, 1.0
        %v1940 = vmax.f32 %v1939, -1.0
        %v1941 = vmul.f32 %v1297, %v1297
        %v1942 = vmin.f32 16.0, %v1941
        %v1943 = vmul.f32 %v1942, 2.1237322e-06
        %v1944 = vadd.f32 %v1943, 0.00028619796
        %v1945 = vmul.f32 %v1942, %v1944
        %v1946 = vadd.f32 %v1945, 0.0036580483
        %v1947 = vmul.f32 %v1942, %v1946
        %v1948 = vadd.f32 %v1947, 0.05243302
        %v1949 = vmul.f32 %v1942, %v1948
        %v1950 = vadd.f32 %v1949, 0.18741608
        %v1951 = vmul.f32 %v1942, %v1950
        %v1952 = vadd.f32 %v1951, 1.1283791
        %v1953 = vmul.f32 %v1297, %v1952
        %v1954 = vmul.f32 %v1942, 3.8918573e-05
        %v1955 = vadd.f32 %v1954, 0.001143296
        %v1956 = vmul.f32 %v1942, %v1955
        %v1957 = vadd.f32 %v1956, 0.014752088
        %v1958 = vmul.f32 %v1942, %v1957
        %v1959 = vadd.f32 %v1958, 0.112945676
        %v1960 = vmul.f32 %v1942, %v1959
        %v1961 = vadd.f32 %v1960, 0.4994258
        %v1962 = vmul.f32 %v1942, %v1961
        %v1963 = vadd.f32 %v1962, 1.0
        %v1964 = vrcp.pop %v1963
        %v1965 = vmul.f32 %v1963, %v1964
        %v1966 = vsub.f32 1.0, %v1965
        %v1967 = vmul.f32 %v1964, %v1966
        %v1968 = vadd.f32 %v1964, %v1967
        %vm1969 = vweird.f32 %v1963
        %vm1970 = vweird.f32 %v1964
        %vm1971 = vmor %vm1969, %vm1970
        %v1972 = vsel %vm1971, %v1964, %v1968
        %v1973 = vand.u32 2147483647, %v1963
        %vm1974 = vcmp.eq.f32.partialorder %v1973, 8.507059e+37
        %v1975 = vand.u32 %v1963, 2147483648
        %v1976 = vor.u32 1.1754944e-38, %v1975
        %v1977 = vsel %vm1974, %v1976, %v1972
        %v1978 = vmul.f32 %v1953, %v1977
        %v1979 = vmin.f32 %v1978, 1.0
        %v1980 = vmax.f32 %v1979, -1.0
        %v1981 = vmul.f32 %v1298, %v1298
        %v1982 = vmin.f32 16.0, %v1981
        %v1983 = vmul.f32 %v1982, 2.1237322e-06
        %v1984 = vadd.f32 %v1983, 0.00028619796
        %v1985 = vmul.f32 %v1982, %v1984
        %v1986 = vadd.f32 %v1985, 0.0036580483
        %v1987 = vmul.f32 %v1982, %v1986
        %v1988 = vadd.f32 %v1987, 0.05243302
        %v1989 = vmul.f32 %v1982, %v1988
        %v1990 = vadd.f32 %v1989, 0.18741608
        %v1991 = vmul.f32 %v1982, %v1990
        %v1992 = vadd.f32 %v1991, 1.1283791
        %v1993 = vmul.f32 %v1298, %v1992
        %v1994 = vmul.f32 %v1982, 3.8918573e-05
        %v1995 = vadd.f32 %v1994, 0.001143296
        %v1996 = vmul.f32 %v1982, %v1995
        %v1997 = vadd.f32 %v1996, 0.014752088
        %v1998 = vmul.f32 %v1982, %v1997
        %v1999 = vadd.f32 %v1998, 0.112945676
        %v2000 = vmul.f32 %v1982, %v1999
        %v2001 = vadd.f32 %v2000, 0.4994258
        %v2002 = vmul.f32 %v1982, %v2001
        %v2003 = vadd.f32 %v2002, 1.0
        %v2004 = vrcp.pop %v2003
        %v2005 = vmul.f32 %v2003, %v2004
        %v2006 = vsub.f32 1.0, %v2005
        %v2007 = vmul.f32 %v2004, %v2006
        %v2008 = vadd.f32 %v2004, %v2007
        %vm2009 = vweird.f32 %v2003
        %vm2010 = vweird.f32 %v2004
        %vm2011 = vmor %vm2009, %vm2010
        %v2012 = vsel %vm2011, %v2004, %v2008
        %v2013 = vand.u32 2147483647, %v2003
        %vm2014 = vcmp.eq.f32.partialorder %v2013, 8.507059e+37
        %v2015 = vand.u32 %v2003, 2147483648
        %v2016 = vor.u32 1.1754944e-38, %v2015
        %v2017 = vsel %vm2014, %v2016, %v2012
        %v2018 = vmul.f32 %v1993, %v2017
        %v2019 = vmin.f32 %v2018, 1.0
        %v2020 = vmax.f32 %v2019, -1.0
        %v2021 = vmul.f32 %v1299, %v1299
        %v2022 = vmin.f32 16.0, %v2021
        %v2023 = vmul.f32 %v2022, 2.1237322e-06
        %v2024 = vadd.f32 %v2023, 0.00028619796
        %v2025 = vmul.f32 %v2022, %v2024
        %v2026 = vadd.f32 %v2025, 0.0036580483
        %v2027 = vmul.f32 %v2022, %v2026
        %v2028 = vadd.f32 %v2027, 0.05243302
        %v2029 = vmul.f32 %v2022, %v2028
        %v2030 = vadd.f32 %v2029, 0.18741608
        %v2031 = vmul.f32 %v2022, %v2030
        %v2032 = vadd.f32 %v2031, 1.1283791
        %v2033 = vmul.f32 %v1299, %v2032
        %v2034 = vmul.f32 %v2022, 3.8918573e-05
        %v2035 = vadd.f32 %v2034, 0.001143296
        %v2036 = vmul.f32 %v2022, %v2035
        %v2037 = vadd.f32 %v2036, 0.014752088
        %v2038 = vmul.f32 %v2022, %v2037
        %v2039 = vadd.f32 %v2038, 0.112945676
        %v2040 = vmul.f32 %v2022, %v2039
        %v2041 = vadd.f32 %v2040, 0.4994258
        %v2042 = vmul.f32 %v2022, %v2041
        %v2043 = vadd.f32 %v2042, 1.0
        %v2044 = vrcp.pop %v2043
        %v2045 = vmul.f32 %v2043, %v2044
        %v2046 = vsub.f32 1.0, %v2045
        %v2047 = vmul.f32 %v2044, %v2046
        %v2048 = vadd.f32 %v2044, %v2047
        %vm2049 = vweird.f32 %v2043
        %vm2050 = vweird.f32 %v2044
        %vm2051 = vmor %vm2049, %vm2050
        %v2052 = vsel %vm2051, %v2044, %v2048
        %v2053 = vand.u32 2147483647, %v2043
        %vm2054 = vcmp.eq.f32.partialorder %v2053, 8.507059e+37
        %v2055 = vand.u32 %v2043, 2147483648
        %v2056 = vor.u32 1.1754944e-38, %v2055
        %v2057 = vsel %vm2054, %v2056, %v2052
        %v2058 = vmul.f32 %v2033, %v2057
        %v2059 = vmin.f32 %v2058, 1.0
        %v2060 = vmax.f32 %v2059, -1.0
        %v2061 = vmul.f32 %v1300, %v1300
        %v2062 = vmin.f32 16.0, %v2061
        %v2063 = vmul.f32 %v2062, 2.1237322e-06
        %v2064 = vadd.f32 %v2063, 0.00028619796
        %v2065 = vmul.f32 %v2062, %v2064
        %v2066 = vadd.f32 %v2065, 0.0036580483
        %v2067 = vmul.f32 %v2062, %v2066
        %v2068 = vadd.f32 %v2067, 0.05243302
        %v2069 = vmul.f32 %v2062, %v2068
        %v2070 = vadd.f32 %v2069, 0.18741608
        %v2071 = vmul.f32 %v2062, %v2070
        %v2072 = vadd.f32 %v2071, 1.1283791
        %v2073 = vmul.f32 %v1300, %v2072
        %v2074 = vmul.f32 %v2062, 3.8918573e-05
        %v2075 = vadd.f32 %v2074, 0.001143296
        %v2076 = vmul.f32 %v2062, %v2075
        %v2077 = vadd.f32 %v2076, 0.014752088
        %v2078 = vmul.f32 %v2062, %v2077
        %v2079 = vadd.f32 %v2078, 0.112945676
        %v2080 = vmul.f32 %v2062, %v2079
        %v2081 = vadd.f32 %v2080, 0.4994258
        %v2082 = vmul.f32 %v2062, %v2081
        %v2083 = vadd.f32 %v2082, 1.0
        %v2084 = vrcp.pop %v2083
        %v2085 = vmul.f32 %v2083, %v2084
        %v2086 = vsub.f32 1.0, %v2085
        %v2087 = vmul.f32 %v2084, %v2086
        %v2088 = vadd.f32 %v2084, %v2087
        %vm2089 = vweird.f32 %v2083
        %vm2090 = vweird.f32 %v2084
        %vm2091 = vmor %vm2089, %vm2090
        %v2092 = vsel %vm2091, %v2084, %v2088
        %v2093 = vand.u32 2147483647, %v2083
        %vm2094 = vcmp.eq.f32.partialorder %v2093, 8.507059e+37
        %v2095 = vand.u32 %v2083, 2147483648
        %v2096 = vor.u32 1.1754944e-38, %v2095
        %v2097 = vsel %vm2094, %v2096, %v2092
        %v2098 = vmul.f32 %v2073, %v2097
        %v2099 = vmin.f32 %v2098, 1.0
        %v2100 = vmax.f32 %v2099, -1.0
        %v2101 = vadd.f32 %v1340, 1.0
        %v2102 = vadd.f32 %v1380, 1.0
        %v2103 = vadd.f32 %v1420, 1.0
        %v2104 = vadd.f32 %v1460, 1.0
        %v2105 = vadd.f32 %v1500, 1.0
        %v2106 = vadd.f32 %v1540, 1.0
        %v2107 = vadd.f32 %v1580, 1.0
        %v2108 = vadd.f32 %v1620, 1.0
        %v2109 = vadd.f32 %v1660, 1.0
        %v2110 = vadd.f32 %v1700, 1.0
        %v2111 = vadd.f32 %v1740, 1.0
        %v2112 = vadd.f32 %v1780, 1.0
        %v2113 = vadd.f32 %v1820, 1.0
        %v2114 = vadd.f32 %v1860, 1.0
        %v2115 = vadd.f32 %v1900, 1.0
        %v2116 = vadd.f32 %v1940, 1.0
        %v2117 = vadd.f32 %v1980, 1.0
        %v2118 = vadd.f32 %v2020, 1.0
        %v2119 = vadd.f32 %v2060, 1.0
        %v2120 = vadd.f32 %v2100, 1.0
        %v2121 = vmul.f32 %v1254, %v2101
        %v2122 = vmul.f32 %v1255, %v2102
        %v2123 = vmul.f32 %v1256, %v2103
        %v2124 = vmul.f32 %v1257, %v2104
        %v2125 = vmul.f32 %v1258, %v2105
        %v2126 = vmul.f32 %v1259, %v2106
        %v2127 = vmul.f32 %v1260, %v2107
        %v2128 = vmul.f32 %v1261, %v2108
        %v2129 = vmul.f32 %v1262, %v2109
        %v2130 = vmul.f32 %v1263, %v2110
        %v2131 = vmul.f32 %v1264, %v2111
        %v2132 = vmul.f32 %v1265, %v2112
        %v2133 = vmul.f32 %v1266, %v2113
        %v2134 = vmul.f32 %v1267, %v2114
        %v2135 = vmul.f32 %v1268, %v2115
        %v2136 = vmul.f32 %v1269, %v2116
        %v2137 = vmul.f32 %v1270, %v2117
        %v2138 = vmul.f32 %v1271, %v2118
        %v2139 = vmul.f32 %v1272, %v2119
        %v2140 = vmul.f32 %v1273, %v2120
        %vm2141 = vcmask 523265
        %v2142 = vsel %vm2141, %v415, 0.0
        %2143 = vadd.xlane.f32.xlu0 %v2142
        %v2144 = vpop.xlane.xlu0 %2143
        %vm2145 = vcmask 518144
        %v2146 = vsel %vm2145, %v416, 0.0
        %2147 = vadd.xlane.f32.xlu0 %v2146
        %v2148 = vpop.xlane.xlu0 %2147
        %v2149 = vsel %vm2141, %v417, 0.0
        %2150 = vadd.xlane.f32.xlu0 %v2149
        %v2151 = vpop.xlane.xlu0 %2150
        %v2152 = vsel %vm2145, %v418, 0.0
        %2153 = vadd.xlane.f32.xlu0 %v2152
        %v2154 = vpop.xlane.xlu0 %2153
        %v2155 = vsel %vm2141, %v419, 0.0
        %2156 = vadd.xlane.f32.xlu0 %v2155
        %v2157 = vpop.xlane.xlu0 %2156
        %v2158 = vsel %vm2145, %v420, 0.0
        %2159 = vadd.xlane.f32.xlu0 %v2158
        %v2160 = vpop.xlane.xlu0 %2159
        %v2161 = vsel %vm2141, %v421, 0.0
        %2162 = vadd.xlane.f32.xlu0 %v2161
        %v2163 = vpop.xlane.xlu0 %2162
        %v2164 = vsel %vm2145, %v422, 0.0
        %2165 = vadd.xlane.f32.xlu0 %v2164
        %v2166 = vpop.xlane.xlu0 %2165
        %v2167 = vsel %vm2141, %v423, 0.0
        %2168 = vadd.xlane.f32.xlu0 %v2167
        %v2169 = vpop.xlane.xlu0 %2168
        %v2170 = vsel %vm2145, %v424, 0.0
        %2171 = vadd.xlane.f32.xlu0 %v2170
        %v2172 = vpop.xlane.xlu0 %2171
        %v2173 = vsel %vm2141, %v425, 0.0
        %2174 = vadd.xlane.f32.xlu0 %v2173
        %v2175 = vpop.xlane.xlu0 %2174
        %v2176 = vsel %vm2145, %v426, 0.0
        %2177 = vadd.xlane.f32.xlu0 %v2176
        %v2178 = vpop.xlane.xlu0 %2177
        %v2179 = vsel %vm2141, %v427, 0.0
        %2180 = vadd.xlane.f32.xlu0 %v2179
        %v2181 = vpop.xlane.xlu0 %2180
        %v2182 = vsel %vm2145, %v428, 0.0
        %2183 = vadd.xlane.f32.xlu0 %v2182
        %v2184 = vpop.xlane.xlu0 %2183
        %v2185 = vsel %vm2141, %v429, 0.0
        %2186 = vadd.xlane.f32.xlu0 %v2185
        %v2187 = vpop.xlane.xlu0 %2186
        %v2188 = vsel %vm2145, %v430, 0.0
        %2189 = vadd.xlane.f32.xlu0 %v2188
        %v2190 = vpop.xlane.xlu0 %2189
        %v2191 = vsel %vm2141, %v431, 0.0
        %2192 = vadd.xlane.f32.xlu0 %v2191
        %v2193 = vpop.xlane.xlu0 %2192
        %v2194 = vsel %vm2145, %v432, 0.0
        %2195 = vadd.xlane.f32.xlu0 %v2194
        %v2196 = vpop.xlane.xlu0 %2195
        %v2197 = vsel %vm2141, %v433, 0.0
        %2198 = vadd.xlane.f32.xlu0 %v2197
        %v2199 = vpop.xlane.xlu0 %2198
        %v2200 = vsel %vm2145, %v434, 0.0
        %2201 = vadd.xlane.f32.xlu0 %v2200
        %v2202 = vpop.xlane.xlu0 %2201
        %v2203 = vrcp.pop 64.0
        %v2204 = vmul.f32 64.0, %v2203
        %v2205 = vsub.f32 1.0, %v2204
        %v2206 = vmul.f32 %v2203, %v2205
        %v2207 = vadd.f32 %v2203, %v2206
        %vm2208 = vweird.f32 %v2203
        %v2209 = vsel %vm2208, %v2203, %v2207
        %v2210 = vmul.f32 %v2144, %v2209
        %v2211 = vmul.f32 %v2148, %v2209
        %v2212 = vmul.f32 %v2151, %v2209
        %v2213 = vmul.f32 %v2154, %v2209
        %v2214 = vmul.f32 %v2157, %v2209
        %v2215 = vmul.f32 %v2160, %v2209
        %v2216 = vmul.f32 %v2163, %v2209
        %v2217 = vmul.f32 %v2166, %v2209
        %v2218 = vmul.f32 %v2169, %v2209
        %v2219 = vmul.f32 %v2172, %v2209
        %v2220 = vmul.f32 %v2175, %v2209
        %v2221 = vmul.f32 %v2178, %v2209
        %v2222 = vmul.f32 %v2181, %v2209
        %v2223 = vmul.f32 %v2184, %v2209
        %v2224 = vmul.f32 %v2187, %v2209
        %v2225 = vmul.f32 %v2190, %v2209
        %v2226 = vmul.f32 %v2193, %v2209
        %v2227 = vmul.f32 %v2196, %v2209
        %v2228 = vmul.f32 %v2199, %v2209
        %v2229 = vmul.f32 %v2202, %v2209
        %v2230 = vsub.f32 %v415, %v2210
        %v2231 = vsub.f32 %v416, %v2211
        %v2232 = vsub.f32 %v417, %v2212
        %v2233 = vsub.f32 %v418, %v2213
        %v2234 = vsub.f32 %v419, %v2214
        %v2235 = vsub.f32 %v420, %v2215
        %v2236 = vsub.f32 %v421, %v2216
        %v2237 = vsub.f32 %v422, %v2217
        %v2238 = vsub.f32 %v423, %v2218
        %v2239 = vsub.f32 %v424, %v2219
        %v2240 = vsub.f32 %v425, %v2220
        %v2241 = vsub.f32 %v426, %v2221
        %v2242 = vsub.f32 %v427, %v2222
        %v2243 = vsub.f32 %v428, %v2223
        %v2244 = vsub.f32 %v429, %v2224
        %v2245 = vsub.f32 %v430, %v2225
        %v2246 = vsub.f32 %v431, %v2226
        %v2247 = vsub.f32 %v432, %v2227
        %v2248 = vsub.f32 %v433, %v2228
        %v2249 = vsub.f32 %v434, %v2229
        %v2250 = vmul.f32 %v2230, %v2230
        %v2251 = vmul.f32 %v2231, %v2231
        %v2252 = vmul.f32 %v2232, %v2232
        %v2253 = vmul.f32 %v2233, %v2233
        %v2254 = vmul.f32 %v2234, %v2234
        %v2255 = vmul.f32 %v2235, %v2235
        %v2256 = vmul.f32 %v2236, %v2236
        %v2257 = vmul.f32 %v2237, %v2237
        %v2258 = vmul.f32 %v2238, %v2238
        %v2259 = vmul.f32 %v2239, %v2239
        %v2260 = vmul.f32 %v2240, %v2240
        %v2261 = vmul.f32 %v2241, %v2241
        %v2262 = vmul.f32 %v2242, %v2242
        %v2263 = vmul.f32 %v2243, %v2243
        %v2264 = vmul.f32 %v2244, %v2244
        %v2265 = vmul.f32 %v2245, %v2245
        %v2266 = vmul.f32 %v2246, %v2246
        %v2267 = vmul.f32 %v2247, %v2247
        %v2268 = vmul.f32 %v2248, %v2248
        %v2269 = vmul.f32 %v2249, %v2249
        %v2270 = vsel %vm2141, %v2250, 0.0
        %2271 = vadd.xlane.f32.xlu0 %v2270
        %v2272 = vpop.xlane.xlu0 %2271
        %v2273 = vsel %vm2145, %v2251, 0.0
        %2274 = vadd.xlane.f32.xlu0 %v2273
        %v2275 = vpop.xlane.xlu0 %2274
        %v2276 = vsel %vm2141, %v2252, 0.0
        %2277 = vadd.xlane.f32.xlu0 %v2276
        %v2278 = vpop.xlane.xlu0 %2277
        %v2279 = vsel %vm2145, %v2253, 0.0
        %2280 = vadd.xlane.f32.xlu0 %v2279
        %v2281 = vpop.xlane.xlu0 %2280
        %v2282 = vsel %vm2141, %v2254, 0.0
        %2283 = vadd.xlane.f32.xlu0 %v2282
        %v2284 = vpop.xlane.xlu0 %2283
        %v2285 = vsel %vm2145, %v2255, 0.0
        %2286 = vadd.xlane.f32.xlu0 %v2285
        %v2287 = vpop.xlane.xlu0 %2286
        %v2288 = vsel %vm2141, %v2256, 0.0
        %2289 = vadd.xlane.f32.xlu0 %v2288
        %v2290 = vpop.xlane.xlu0 %2289
        %v2291 = vsel %vm2145, %v2257, 0.0
        %2292 = vadd.xlane.f32.xlu0 %v2291
        %v2293 = vpop.xlane.xlu0 %2292
        %v2294 = vsel %vm2141, %v2258, 0.0
        %2295 = vadd.xlane.f32.xlu0 %v2294
        %v2296 = vpop.xlane.xlu0 %2295
        %v2297 = vsel %vm2145, %v2259, 0.0
        %2298 = vadd.xlane.f32.xlu0 %v2297
        %v2299 = vpop.xlane.xlu0 %2298
        %v2300 = vsel %vm2141, %v2260, 0.0
        %2301 = vadd.xlane.f32.xlu0 %v2300
        %v2302 = vpop.xlane.xlu0 %2301
        %v2303 = vsel %vm2145, %v2261, 0.0
        %2304 = vadd.xlane.f32.xlu0 %v2303
        %v2305 = vpop.xlane.xlu0 %2304
        %v2306 = vsel %vm2141, %v2262, 0.0
        %2307 = vadd.xlane.f32.xlu0 %v2306
        %v2308 = vpop.xlane.xlu0 %2307
        %v2309 = vsel %vm2145, %v2263, 0.0
        %2310 = vadd.xlane.f32.xlu0 %v2309
        %v2311 = vpop.xlane.xlu0 %2310
        %v2312 = vsel %vm2141, %v2264, 0.0
        %2313 = vadd.xlane.f32.xlu0 %v2312
        %v2314 = vpop.xlane.xlu0 %2313
        %v2315 = vsel %vm2145, %v2265, 0.0
        %2316 = vadd.xlane.f32.xlu0 %v2315
        %v2317 = vpop.xlane.xlu0 %2316
        %v2318 = vsel %vm2141, %v2266, 0.0
        %2319 = vadd.xlane.f32.xlu0 %v2318
        %v2320 = vpop.xlane.xlu0 %2319
        %v2321 = vsel %vm2145, %v2267, 0.0
        %2322 = vadd.xlane.f32.xlu0 %v2321
        %v2323 = vpop.xlane.xlu0 %2322
        %v2324 = vsel %vm2141, %v2268, 0.0
        %2325 = vadd.xlane.f32.xlu0 %v2324
        %v2326 = vpop.xlane.xlu0 %2325
        %v2327 = vsel %vm2145, %v2269, 0.0
        %2328 = vadd.xlane.f32.xlu0 %v2327
        %v2329 = vpop.xlane.xlu0 %2328
        %v2330 = vmul.f32 %v2272, %v2209
        %v2331 = vmul.f32 %v2275, %v2209
        %v2332 = vmul.f32 %v2278, %v2209
        %v2333 = vmul.f32 %v2281, %v2209
        %v2334 = vmul.f32 %v2284, %v2209
        %v2335 = vmul.f32 %v2287, %v2209
        %v2336 = vmul.f32 %v2290, %v2209
        %v2337 = vmul.f32 %v2293, %v2209
        %v2338 = vmul.f32 %v2296, %v2209
        %v2339 = vmul.f32 %v2299, %v2209
        %v2340 = vmul.f32 %v2302, %v2209
        %v2341 = vmul.f32 %v2305, %v2209
        %v2342 = vmul.f32 %v2308, %v2209
        %v2343 = vmul.f32 %v2311, %v2209
        %v2344 = vmul.f32 %v2314, %v2209
        %v2345 = vmul.f32 %v2317, %v2209
        %v2346 = vmul.f32 %v2320, %v2209
        %v2347 = vmul.f32 %v2323, %v2209
        %v2348 = vmul.f32 %v2326, %v2209
        %v2349 = vmul.f32 %v2329, %v2209
        %v2350 = vadd.f32 %v2330, 1e-05
        %v2351 = vadd.f32 %v2331, 1e-05
        %v2352 = vadd.f32 %v2332, 1e-05
        %v2353 = vadd.f32 %v2333, 1e-05
        %v2354 = vadd.f32 %v2334, 1e-05
        %v2355 = vadd.f32 %v2335, 1e-05
        %v2356 = vadd.f32 %v2336, 1e-05
        %v2357 = vadd.f32 %v2337, 1e-05
        %v2358 = vadd.f32 %v2338, 1e-05
        %v2359 = vadd.f32 %v2339, 1e-05
        %v2360 = vadd.f32 %v2340, 1e-05
        %v2361 = vadd.f32 %v2341, 1e-05
        %v2362 = vadd.f32 %v2342, 1e-05
        %v2363 = vadd.f32 %v2343, 1e-05
        %v2364 = vadd.f32 %v2344, 1e-05
        %v2365 = vadd.f32 %v2345, 1e-05
        %v2366 = vadd.f32 %v2346, 1e-05
        %v2367 = vadd.f32 %v2347, 1e-05
        %v2368 = vadd.f32 %v2348, 1e-05
        %v2369 = vadd.f32 %v2349, 1e-05
        %v2370 = vrsqrt.pop %v2350
        %v2371 = vmul.f32 %v2370, %v2350
        %v2372 = vmul.f32 %v2371, %v2370
        %v2373 = vmul.f32 0.5, %v2372
        %v2374 = vsub.f32 1.5, %v2373
        %v2375 = vmul.f32 %v2370, %v2374
        %vm2376 = vweird.f32 %v2350
        %vm2377 = vweird.f32 %v2370
        %vm2378 = vmor %vm2376, %vm2377
        %v2379 = vsel %vm2378, %v2370, %v2375
        %v2380 = vrsqrt.pop %v2351
        %v2381 = vmul.f32 %v2380, %v2351
        %v2382 = vmul.f32 %v2381, %v2380
        %v2383 = vmul.f32 0.5, %v2382
        %v2384 = vsub.f32 1.5, %v2383
        %v2385 = vmul.f32 %v2380, %v2384
        %vm2386 = vweird.f32 %v2351
        %vm2387 = vweird.f32 %v2380
        %vm2388 = vmor %vm2386, %vm2387
        %v2389 = vsel %vm2388, %v2380, %v2385
        %v2390 = vrsqrt.pop %v2352
        %v2391 = vmul.f32 %v2390, %v2352
        %v2392 = vmul.f32 %v2391, %v2390
        %v2393 = vmul.f32 0.5, %v2392
        %v2394 = vsub.f32 1.5, %v2393
        %v2395 = vmul.f32 %v2390, %v2394
        %vm2396 = vweird.f32 %v2352
        %vm2397 = vweird.f32 %v2390
        %vm2398 = vmor %vm2396, %vm2397
        %v2399 = vsel %vm2398, %v2390, %v2395
        %v2400 = vrsqrt.pop %v2353
        %v2401 = vmul.f32 %v2400, %v2353
        %v2402 = vmul.f32 %v2401, %v2400
        %v2403 = vmul.f32 0.5, %v2402
        %v2404 = vsub.f32 1.5, %v2403
        %v2405 = vmul.f32 %v2400, %v2404
        %vm2406 = vweird.f32 %v2353
        %vm2407 = vweird.f32 %v2400
        %vm2408 = vmor %vm2406, %vm2407
        %v2409 = vsel %vm2408, %v2400, %v2405
        %v2410 = vrsqrt.pop %v2354
        %v2411 = vmul.f32 %v2410, %v2354
        %v2412 = vmul.f32 %v2411, %v2410
        %v2413 = vmul.f32 0.5, %v2412
        %v2414 = vsub.f32 1.5, %v2413
        %v2415 = vmul.f32 %v2410, %v2414
        %vm2416 = vweird.f32 %v2354
        %vm2417 = vweird.f32 %v2410
        %vm2418 = vmor %vm2416, %vm2417
        %v2419 = vsel %vm2418, %v2410, %v2415
        %v2420 = vrsqrt.pop %v2355
        %v2421 = vmul.f32 %v2420, %v2355
        %v2422 = vmul.f32 %v2421, %v2420
        %v2423 = vmul.f32 0.5, %v2422
        %v2424 = vsub.f32 1.5, %v2423
        %v2425 = vmul.f32 %v2420, %v2424
        %vm2426 = vweird.f32 %v2355
        %vm2427 = vweird.f32 %v2420
        %vm2428 = vmor %vm2426, %vm2427
        %v2429 = vsel %vm2428, %v2420, %v2425
        %v2430 = vrsqrt.pop %v2356
        %v2431 = vmul.f32 %v2430, %v2356
        %v2432 = vmul.f32 %v2431, %v2430
        %v2433 = vmul.f32 0.5, %v2432
        %v2434 = vsub.f32 1.5, %v2433
        %v2435 = vmul.f32 %v2430, %v2434
        %vm2436 = vweird.f32 %v2356
        %vm2437 = vweird.f32 %v2430
        %vm2438 = vmor %vm2436, %vm2437
        %v2439 = vsel %vm2438, %v2430, %v2435
        %v2440 = vrsqrt.pop %v2357
        %v2441 = vmul.f32 %v2440, %v2357
        %v2442 = vmul.f32 %v2441, %v2440
        %v2443 = vmul.f32 0.5, %v2442
        %v2444 = vsub.f32 1.5, %v2443
        %v2445 = vmul.f32 %v2440, %v2444
        %vm2446 = vweird.f32 %v2357
        %vm2447 = vweird.f32 %v2440
        %vm2448 = vmor %vm2446, %vm2447
        %v2449 = vsel %vm2448, %v2440, %v2445
        %v2450 = vrsqrt.pop %v2358
        %v2451 = vmul.f32 %v2450, %v2358
        %v2452 = vmul.f32 %v2451, %v2450
        %v2453 = vmul.f32 0.5, %v2452
        %v2454 = vsub.f32 1.5, %v2453
        %v2455 = vmul.f32 %v2450, %v2454
        %vm2456 = vweird.f32 %v2358
        %vm2457 = vweird.f32 %v2450
        %vm2458 = vmor %vm2456, %vm2457
        %v2459 = vsel %vm2458, %v2450, %v2455
        %v2460 = vrsqrt.pop %v2359
        %v2461 = vmul.f32 %v2460, %v2359
        %v2462 = vmul.f32 %v2461, %v2460
        %v2463 = vmul.f32 0.5, %v2462
        %v2464 = vsub.f32 1.5, %v2463
        %v2465 = vmul.f32 %v2460, %v2464
        %vm2466 = vweird.f32 %v2359
        %vm2467 = vweird.f32 %v2460
        %vm2468 = vmor %vm2466, %vm2467
        %v2469 = vsel %vm2468, %v2460, %v2465
        %v2470 = vrsqrt.pop %v2360
        %v2471 = vmul.f32 %v2470, %v2360
        %v2472 = vmul.f32 %v2471, %v2470
        %v2473 = vmul.f32 0.5, %v2472
        %v2474 = vsub.f32 1.5, %v2473
        %v2475 = vmul.f32 %v2470, %v2474
        %vm2476 = vweird.f32 %v2360
        %vm2477 = vweird.f32 %v2470
        %vm2478 = vmor %vm2476, %vm2477
        %v2479 = vsel %vm2478, %v2470, %v2475
        %v2480 = vrsqrt.pop %v2361
        %v2481 = vmul.f32 %v2480, %v2361
        %v2482 = vmul.f32 %v2481, %v2480
        %v2483 = vmul.f32 0.5, %v2482
        %v2484 = vsub.f32 1.5, %v2483
        %v2485 = vmul.f32 %v2480, %v2484
        %vm2486 = vweird.f32 %v2361
        %vm2487 = vweird.f32 %v2480
        %vm2488 = vmor %vm2486, %vm2487
        %v2489 = vsel %vm2488, %v2480, %v2485
        %v2490 = vrsqrt.pop %v2362
        %v2491 = vmul.f32 %v2490, %v2362
        %v2492 = vmul.f32 %v2491, %v2490
        %v2493 = vmul.f32 0.5, %v2492
        %v2494 = vsub.f32 1.5, %v2493
        %v2495 = vmul.f32 %v2490, %v2494
        %vm2496 = vweird.f32 %v2362
        %vm2497 = vweird.f32 %v2490
        %vm2498 = vmor %vm2496, %vm2497
        %v2499 = vsel %vm2498, %v2490, %v2495
        %v2500 = vrsqrt.pop %v2363
        %v2501 = vmul.f32 %v2500, %v2363
        %v2502 = vmul.f32 %v2501, %v2500
        %v2503 = vmul.f32 0.5, %v2502
        %v2504 = vsub.f32 1.5, %v2503
        %v2505 = vmul.f32 %v2500, %v2504
        %vm2506 = vweird.f32 %v2363
        %vm2507 = vweird.f32 %v2500
        %vm2508 = vmor %vm2506, %vm2507
        %v2509 = vsel %vm2508, %v2500, %v2505
        %v2510 = vrsqrt.pop %v2364
        %v2511 = vmul.f32 %v2510, %v2364
        %v2512 = vmul.f32 %v2511, %v2510
        %v2513 = vmul.f32 0.5, %v2512
        %v2514 = vsub.f32 1.5, %v2513
        %v2515 = vmul.f32 %v2510, %v2514
        %vm2516 = vweird.f32 %v2364
        %vm2517 = vweird.f32 %v2510
        %vm2518 = vmor %vm2516, %vm2517
        %v2519 = vsel %vm2518, %v2510, %v2515
        %v2520 = vrsqrt.pop %v2365
        %v2521 = vmul.f32 %v2520, %v2365
        %v2522 = vmul.f32 %v2521, %v2520
        %v2523 = vmul.f32 0.5, %v2522
        %v2524 = vsub.f32 1.5, %v2523
        %v2525 = vmul.f32 %v2520, %v2524
        %vm2526 = vweird.f32 %v2365
        %vm2527 = vweird.f32 %v2520
        %vm2528 = vmor %vm2526, %vm2527
        %v2529 = vsel %vm2528, %v2520, %v2525
        %v2530 = vrsqrt.pop %v2366
        %v2531 = vmul.f32 %v2530, %v2366
        %v2532 = vmul.f32 %v2531, %v2530
        %v2533 = vmul.f32 0.5, %v2532
        %v2534 = vsub.f32 1.5, %v2533
        %v2535 = vmul.f32 %v2530, %v2534
        %vm2536 = vweird.f32 %v2366
        %vm2537 = vweird.f32 %v2530
        %vm2538 = vmor %vm2536, %vm2537
        %v2539 = vsel %vm2538, %v2530, %v2535
        %v2540 = vrsqrt.pop %v2367
        %v2541 = vmul.f32 %v2540, %v2367
        %v2542 = vmul.f32 %v2541, %v2540
        %v2543 = vmul.f32 0.5, %v2542
        %v2544 = vsub.f32 1.5, %v2543
        %v2545 = vmul.f32 %v2540, %v2544
        %vm2546 = vweird.f32 %v2367
        %vm2547 = vweird.f32 %v2540
        %vm2548 = vmor %vm2546, %vm2547
        %v2549 = vsel %vm2548, %v2540, %v2545
        %v2550 = vrsqrt.pop %v2368
        %v2551 = vmul.f32 %v2550, %v2368
        %v2552 = vmul.f32 %v2551, %v2550
        %v2553 = vmul.f32 0.5, %v2552
        %v2554 = vsub.f32 1.5, %v2553
        %v2555 = vmul.f32 %v2550, %v2554
        %vm2556 = vweird.f32 %v2368
        %vm2557 = vweird.f32 %v2550
        %vm2558 = vmor %vm2556, %vm2557
        %v2559 = vsel %vm2558, %v2550, %v2555
        %v2560 = vrsqrt.pop %v2369
        %v2561 = vmul.f32 %v2560, %v2369
        %v2562 = vmul.f32 %v2561, %v2560
        %v2563 = vmul.f32 0.5, %v2562
        %v2564 = vsub.f32 1.5, %v2563
        %v2565 = vmul.f32 %v2560, %v2564
        %vm2566 = vweird.f32 %v2369
        %vm2567 = vweird.f32 %v2560
        %vm2568 = vmor %vm2566, %vm2567
        %v2569 = vsel %vm2568, %v2560, %v2565
        %v2570 = vmul.f32 %v2230, %v2379
        %v2571 = vmul.f32 %v2231, %v2389
        %v2572 = vmul.f32 %v2232, %v2399
        %v2573 = vmul.f32 %v2233, %v2409
        %v2574 = vmul.f32 %v2234, %v2419
        %v2575 = vmul.f32 %v2235, %v2429
        %v2576 = vmul.f32 %v2236, %v2439
        %v2577 = vmul.f32 %v2237, %v2449
        %v2578 = vmul.f32 %v2238, %v2459
        %v2579 = vmul.f32 %v2239, %v2469
        %v2580 = vmul.f32 %v2240, %v2479
        %v2581 = vmul.f32 %v2241, %v2489
        %v2582 = vmul.f32 %v2242, %v2499
        %v2583 = vmul.f32 %v2243, %v2509
        %v2584 = vmul.f32 %v2244, %v2519
        %v2585 = vmul.f32 %v2245, %v2529
        %v2586 = vmul.f32 %v2246, %v2539
        %v2587 = vmul.f32 %v2247, %v2549
        %v2588 = vmul.f32 %v2248, %v2559
        %v2589 = vmul.f32 %v2249, %v2569
        %v2590 = vld [vmem:[%s3] sm:$0x1]
        %v2592 = vperm.slane %v2590, 0
        %v2594 = vmul.f32 %v2570, %v2592
        %v2595 = vmul.f32 %v2571, %v2592
        %v2596 = vmul.f32 %v2572, %v2592
        %v2597 = vmul.f32 %v2573, %v2592
        %v2598 = vmul.f32 %v2574, %v2592
        %v2599 = vmul.f32 %v2575, %v2592
        %v2600 = vmul.f32 %v2576, %v2592
        %v2601 = vmul.f32 %v2577, %v2592
        %v2602 = vmul.f32 %v2578, %v2592
        %v2603 = vmul.f32 %v2579, %v2592
        %v2604 = vmul.f32 %v2580, %v2592
        %v2605 = vmul.f32 %v2581, %v2592
        %v2606 = vmul.f32 %v2582, %v2592
        %v2607 = vmul.f32 %v2583, %v2592
        %v2608 = vmul.f32 %v2584, %v2592
        %v2609 = vmul.f32 %v2585, %v2592
        %v2610 = vmul.f32 %v2586, %v2592
        %v2611 = vmul.f32 %v2587, %v2592
        %v2612 = vmul.f32 %v2588, %v2592
        %v2613 = vmul.f32 %v2589, %v2592
        %v2614 = vld [vmem:[%s4] sm:$0x1]
        %v2616 = vperm.slane %v2614, 0
        %v2618 = vadd.f32 %v2594, %v2616
        %v2619 = vadd.f32 %v2595, %v2616
        %v2620 = vadd.f32 %v2596, %v2616
        %v2621 = vadd.f32 %v2597, %v2616
        %v2622 = vadd.f32 %v2598, %v2616
        %v2623 = vadd.f32 %v2599, %v2616
        %v2624 = vadd.f32 %v2600, %v2616
        %v2625 = vadd.f32 %v2601, %v2616
        %v2626 = vadd.f32 %v2602, %v2616
        %v2627 = vadd.f32 %v2603, %v2616
        %v2628 = vadd.f32 %v2604, %v2616
        %v2629 = vadd.f32 %v2605, %v2616
        %v2630 = vadd.f32 %v2606, %v2616
        %v2631 = vadd.f32 %v2607, %v2616
        %v2632 = vadd.f32 %v2608, %v2616
        %v2633 = vadd.f32 %v2609, %v2616
        %v2634 = vadd.f32 %v2610, %v2616
        %v2635 = vadd.f32 %v2611, %v2616
        %v2636 = vadd.f32 %v2612, %v2616
        %v2637 = vadd.f32 %v2613, %v2616
        %vm2658 = vcmask 1040384
        %v2659 = vrot.slane %v2121, 7
        %v2660 = vrot.slane %v2122, 7
        %v2661 = vsel %vm2658, %v2659, %v2660
        %v2662 = vrot.slane %v2123, 7
        %v2663 = vrot.slane %v2124, 7
        %v2664 = vsel %vm2658, %v2662, %v2663
        %v2665 = vrot.slane %v2125, 7
        %v2666 = vrot.slane %v2126, 7
        %v2667 = vsel %vm2658, %v2665, %v2666
        %v2668 = vrot.slane %v2127, 7
        %v2669 = vrot.slane %v2128, 7
        %v2670 = vsel %vm2658, %v2668, %v2669
        %v2671 = vrot.slane %v2129, 7
        %v2672 = vrot.slane %v2130, 7
        %v2673 = vsel %vm2658, %v2671, %v2672
        %v2674 = vrot.slane %v2131, 7
        %v2675 = vrot.slane %v2132, 7
        %v2676 = vsel %vm2658, %v2674, %v2675
        %v2677 = vrot.slane %v2133, 7
        %v2678 = vrot.slane %v2134, 7
        %v2679 = vsel %vm2658, %v2677, %v2678
        %v2680 = vrot.slane %v2135, 7
        %v2681 = vrot.slane %v2136, 7
        %v2682 = vsel %vm2658, %v2680, %v2681
        %v2683 = vrot.slane %v2137, 7
        %v2684 = vrot.slane %v2138, 7
        %v2685 = vsel %vm2658, %v2683, %v2684
        %v2686 = vrot.slane %v2139, 7
        %v2687 = vrot.slane %v2140, 7
        %v2688 = vsel %vm2658, %v2686, %v2687
        %v2709 = vadd.f32 %v2618, %v2659
        %v2710 = vadd.f32 %v2619, %v2661
        %v2711 = vadd.f32 %v2620, %v2662
        %v2712 = vadd.f32 %v2621, %v2664
        %v2713 = vadd.f32 %v2622, %v2665
        %v2714 = vadd.f32 %v2623, %v2667
        %v2715 = vadd.f32 %v2624, %v2668
        %v2716 = vadd.f32 %v2625, %v2670
        %v2717 = vadd.f32 %v2626, %v2671
        %v2718 = vadd.f32 %v2627, %v2673
        %v2719 = vadd.f32 %v2628, %v2674
        %v2720 = vadd.f32 %v2629, %v2676
        %v2721 = vadd.f32 %v2630, %v2677
        %v2722 = vadd.f32 %v2631, %v2679
        %v2723 = vadd.f32 %v2632, %v2680
        %v2724 = vadd.f32 %v2633, %v2682
        %v2725 = vadd.f32 %v2634, %v2683
        %v2726 = vadd.f32 %v2635, %v2685
        %v2727 = vadd.f32 %v2636, %v2686
        %v2728 = vadd.f32 %v2637, %v2688
        %v2729 = vlaneseq
        %v2730 = vshrl.u32 %v2729, 7
        %v2731 = vadd.s32 %v2730, 8
        %vm2732 = vcmp.ge.s32.totalorder %v2730, 1
        %vm2733 = vcmp.ge.s32.totalorder %v2731, 1
        %vm2734 = vmand 0, %vm2732
        %vm2735 = vmand 0, %vm2733
        %vm2736 = vmand 1, %vm2732
        %vm2737 = vmand 1, %vm2733
        %vm2738 = vcmp.le.s32.totalorder %v2730, 8
        %vm2739 = vcmp.le.s32.totalorder %v2731, 8
        %vm2740 = vmand %vm2734, %vm2738
        %vm2741 = vmand %vm2735, %vm2739
        %vm2742 = vmand %vm2736, %vm2738
        %vm2743 = vmand %vm2737, %vm2739
        %v2764 = vrot.slane %v2709, 1
        %v2765 = vrot.slane %v2710, 1
        %v2766 = vsel %vm521, %v2764, %v2765
        %v2767 = vrot.slane %v2711, 1
        %v2768 = vrot.slane %v2712, 1
        %v2769 = vsel %vm521, %v2767, %v2768
        %v2770 = vrot.slane %v2713, 1
        %v2771 = vrot.slane %v2714, 1
        %v2772 = vsel %vm521, %v2770, %v2771
        %v2773 = vrot.slane %v2715, 1
        %v2774 = vrot.slane %v2716, 1
        %v2775 = vsel %vm521, %v2773, %v2774
        %v2776 = vrot.slane %v2717, 1
        %v2777 = vrot.slane %v2718, 1
        %v2778 = vsel %vm521, %v2776, %v2777
        %v2779 = vrot.slane %v2719, 1
        %v2780 = vrot.slane %v2720, 1
        %v2781 = vsel %vm521, %v2779, %v2780
        %v2782 = vrot.slane %v2721, 1
        %v2783 = vrot.slane %v2722, 1
        %v2784 = vsel %vm521, %v2782, %v2783
        %v2785 = vrot.slane %v2723, 1
        %v2786 = vrot.slane %v2724, 1
        %v2787 = vsel %vm521, %v2785, %v2786
        %v2788 = vrot.slane %v2725, 1
        %v2789 = vrot.slane %v2726, 1
        %v2790 = vsel %vm521, %v2788, %v2789
        %v2791 = vrot.slane %v2727, 1
        %v2792 = vrot.slane %v2728, 1
        %v2793 = vsel %vm521, %v2791, %v2792
        %v2814 = vsel %vm2740, %v2766, 0.0
        %v2815 = vsel %vm2741, %v2765, 0.0
        %v2816 = vsel %vm2742, %v2769, 0.0
        %v2817 = vsel %vm2743, %v2768, 0.0
        %v2818 = vsel %vm2742, %v2772, 0.0
        %v2819 = vsel %vm2743, %v2771, 0.0
        %v2820 = vsel %vm2742, %v2775, 0.0
        %v2821 = vsel %vm2743, %v2774, 0.0
        %v2822 = vsel %vm2742, %v2778, 0.0
        %v2823 = vsel %vm2743, %v2777, 0.0
        %v2824 = vsel %vm2742, %v2781, 0.0
        %v2825 = vsel %vm2743, %v2780, 0.0
        %v2826 = vsel %vm2742, %v2784, 0.0
        %v2827 = vsel %vm2743, %v2783, 0.0
        %v2828 = vsel %vm2742, %v2787, 0.0
        %v2829 = vsel %vm2743, %v2786, 0.0
        %v2830 = vsel %vm2742, %v2790, 0.0
        %v2831 = vsel %vm2743, %v2789, 0.0
        %v2832 = vsel %vm2740, %v2793, 0.0
        %v2833 = vsel %vm2741, %v2792, 0.0
        %v2834 = vpack.c.bf16 %v2816, %v2814
        %v2835 = vpack.c.bf16 %v2820, %v2818
        %v2836 = vpack.c.bf16 %v2824, %v2822
        %v2837 = vpack.c.bf16 %v2828, %v2826
        %v2838 = vld [vmem:[%s5] sm:$0xf]
        %v2839 = vld [vmem:[%s5 + $0x4] sm:$0xf]
        %v2840 = vld [vmem:[%s5 + $0x8] sm:$0xf]
        %v2841 = vld [vmem:[%s5 + $0xc] sm:$0xf]
        %v2842 = vld [vmem:[%s5 + $0x10] sm:$0xf]
        %v2843 = vld [vmem:[%s5 + $0x14] sm:$0xf]
        %v2844 = vld [vmem:[%s5 + $0x18] sm:$0xf]
        %v2845 = vld [vmem:[%s5 + $0x1c] sm:$0xf]
        %v2862 = vrot.slane %v2814, 1
        %v2863 = vrot.slane %v2815, 1
        %v2864 = vsel %vm521, %v2862, %v2863
        %v2865 = vrot.slane %v2816, 1
        %v2866 = vrot.slane %v2817, 1
        %v2867 = vsel %vm521, %v2865, %v2866
        %v2868 = vrot.slane %v2818, 1
        %v2869 = vrot.slane %v2819, 1
        %v2870 = vsel %vm521, %v2868, %v2869
        %v2871 = vrot.slane %v2820, 1
        %v2872 = vrot.slane %v2821, 1
        %v2873 = vsel %vm521, %v2871, %v2872
        %v2874 = vrot.slane %v2822, 1
        %v2875 = vrot.slane %v2823, 1
        %v2876 = vsel %vm521, %v2874, %v2875
        %v2877 = vrot.slane %v2824, 1
        %v2878 = vrot.slane %v2825, 1
        %v2879 = vsel %vm521, %v2877, %v2878
        %v2880 = vrot.slane %v2826, 1
        %v2881 = vrot.slane %v2827, 1
        %v2882 = vsel %vm521, %v2880, %v2881
        %v2883 = vrot.slane %v2828, 1
        %v2884 = vrot.slane %v2829, 1
        %v2885 = vsel %vm521, %v2883, %v2884
        %v2894 = vpack.c.bf16 %v2867, %v2864
        %v2895 = vpack.c.bf16 %v2873, %v2870
        %v2896 = vpack.c.bf16 %v2879, %v2876
        %v2897 = vpack.c.bf16 %v2885, %v2882
        %s2898 = scalar_lea.vmem %s5, 32
        %v2899 = vld [vmem:[%s2898] sm:$0xf]
        %v2900 = vld [vmem:[%s2898 + $0x4] sm:$0xf]
        %v2901 = vld [vmem:[%s2898 + $0x8] sm:$0xf]
        %v2902 = vld [vmem:[%s2898 + $0xc] sm:$0xf]
        %v2903 = vld [vmem:[%s2898 + $0x10] sm:$0xf]
        %v2904 = vld [vmem:[%s2898 + $0x14] sm:$0xf]
        %v2905 = vld [vmem:[%s2898 + $0x18] sm:$0xf]
        %v2906 = vld [vmem:[%s2898 + $0x1c] sm:$0xf]
        %v2915 = vunpack.c.l.b16 %v2899
        %v2916 = vunpack.c.l.b16 %v2900
        %v2917 = vunpack.c.l.b16 %v2901
        %v2918 = vunpack.c.l.b16 %v2902
        %v2919 = vunpack.c.l.b16 %v2903
        %v2920 = vunpack.c.l.b16 %v2904
        %v2921 = vunpack.c.l.b16 %v2905
        %v2922 = vunpack.c.l.b16 %v2906
        %v2923 = vpack.c.b16 %v2916, %v2915
        %v2924 = vpack.c.b16 %v2918, %v2917
        %v2925 = vpack.c.b16 %v2920, %v2919
        %v2926 = vpack.c.b16 %v2922, %v2921
        %vm2931 = vcmask 523264
        %v2933 = vsel %vm2931, %v2894, 0
        %v2936 = vsel %vm2931, %v2895, 0
        %v2939 = vsel %vm2931, %v2896, 0
        %v2942 = vsel %vm2931, %v2897, 0
        %2944 = vmatpush.bf16.msra.mxu0 0
        %2945 = vmatpush.bf16.msra.mxu0 0
        %2946 = vmatpush.bf16.msra.mxu0 0
        %2947 = vmatpush.bf16.msra.mxu0 0
        %2948 = vmatpush.bf16.msra.mxu0 %v2926
        %2949 = vmatpush.bf16.msra.mxu0 %v2925
        %2950 = vmatpush.bf16.msra.mxu0 %v2924
        %2951 = vmatpush.bf16.msra.mxu0 %v2923
        %2952 = vmatmul.bf16.gmra.mxu0 %v2933
        %v2953 = vpop.f32.mrf.mxu0
        %v2954 = vadd.f32 0.0, %v2953
        %v2955 = vpop.f32.mrf.mxu0
        %v2956 = vadd.f32 0.0, %v2955
        %2957 = vmatmul.bf16.gmra.mxu0 %v2936
        %v2958 = vpop.f32.mrf.mxu0
        %v2959 = vadd.f32 0.0, %v2958
        %v2960 = vpop.f32.mrf.mxu0
        %v2961 = vadd.f32 0.0, %v2960
        %2962 = vmatmul.bf16.gmra.mxu0 %v2939
        %v2963 = vpop.f32.mrf.mxu0
        %v2964 = vadd.f32 0.0, %v2963
        %v2965 = vpop.f32.mrf.mxu0
        %v2966 = vadd.f32 0.0, %v2965
        %2967 = vmatmul.bf16.gmra.mxu0 %v2942
        %v2968 = vpop.f32.mrf.mxu0
        %v2969 = vadd.f32 0.0, %v2968
        %v2970 = vpop.f32.mrf.mxu0
        %v2971 = vadd.f32 0.0, %v2970
        %2972 = vdwg.mxu0
        %v2981 = vunpack.c.l.b16 %v2838
        %v2982 = vunpack.c.l.b16 %v2839
        %v2983 = vunpack.c.l.b16 %v2840
        %v2984 = vunpack.c.l.b16 %v2841
        %v2985 = vunpack.c.l.b16 %v2842
        %v2986 = vunpack.c.l.b16 %v2843
        %v2987 = vunpack.c.l.b16 %v2844
        %v2988 = vunpack.c.l.b16 %v2845
        %v2989 = vpack.c.b16 %v2982, %v2981
        %v2990 = vpack.c.b16 %v2984, %v2983
        %v2991 = vpack.c.b16 %v2986, %v2985
        %v2992 = vpack.c.b16 %v2988, %v2987
        %v2998 = vsel %vm2931, %v2834, 0
        %v3001 = vsel %vm2931, %v2835, 0
        %v3004 = vsel %vm2931, %v2836, 0
        %v3007 = vsel %vm2931, %v2837, 0
        %3009 = vmatpush.bf16.msra.mxu0 0
        %3010 = vmatpush.bf16.msra.mxu0 0
        %3011 = vmatpush.bf16.msra.mxu0 0
        %3012 = vmatpush.bf16.msra.mxu0 0
        %3013 = vmatpush.bf16.msra.mxu0 %v2992
        %3014 = vmatpush.bf16.msra.mxu0 %v2991
        %3015 = vmatpush.bf16.msra.mxu0 %v2990
        %3016 = vmatpush.bf16.msra.mxu0 %v2989
        %3017 = vmatmul.bf16.gmra.mxu0 %v2998
        %v3018 = vpop.f32.mrf.mxu0
        %v3019 = vadd.f32 %v2954, %v3018
        %v3020 = vpop.f32.mrf.mxu0
        %v3021 = vadd.f32 %v2956, %v3020
        %3022 = vmatmul.bf16.gmra.mxu0 %v3001
        %v3023 = vpop.f32.mrf.mxu0
        %v3024 = vadd.f32 %v2959, %v3023
        %v3025 = vpop.f32.mrf.mxu0
        %v3026 = vadd.f32 %v2961, %v3025
        %3027 = vmatmul.bf16.gmra.mxu0 %v3004
        %v3028 = vpop.f32.mrf.mxu0
        %v3029 = vadd.f32 %v2964, %v3028
        %v3030 = vpop.f32.mrf.mxu0
        %v3031 = vadd.f32 %v2966, %v3030
        %3032 = vmatmul.bf16.gmra.mxu0 %v3007
        %v3033 = vpop.f32.mrf.mxu0
        %v3034 = vadd.f32 %v2969, %v3033
        %v3035 = vpop.f32.mrf.mxu0
        %v3036 = vadd.f32 %v2971, %v3035
        %3037 = vdwg.mxu0
        %v3038 = vrot.slane %v2814, 2
        %v3039 = vrot.slane %v2815, 2
        %v3040 = vsel %vm633, %v3038, %v3039
        %v3041 = vrot.slane %v2816, 2
        %v3042 = vrot.slane %v2817, 2
        %v3043 = vsel %vm633, %v3041, %v3042
        %v3044 = vrot.slane %v2818, 2
        %v3045 = vrot.slane %v2819, 2
        %v3046 = vsel %vm633, %v3044, %v3045
        %v3047 = vrot.slane %v2820, 2
        %v3048 = vrot.slane %v2821, 2
        %v3049 = vsel %vm633, %v3047, %v3048
        %v3050 = vrot.slane %v2822, 2
        %v3051 = vrot.slane %v2823, 2
        %v3052 = vsel %vm633, %v3050, %v3051
        %v3053 = vrot.slane %v2824, 2
        %v3054 = vrot.slane %v2825, 2
        %v3055 = vsel %vm633, %v3053, %v3054
        %v3056 = vrot.slane %v2826, 2
        %v3057 = vrot.slane %v2827, 2
        %v3058 = vsel %vm633, %v3056, %v3057
        %v3059 = vrot.slane %v2828, 2
        %v3060 = vrot.slane %v2829, 2
        %v3061 = vsel %vm633, %v3059, %v3060
        %v3070 = vpack.c.bf16 %v3043, %v3040
        %v3071 = vpack.c.bf16 %v3049, %v3046
        %v3072 = vpack.c.bf16 %v3055, %v3052
        %v3073 = vpack.c.bf16 %v3061, %v3058
        %s3074 = scalar_lea.vmem %s5, 64
        %v3075 = vld [vmem:[%s3074] sm:$0xf]
        %v3076 = vld [vmem:[%s3074 + $0x4] sm:$0xf]
        %v3077 = vld [vmem:[%s3074 + $0x8] sm:$0xf]
        %v3078 = vld [vmem:[%s3074 + $0xc] sm:$0xf]
        %v3079 = vld [vmem:[%s3074 + $0x10] sm:$0xf]
        %v3080 = vld [vmem:[%s3074 + $0x14] sm:$0xf]
        %v3081 = vld [vmem:[%s3074 + $0x18] sm:$0xf]
        %v3082 = vld [vmem:[%s3074 + $0x1c] sm:$0xf]
        %v3091 = vunpack.c.l.b16 %v3075
        %v3092 = vunpack.c.l.b16 %v3076
        %v3093 = vunpack.c.l.b16 %v3077
        %v3094 = vunpack.c.l.b16 %v3078
        %v3095 = vunpack.c.l.b16 %v3079
        %v3096 = vunpack.c.l.b16 %v3080
        %v3097 = vunpack.c.l.b16 %v3081
        %v3098 = vunpack.c.l.b16 %v3082
        %v3099 = vpack.c.b16 %v3092, %v3091
        %v3100 = vpack.c.b16 %v3094, %v3093
        %v3101 = vpack.c.b16 %v3096, %v3095
        %v3102 = vpack.c.b16 %v3098, %v3097
        %v3108 = vsel %vm2931, %v3070, 0
        %v3111 = vsel %vm2931, %v3071, 0
        %v3114 = vsel %vm2931, %v3072, 0
        %v3117 = vsel %vm2931, %v3073, 0
        %3119 = vmatpush.bf16.msra.mxu0 0
        %3120 = vmatpush.bf16.msra.mxu0 0
        %3121 = vmatpush.bf16.msra.mxu0 0
        %3122 = vmatpush.bf16.msra.mxu0 0
        %3123 = vmatpush.bf16.msra.mxu0 %v3102
        %3124 = vmatpush.bf16.msra.mxu0 %v3101
        %3125 = vmatpush.bf16.msra.mxu0 %v3100
        %3126 = vmatpush.bf16.msra.mxu0 %v3099
        %3127 = vmatmul.bf16.gmra.mxu0 %v3108
        %v3128 = vpop.f32.mrf.mxu0
        %v3129 = vadd.f32 0.0, %v3128
        %v3130 = vpop.f32.mrf.mxu0
        %v3131 = vadd.f32 0.0, %v3130
        %3132 = vmatmul.bf16.gmra.mxu0 %v3111
        %v3133 = vpop.f32.mrf.mxu0
        %v3134 = vadd.f32 0.0, %v3133
        %v3135 = vpop.f32.mrf.mxu0
        %v3136 = vadd.f32 0.0, %v3135
        %3137 = vmatmul.bf16.gmra.mxu0 %v3114
        %v3138 = vpop.f32.mrf.mxu0
        %v3139 = vadd.f32 0.0, %v3138
        %v3140 = vpop.f32.mrf.mxu0
        %v3141 = vadd.f32 0.0, %v3140
        %3142 = vmatmul.bf16.gmra.mxu0 %v3117
        %v3143 = vpop.f32.mrf.mxu0
        %v3144 = vadd.f32 0.0, %v3143
        %v3145 = vpop.f32.mrf.mxu0
        %v3146 = vadd.f32 0.0, %v3145
        %3147 = vdwg.mxu0
        %v3148 = vadd.f32 %v3019, %v3129
        %v3149 = vadd.f32 %v3021, %v3131
        %v3150 = vadd.f32 %v3024, %v3134
        %v3151 = vadd.f32 %v3026, %v3136
        %v3152 = vadd.f32 %v3029, %v3139
        %v3153 = vadd.f32 %v3031, %v3141
        %v3154 = vadd.f32 %v3034, %v3144
        %v3155 = vadd.f32 %v3036, %v3146
        %v3156 = vpack.c.bf16 %v2818, %v2816
        %v3157 = vpack.c.bf16 %v2822, %v2820
        %v3158 = vpack.c.bf16 %v2826, %v2824
        %v3159 = vpack.c.bf16 %v2830, %v2828
        %s3160 = scalar_lea.vmem %s5, 96
        %v3161 = vld [vmem:[%s3160] sm:$0xf]
        %v3162 = vld [vmem:[%s3160 + $0x4] sm:$0xf]
        %v3163 = vld [vmem:[%s3160 + $0x8] sm:$0xf]
        %v3164 = vld [vmem:[%s3160 + $0xc] sm:$0xf]
        %v3165 = vld [vmem:[%s3160 + $0x10] sm:$0xf]
        %v3166 = vld [vmem:[%s3160 + $0x14] sm:$0xf]
        %v3167 = vld [vmem:[%s3160 + $0x18] sm:$0xf]
        %v3168 = vld [vmem:[%s3160 + $0x1c] sm:$0xf]
        %v3177 = vunpack.c.l.b16 %v3161
        %v3178 = vunpack.c.l.b16 %v3162
        %v3179 = vunpack.c.l.b16 %v3163
        %v3180 = vunpack.c.l.b16 %v3164
        %v3181 = vunpack.c.l.b16 %v3165
        %v3182 = vunpack.c.l.b16 %v3166
        %v3183 = vunpack.c.l.b16 %v3167
        %v3184 = vunpack.c.l.b16 %v3168
        %v3185 = vpack.c.b16 %v3178, %v3177
        %v3186 = vpack.c.b16 %v3180, %v3179
        %v3187 = vpack.c.b16 %v3182, %v3181
        %v3188 = vpack.c.b16 %v3184, %v3183
        %v3194 = vsel %vm2931, %v3156, 0
        %v3197 = vsel %vm2931, %v3157, 0
        %v3200 = vsel %vm2931, %v3158, 0
        %v3203 = vsel %vm2931, %v3159, 0
        %3205 = vmatpush.bf16.msra.mxu0 0
        %3206 = vmatpush.bf16.msra.mxu0 0
        %3207 = vmatpush.bf16.msra.mxu0 0
        %3208 = vmatpush.bf16.msra.mxu0 0
        %3209 = vmatpush.bf16.msra.mxu0 %v3188
        %3210 = vmatpush.bf16.msra.mxu0 %v3187
        %3211 = vmatpush.bf16.msra.mxu0 %v3186
        %3212 = vmatpush.bf16.msra.mxu0 %v3185
        %3213 = vmatmul.bf16.gmra.mxu0 %v3194
        %v3214 = vpop.f32.mrf.mxu0
        %v3215 = vadd.f32 0.0, %v3214
        %v3216 = vpop.f32.mrf.mxu0
        %v3217 = vadd.f32 0.0, %v3216
        %3218 = vmatmul.bf16.gmra.mxu0 %v3197
        %v3219 = vpop.f32.mrf.mxu0
        %v3220 = vadd.f32 0.0, %v3219
        %v3221 = vpop.f32.mrf.mxu0
        %v3222 = vadd.f32 0.0, %v3221
        %3223 = vmatmul.bf16.gmra.mxu0 %v3200
        %v3224 = vpop.f32.mrf.mxu0
        %v3225 = vadd.f32 0.0, %v3224
        %v3226 = vpop.f32.mrf.mxu0
        %v3227 = vadd.f32 0.0, %v3226
        %3228 = vmatmul.bf16.gmra.mxu0 %v3203
        %v3229 = vpop.f32.mrf.mxu0
        %v3230 = vadd.f32 0.0, %v3229
        %v3231 = vpop.f32.mrf.mxu0
        %v3232 = vadd.f32 0.0, %v3231
        %3233 = vdwg.mxu0
        %v3234 = vadd.f32 %v3148, %v3215
        %v3235 = vadd.f32 %v3149, %v3217
        %v3236 = vadd.f32 %v3150, %v3220
        %v3237 = vadd.f32 %v3151, %v3222
        %v3238 = vadd.f32 %v3152, %v3225
        %v3239 = vadd.f32 %v3153, %v3227
        %v3240 = vadd.f32 %v3154, %v3230
        %v3241 = vadd.f32 %v3155, %v3232
        %v3244 = vrot.slane %v2830, 1
        %v3245 = vrot.slane %v2831, 1
        %v3246 = vsel %vm521, %v3244, %v3245
        %v3248 = vpack.c.bf16 %v2870, %v2867
        %v3249 = vpack.c.bf16 %v2876, %v2873
        %v3250 = vpack.c.bf16 %v2882, %v2879
        %v3251 = vpack.c.bf16 %v3246, %v2885
        %s3252 = scalar_lea.vmem %s5, 128
        %v3253 = vld [vmem:[%s3252] sm:$0xf]
        %v3254 = vld [vmem:[%s3252 + $0x4] sm:$0xf]
        %v3255 = vld [vmem:[%s3252 + $0x8] sm:$0xf]
        %v3256 = vld [vmem:[%s3252 + $0xc] sm:$0xf]
        %v3257 = vld [vmem:[%s3252 + $0x10] sm:$0xf]
        %v3258 = vld [vmem:[%s3252 + $0x14] sm:$0xf]
        %v3259 = vld [vmem:[%s3252 + $0x18] sm:$0xf]
        %v3260 = vld [vmem:[%s3252 + $0x1c] sm:$0xf]
        %v3269 = vunpack.c.l.b16 %v3253
        %v3270 = vunpack.c.l.b16 %v3254
        %v3271 = vunpack.c.l.b16 %v3255
        %v3272 = vunpack.c.l.b16 %v3256
        %v3273 = vunpack.c.l.b16 %v3257
        %v3274 = vunpack.c.l.b16 %v3258
        %v3275 = vunpack.c.l.b16 %v3259
        %v3276 = vunpack.c.l.b16 %v3260
        %v3277 = vpack.c.b16 %v3270, %v3269
        %v3278 = vpack.c.b16 %v3272, %v3271
        %v3279 = vpack.c.b16 %v3274, %v3273
        %v3280 = vpack.c.b16 %v3276, %v3275
        %v3286 = vsel %vm2931, %v3248, 0
        %v3289 = vsel %vm2931, %v3249, 0
        %v3292 = vsel %vm2931, %v3250, 0
        %v3295 = vsel %vm2931, %v3251, 0
        %3297 = vmatpush.bf16.msra.mxu0 0
        %3298 = vmatpush.bf16.msra.mxu0 0
        %3299 = vmatpush.bf16.msra.mxu0 0
        %3300 = vmatpush.bf16.msra.mxu0 0
        %3301 = vmatpush.bf16.msra.mxu0 %v3280
        %3302 = vmatpush.bf16.msra.mxu0 %v3279
        %3303 = vmatpush.bf16.msra.mxu0 %v3278
        %3304 = vmatpush.bf16.msra.mxu0 %v3277
        %3305 = vmatmul.bf16.gmra.mxu0 %v3286
        %v3306 = vpop.f32.mrf.mxu0
        %v3307 = vadd.f32 0.0, %v3306
        %v3308 = vpop.f32.mrf.mxu0
        %v3309 = vadd.f32 0.0, %v3308
        %3310 = vmatmul.bf16.gmra.mxu0 %v3289
        %v3311 = vpop.f32.mrf.mxu0
        %v3312 = vadd.f32 0.0, %v3311
        %v3313 = vpop.f32.mrf.mxu0
        %v3314 = vadd.f32 0.0, %v3313
        %3315 = vmatmul.bf16.gmra.mxu0 %v3292
        %v3316 = vpop.f32.mrf.mxu0
        %v3317 = vadd.f32 0.0, %v3316
        %v3318 = vpop.f32.mrf.mxu0
        %v3319 = vadd.f32 0.0, %v3318
        %3320 = vmatmul.bf16.gmra.mxu0 %v3295
        %v3321 = vpop.f32.mrf.mxu0
        %v3322 = vadd.f32 0.0, %v3321
        %v3323 = vpop.f32.mrf.mxu0
        %v3324 = vadd.f32 0.0, %v3323
        %3325 = vdwg.mxu0
        %v3326 = vadd.f32 %v3234, %v3307
        %v3327 = vadd.f32 %v3235, %v3309
        %v3328 = vadd.f32 %v3236, %v3312
        %v3329 = vadd.f32 %v3237, %v3314
        %v3330 = vadd.f32 %v3238, %v3317
        %v3331 = vadd.f32 %v3239, %v3319
        %v3332 = vadd.f32 %v3240, %v3322
        %v3333 = vadd.f32 %v3241, %v3324
        %v3334 = vrot.slane %v2830, 2
        %v3335 = vrot.slane %v2831, 2
        %v3336 = vsel %vm633, %v3334, %v3335
        %v3338 = vpack.c.bf16 %v3046, %v3043
        %v3339 = vpack.c.bf16 %v3052, %v3049
        %v3340 = vpack.c.bf16 %v3058, %v3055
        %v3341 = vpack.c.bf16 %v3336, %v3061
        %s3342 = scalar_lea.vmem %s5, 160
        %v3343 = vld [vmem:[%s3342] sm:$0xf]
        %v3344 = vld [vmem:[%s3342 + $0x4] sm:$0xf]
        %v3345 = vld [vmem:[%s3342 + $0x8] sm:$0xf]
        %v3346 = vld [vmem:[%s3342 + $0xc] sm:$0xf]
        %v3347 = vld [vmem:[%s3342 + $0x10] sm:$0xf]
        %v3348 = vld [vmem:[%s3342 + $0x14] sm:$0xf]
        %v3349 = vld [vmem:[%s3342 + $0x18] sm:$0xf]
        %v3350 = vld [vmem:[%s3342 + $0x1c] sm:$0xf]
        %v3359 = vunpack.c.l.b16 %v3343
        %v3360 = vunpack.c.l.b16 %v3344
        %v3361 = vunpack.c.l.b16 %v3345
        %v3362 = vunpack.c.l.b16 %v3346
        %v3363 = vunpack.c.l.b16 %v3347
        %v3364 = vunpack.c.l.b16 %v3348
        %v3365 = vunpack.c.l.b16 %v3349
        %v3366 = vunpack.c.l.b16 %v3350
        %v3367 = vpack.c.b16 %v3360, %v3359
        %v3368 = vpack.c.b16 %v3362, %v3361
        %v3369 = vpack.c.b16 %v3364, %v3363
        %v3370 = vpack.c.b16 %v3366, %v3365
        %v3376 = vsel %vm2931, %v3338, 0
        %v3379 = vsel %vm2931, %v3339, 0
        %v3382 = vsel %vm2931, %v3340, 0
        %v3385 = vsel %vm2931, %v3341, 0
        %3387 = vmatpush.bf16.msra.mxu0 0
        %3388 = vmatpush.bf16.msra.mxu0 0
        %3389 = vmatpush.bf16.msra.mxu0 0
        %3390 = vmatpush.bf16.msra.mxu0 0
        %3391 = vmatpush.bf16.msra.mxu0 %v3370
        %3392 = vmatpush.bf16.msra.mxu0 %v3369
        %3393 = vmatpush.bf16.msra.mxu0 %v3368
        %3394 = vmatpush.bf16.msra.mxu0 %v3367
        %3395 = vmatmul.bf16.gmra.mxu0 %v3376
        %v3396 = vpop.f32.mrf.mxu0
        %v3397 = vadd.f32 0.0, %v3396
        %v3398 = vpop.f32.mrf.mxu0
        %v3399 = vadd.f32 0.0, %v3398
        %3400 = vmatmul.bf16.gmra.mxu0 %v3379
        %v3401 = vpop.f32.mrf.mxu0
        %v3402 = vadd.f32 0.0, %v3401
        %v3403 = vpop.f32.mrf.mxu0
        %v3404 = vadd.f32 0.0, %v3403
        %3405 = vmatmul.bf16.gmra.mxu0 %v3382
        %v3406 = vpop.f32.mrf.mxu0
        %v3407 = vadd.f32 0.0, %v3406
        %v3408 = vpop.f32.mrf.mxu0
        %v3409 = vadd.f32 0.0, %v3408
        %3410 = vmatmul.bf16.gmra.mxu0 %v3385
        %v3411 = vpop.f32.mrf.mxu0
        %v3412 = vadd.f32 0.0, %v3411
        %v3413 = vpop.f32.mrf.mxu0
        %v3414 = vadd.f32 0.0, %v3413
        %3415 = vdwg.mxu0
        %v3416 = vadd.f32 %v3326, %v3397
        %v3417 = vadd.f32 %v3327, %v3399
        %v3418 = vadd.f32 %v3328, %v3402
        %v3419 = vadd.f32 %v3329, %v3404
        %v3420 = vadd.f32 %v3330, %v3407
        %v3421 = vadd.f32 %v3331, %v3409
        %v3422 = vadd.f32 %v3332, %v3412
        %v3423 = vadd.f32 %v3333, %v3414
        %v3424 = vpack.c.bf16 %v2832, %v2830
        %s3425 = scalar_lea.vmem %s5, 192
        %v3426 = vld [vmem:[%s3425] sm:$0xf]
        %v3427 = vld [vmem:[%s3425 + $0x4] sm:$0xf]
        %v3428 = vld [vmem:[%s3425 + $0x8] sm:$0xf]
        %v3429 = vld [vmem:[%s3425 + $0xc] sm:$0xf]
        %v3430 = vld [vmem:[%s3425 + $0x10] sm:$0xf]
        %v3431 = vld [vmem:[%s3425 + $0x14] sm:$0xf]
        %v3432 = vld [vmem:[%s3425 + $0x18] sm:$0xf]
        %v3433 = vld [vmem:[%s3425 + $0x1c] sm:$0xf]
        %v3442 = vunpack.c.l.b16 %v3426
        %v3443 = vunpack.c.l.b16 %v3427
        %v3444 = vunpack.c.l.b16 %v3428
        %v3445 = vunpack.c.l.b16 %v3429
        %v3446 = vunpack.c.l.b16 %v3430
        %v3447 = vunpack.c.l.b16 %v3431
        %v3448 = vunpack.c.l.b16 %v3432
        %v3449 = vunpack.c.l.b16 %v3433
        %v3450 = vpack.c.b16 %v3443, %v3442
        %v3451 = vpack.c.b16 %v3445, %v3444
        %v3452 = vpack.c.b16 %v3447, %v3446
        %v3453 = vpack.c.b16 %v3449, %v3448
        %v3459 = vsel %vm2931, %v3424, 0
        %3461 = vmatpush.bf16.msra.mxu0 0
        %3462 = vmatpush.bf16.msra.mxu0 0
        %3463 = vmatpush.bf16.msra.mxu0 0
        %3464 = vmatpush.bf16.msra.mxu0 0
        %3465 = vmatpush.bf16.msra.mxu0 %v3453
        %3466 = vmatpush.bf16.msra.mxu0 %v3452
        %3467 = vmatpush.bf16.msra.mxu0 %v3451
        %3468 = vmatpush.bf16.msra.mxu0 %v3450
        %3469 = vmatmul.bf16.gmra.mxu0 %v3001
        %v3470 = vpop.f32.mrf.mxu0
        %v3471 = vadd.f32 0.0, %v3470
        %v3472 = vpop.f32.mrf.mxu0
        %v3473 = vadd.f32 0.0, %v3472
        %3474 = vmatmul.bf16.gmra.mxu0 %v3004
        %v3475 = vpop.f32.mrf.mxu0
        %v3476 = vadd.f32 0.0, %v3475
        %v3477 = vpop.f32.mrf.mxu0
        %v3478 = vadd.f32 0.0, %v3477
        %3479 = vmatmul.bf16.gmra.mxu0 %v3007
        %v3480 = vpop.f32.mrf.mxu0
        %v3481 = vadd.f32 0.0, %v3480
        %v3482 = vpop.f32.mrf.mxu0
        %v3483 = vadd.f32 0.0, %v3482
        %3484 = vmatmul.bf16.gmra.mxu0 %v3459
        %v3485 = vpop.f32.mrf.mxu0
        %v3486 = vadd.f32 0.0, %v3485
        %v3487 = vpop.f32.mrf.mxu0
        %v3488 = vadd.f32 0.0, %v3487
        %3489 = vdwg.mxu0
        %v3490 = vadd.f32 %v3416, %v3471
        %v3491 = vadd.f32 %v3417, %v3473
        %v3492 = vadd.f32 %v3418, %v3476
        %v3493 = vadd.f32 %v3419, %v3478
        %v3494 = vadd.f32 %v3420, %v3481
        %v3495 = vadd.f32 %v3421, %v3483
        %v3496 = vadd.f32 %v3422, %v3486
        %v3497 = vadd.f32 %v3423, %v3488
        %v3500 = vrot.slane %v2832, 1
        %v3501 = vrot.slane %v2833, 1
        %v3502 = vsel %vm521, %v3500, %v3501
        %v3504 = vpack.c.bf16 %v3502, %v3246
        %s3505 = scalar_lea.vmem %s5, 224
        %v3506 = vld [vmem:[%s3505] sm:$0xf]
        %v3507 = vld [vmem:[%s3505 + $0x4] sm:$0xf]
        %v3508 = vld [vmem:[%s3505 + $0x8] sm:$0xf]
        %v3509 = vld [vmem:[%s3505 + $0xc] sm:$0xf]
        %v3510 = vld [vmem:[%s3505 + $0x10] sm:$0xf]
        %v3511 = vld [vmem:[%s3505 + $0x14] sm:$0xf]
        %v3512 = vld [vmem:[%s3505 + $0x18] sm:$0xf]
        %v3513 = vld [vmem:[%s3505 + $0x1c] sm:$0xf]
        %v3522 = vunpack.c.l.b16 %v3506
        %v3523 = vunpack.c.l.b16 %v3507
        %v3524 = vunpack.c.l.b16 %v3508
        %v3525 = vunpack.c.l.b16 %v3509
        %v3526 = vunpack.c.l.b16 %v3510
        %v3527 = vunpack.c.l.b16 %v3511
        %v3528 = vunpack.c.l.b16 %v3512
        %v3529 = vunpack.c.l.b16 %v3513
        %v3530 = vpack.c.b16 %v3523, %v3522
        %v3531 = vpack.c.b16 %v3525, %v3524
        %v3532 = vpack.c.b16 %v3527, %v3526
        %v3533 = vpack.c.b16 %v3529, %v3528
        %v3539 = vsel %vm2931, %v3504, 0
        %3541 = vmatpush.bf16.msra.mxu0 0
        %3542 = vmatpush.bf16.msra.mxu0 0
        %3543 = vmatpush.bf16.msra.mxu0 0
        %3544 = vmatpush.bf16.msra.mxu0 0
        %3545 = vmatpush.bf16.msra.mxu0 %v3533
        %3546 = vmatpush.bf16.msra.mxu0 %v3532
        %3547 = vmatpush.bf16.msra.mxu0 %v3531
        %3548 = vmatpush.bf16.msra.mxu0 %v3530
        %3549 = vmatmul.bf16.gmra.mxu0 %v2936
        %v3550 = vpop.f32.mrf.mxu0
        %v3551 = vadd.f32 0.0, %v3550
        %v3552 = vpop.f32.mrf.mxu0
        %v3553 = vadd.f32 0.0, %v3552
        %3554 = vmatmul.bf16.gmra.mxu0 %v2939
        %v3555 = vpop.f32.mrf.mxu0
        %v3556 = vadd.f32 0.0, %v3555
        %v3557 = vpop.f32.mrf.mxu0
        %v3558 = vadd.f32 0.0, %v3557
        %3559 = vmatmul.bf16.gmra.mxu0 %v2942
        %v3560 = vpop.f32.mrf.mxu0
        %v3561 = vadd.f32 0.0, %v3560
        %v3562 = vpop.f32.mrf.mxu0
        %v3563 = vadd.f32 0.0, %v3562
        %3564 = vmatmul.bf16.gmra.mxu0 %v3539
        %v3565 = vpop.f32.mrf.mxu0
        %v3566 = vadd.f32 0.0, %v3565
        %v3567 = vpop.f32.mrf.mxu0
        %v3568 = vadd.f32 0.0, %v3567
        %3569 = vdwg.mxu0
        %v3570 = vadd.f32 %v3490, %v3551
        %v3571 = vadd.f32 %v3491, %v3553
        %v3572 = vadd.f32 %v3492, %v3556
        %v3573 = vadd.f32 %v3493, %v3558
        %v3574 = vadd.f32 %v3494, %v3561
        %v3575 = vadd.f32 %v3495, %v3563
        %v3576 = vadd.f32 %v3496, %v3566
        %v3577 = vadd.f32 %v3497, %v3568
        %v3578 = vrot.slane %v2832, 2
        %v3579 = vrot.slane %v2833, 2
        %v3580 = vsel %vm633, %v3578, %v3579
        %v3582 = vpack.c.bf16 %v3580, %v3336
        %s3583 = scalar_lea.vmem %s5, 256
        %v3584 = vld [vmem:[%s3583] sm:$0xf]
        %v3585 = vld [vmem:[%s3583 + $0x4] sm:$0xf]
        %v3586 = vld [vmem:[%s3583 + $0x8] sm:$0xf]
        %v3587 = vld [vmem:[%s3583 + $0xc] sm:$0xf]
        %v3588 = vld [vmem:[%s3583 + $0x10] sm:$0xf]
        %v3589 = vld [vmem:[%s3583 + $0x14] sm:$0xf]
        %v3590 = vld [vmem:[%s3583 + $0x18] sm:$0xf]
        %v3591 = vld [vmem:[%s3583 + $0x1c] sm:$0xf]
        %v3600 = vunpack.c.l.b16 %v3584
        %v3601 = vunpack.c.l.b16 %v3585
        %v3602 = vunpack.c.l.b16 %v3586
        %v3603 = vunpack.c.l.b16 %v3587
        %v3604 = vunpack.c.l.b16 %v3588
        %v3605 = vunpack.c.l.b16 %v3589
        %v3606 = vunpack.c.l.b16 %v3590
        %v3607 = vunpack.c.l.b16 %v3591
        %v3608 = vpack.c.b16 %v3601, %v3600
        %v3609 = vpack.c.b16 %v3603, %v3602
        %v3610 = vpack.c.b16 %v3605, %v3604
        %v3611 = vpack.c.b16 %v3607, %v3606
        %v3617 = vsel %vm2931, %v3582, 0
        %3619 = vmatpush.bf16.msra.mxu0 0
        %3620 = vmatpush.bf16.msra.mxu0 0
        %3621 = vmatpush.bf16.msra.mxu0 0
        %3622 = vmatpush.bf16.msra.mxu0 0
        %3623 = vmatpush.bf16.msra.mxu0 %v3611
        %3624 = vmatpush.bf16.msra.mxu0 %v3610
        %3625 = vmatpush.bf16.msra.mxu0 %v3609
        %3626 = vmatpush.bf16.msra.mxu0 %v3608
        %3627 = vmatmul.bf16.gmra.mxu0 %v3111
        %v3628 = vpop.f32.mrf.mxu0
        %v3629 = vadd.f32 0.0, %v3628
        %v3630 = vpop.f32.mrf.mxu0
        %v3631 = vadd.f32 0.0, %v3630
        %3632 = vmatmul.bf16.gmra.mxu0 %v3114
        %v3633 = vpop.f32.mrf.mxu0
        %v3634 = vadd.f32 0.0, %v3633
        %v3635 = vpop.f32.mrf.mxu0
        %v3636 = vadd.f32 0.0, %v3635
        %3637 = vmatmul.bf16.gmra.mxu0 %v3117
        %v3638 = vpop.f32.mrf.mxu0
        %v3639 = vadd.f32 0.0, %v3638
        %v3640 = vpop.f32.mrf.mxu0
        %v3641 = vadd.f32 0.0, %v3640
        %3642 = vmatmul.bf16.gmra.mxu0 %v3617
        %v3643 = vpop.f32.mrf.mxu0
        %v3644 = vadd.f32 0.0, %v3643
        %v3645 = vpop.f32.mrf.mxu0
        %v3646 = vadd.f32 0.0, %v3645
        %3647 = vdwg.mxu0
        %v3648 = vadd.f32 %v3570, %v3629
        %v3649 = vadd.f32 %v3571, %v3631
        %v3650 = vadd.f32 %v3572, %v3634
        %v3651 = vadd.f32 %v3573, %v3636
        %v3652 = vadd.f32 %v3574, %v3639
        %v3653 = vadd.f32 %v3575, %v3641
        %v3654 = vadd.f32 %v3576, %v3644
        %v3655 = vadd.f32 %v3577, %v3646
        %v3656 = vld [vmem:[%s6] sm:$0x1]
        %v3658 = vperm.slane %v3656, 0
        %v3660 = vmul.f32 %v3648, %v3658
        %v3661 = vmul.f32 %v3649, %v3658
        %v3662 = vmul.f32 %v3650, %v3658
        %v3663 = vmul.f32 %v3651, %v3658
        %v3664 = vmul.f32 %v3652, %v3658
        %v3665 = vmul.f32 %v3653, %v3658
        %v3666 = vmul.f32 %v3654, %v3658
        %v3667 = vmul.f32 %v3655, %v3658
        %v3668 = vld [vmem:[%s7] sm:$0x1]
        %v3670 = vperm.slane %v3668, 0
        %v3672 = vadd.f32 %v3660, %v3670
        %v3673 = vadd.f32 %v3661, %v3670
        %v3674 = vadd.f32 %v3662, %v3670
        %v3675 = vadd.f32 %v3663, %v3670
        %v3676 = vadd.f32 %v3664, %v3670
        %v3677 = vadd.f32 %v3665, %v3670
        %v3678 = vadd.f32 %v3666, %v3670
        %v3679 = vadd.f32 %v3667, %v3670
        %v3680 = vmul.f32 %v3672, 0.5
        %v3681 = vmul.f32 %v3673, 0.5
        %v3682 = vmul.f32 %v3674, 0.5
        %v3683 = vmul.f32 %v3675, 0.5
        %v3684 = vmul.f32 %v3676, 0.5
        %v3685 = vmul.f32 %v3677, 0.5
        %v3686 = vmul.f32 %v3678, 0.5
        %v3687 = vmul.f32 %v3679, 0.5
        %v3688 = vmul.f32 %v3672, %v1280
        %v3689 = vmul.f32 %v3673, %v1280
        %v3690 = vmul.f32 %v3674, %v1280
        %v3691 = vmul.f32 %v3675, %v1280
        %v3692 = vmul.f32 %v3676, %v1280
        %v3693 = vmul.f32 %v3677, %v1280
        %v3694 = vmul.f32 %v3678, %v1280
        %v3695 = vmul.f32 %v3679, %v1280
        %v3696 = vmul.f32 %v3688, %v3688
        %v3697 = vmin.f32 16.0, %v3696
        %v3698 = vmul.f32 %v3697, 2.1237322e-06
        %v3699 = vadd.f32 %v3698, 0.00028619796
        %v3700 = vmul.f32 %v3697, %v3699
        %v3701 = vadd.f32 %v3700, 0.0036580483
        %v3702 = vmul.f32 %v3697, %v3701
        %v3703 = vadd.f32 %v3702, 0.05243302
        %v3704 = vmul.f32 %v3697, %v3703
        %v3705 = vadd.f32 %v3704, 0.18741608
        %v3706 = vmul.f32 %v3697, %v3705
        %v3707 = vadd.f32 %v3706, 1.1283791
        %v3708 = vmul.f32 %v3688, %v3707
        %v3709 = vmul.f32 %v3697, 3.8918573e-05
        %v3710 = vadd.f32 %v3709, 0.001143296
        %v3711 = vmul.f32 %v3697, %v3710
        %v3712 = vadd.f32 %v3711, 0.014752088
        %v3713 = vmul.f32 %v3697, %v3712
        %v3714 = vadd.f32 %v3713, 0.112945676
        %v3715 = vmul.f32 %v3697, %v3714
        %v3716 = vadd.f32 %v3715, 0.4994258
        %v3717 = vmul.f32 %v3697, %v3716
        %v3718 = vadd.f32 %v3717, 1.0
        %v3719 = vrcp.pop %v3718
        %v3720 = vmul.f32 %v3718, %v3719
        %v3721 = vsub.f32 1.0, %v3720
        %v3722 = vmul.f32 %v3719, %v3721
        %v3723 = vadd.f32 %v3719, %v3722
        %vm3724 = vweird.f32 %v3718
        %vm3725 = vweird.f32 %v3719
        %vm3726 = vmor %vm3724, %vm3725
        %v3727 = vsel %vm3726, %v3719, %v3723
        %v3728 = vand.u32 2147483647, %v3718
        %vm3729 = vcmp.eq.f32.partialorder %v3728, 8.507059e+37
        %v3730 = vand.u32 %v3718, 2147483648
        %v3731 = vor.u32 1.1754944e-38, %v3730
        %v3732 = vsel %vm3729, %v3731, %v3727
        %v3733 = vmul.f32 %v3708, %v3732
        %v3734 = vmin.f32 %v3733, 1.0
        %v3735 = vmax.f32 %v3734, -1.0
        %v3736 = vmul.f32 %v3689, %v3689
        %v3737 = vmin.f32 16.0, %v3736
        %v3738 = vmul.f32 %v3737, 2.1237322e-06
        %v3739 = vadd.f32 %v3738, 0.00028619796
        %v3740 = vmul.f32 %v3737, %v3739
        %v3741 = vadd.f32 %v3740, 0.0036580483
        %v3742 = vmul.f32 %v3737, %v3741
        %v3743 = vadd.f32 %v3742, 0.05243302
        %v3744 = vmul.f32 %v3737, %v3743
        %v3745 = vadd.f32 %v3744, 0.18741608
        %v3746 = vmul.f32 %v3737, %v3745
        %v3747 = vadd.f32 %v3746, 1.1283791
        %v3748 = vmul.f32 %v3689, %v3747
        %v3749 = vmul.f32 %v3737, 3.8918573e-05
        %v3750 = vadd.f32 %v3749, 0.001143296
        %v3751 = vmul.f32 %v3737, %v3750
        %v3752 = vadd.f32 %v3751, 0.014752088
        %v3753 = vmul.f32 %v3737, %v3752
        %v3754 = vadd.f32 %v3753, 0.112945676
        %v3755 = vmul.f32 %v3737, %v3754
        %v3756 = vadd.f32 %v3755, 0.4994258
        %v3757 = vmul.f32 %v3737, %v3756
        %v3758 = vadd.f32 %v3757, 1.0
        %v3759 = vrcp.pop %v3758
        %v3760 = vmul.f32 %v3758, %v3759
        %v3761 = vsub.f32 1.0, %v3760
        %v3762 = vmul.f32 %v3759, %v3761
        %v3763 = vadd.f32 %v3759, %v3762
        %vm3764 = vweird.f32 %v3758
        %vm3765 = vweird.f32 %v3759
        %vm3766 = vmor %vm3764, %vm3765
        %v3767 = vsel %vm3766, %v3759, %v3763
        %v3768 = vand.u32 2147483647, %v3758
        %vm3769 = vcmp.eq.f32.partialorder %v3768, 8.507059e+37
        %v3770 = vand.u32 %v3758, 2147483648
        %v3771 = vor.u32 1.1754944e-38, %v3770
        %v3772 = vsel %vm3769, %v3771, %v3767
        %v3773 = vmul.f32 %v3748, %v3772
        %v3774 = vmin.f32 %v3773, 1.0
        %v3775 = vmax.f32 %v3774, -1.0
        %v3776 = vmul.f32 %v3690, %v3690
        %v3777 = vmin.f32 16.0, %v3776
        %v3778 = vmul.f32 %v3777, 2.1237322e-06
        %v3779 = vadd.f32 %v3778, 0.00028619796
        %v3780 = vmul.f32 %v3777, %v3779
        %v3781 = vadd.f32 %v3780, 0.0036580483
        %v3782 = vmul.f32 %v3777, %v3781
        %v3783 = vadd.f32 %v3782, 0.05243302
        %v3784 = vmul.f32 %v3777, %v3783
        %v3785 = vadd.f32 %v3784, 0.18741608
        %v3786 = vmul.f32 %v3777, %v3785
        %v3787 = vadd.f32 %v3786, 1.1283791
        %v3788 = vmul.f32 %v3690, %v3787
        %v3789 = vmul.f32 %v3777, 3.8918573e-05
        %v3790 = vadd.f32 %v3789, 0.001143296
        %v3791 = vmul.f32 %v3777, %v3790
        %v3792 = vadd.f32 %v3791, 0.014752088
        %v3793 = vmul.f32 %v3777, %v3792
        %v3794 = vadd.f32 %v3793, 0.112945676
        %v3795 = vmul.f32 %v3777, %v3794
        %v3796 = vadd.f32 %v3795, 0.4994258
        %v3797 = vmul.f32 %v3777, %v3796
        %v3798 = vadd.f32 %v3797, 1.0
        %v3799 = vrcp.pop %v3798
        %v3800 = vmul.f32 %v3798, %v3799
        %v3801 = vsub.f32 1.0, %v3800
        %v3802 = vmul.f32 %v3799, %v3801
        %v3803 = vadd.f32 %v3799, %v3802
        %vm3804 = vweird.f32 %v3798
        %vm3805 = vweird.f32 %v3799
        %vm3806 = vmor %vm3804, %vm3805
        %v3807 = vsel %vm3806, %v3799, %v3803
        %v3808 = vand.u32 2147483647, %v3798
        %vm3809 = vcmp.eq.f32.partialorder %v3808, 8.507059e+37
        %v3810 = vand.u32 %v3798, 2147483648
        %v3811 = vor.u32 1.1754944e-38, %v3810
        %v3812 = vsel %vm3809, %v3811, %v3807
        %v3813 = vmul.f32 %v3788, %v3812
        %v3814 = vmin.f32 %v3813, 1.0
        %v3815 = vmax.f32 %v3814, -1.0
        %v3816 = vmul.f32 %v3691, %v3691
        %v3817 = vmin.f32 16.0, %v3816
        %v3818 = vmul.f32 %v3817, 2.1237322e-06
        %v3819 = vadd.f32 %v3818, 0.00028619796
        %v3820 = vmul.f32 %v3817, %v3819
        %v3821 = vadd.f32 %v3820, 0.0036580483
        %v3822 = vmul.f32 %v3817, %v3821
        %v3823 = vadd.f32 %v3822, 0.05243302
        %v3824 = vmul.f32 %v3817, %v3823
        %v3825 = vadd.f32 %v3824, 0.18741608
        %v3826 = vmul.f32 %v3817, %v3825
        %v3827 = vadd.f32 %v3826, 1.1283791
        %v3828 = vmul.f32 %v3691, %v3827
        %v3829 = vmul.f32 %v3817, 3.8918573e-05
        %v3830 = vadd.f32 %v3829, 0.001143296
        %v3831 = vmul.f32 %v3817, %v3830
        %v3832 = vadd.f32 %v3831, 0.014752088
        %v3833 = vmul.f32 %v3817, %v3832
        %v3834 = vadd.f32 %v3833, 0.112945676
        %v3835 = vmul.f32 %v3817, %v3834
        %v3836 = vadd.f32 %v3835, 0.4994258
        %v3837 = vmul.f32 %v3817, %v3836
        %v3838 = vadd.f32 %v3837, 1.0
        %v3839 = vrcp.pop %v3838
        %v3840 = vmul.f32 %v3838, %v3839
        %v3841 = vsub.f32 1.0, %v3840
        %v3842 = vmul.f32 %v3839, %v3841
        %v3843 = vadd.f32 %v3839, %v3842
        %vm3844 = vweird.f32 %v3838
        %vm3845 = vweird.f32 %v3839
        %vm3846 = vmor %vm3844, %vm3845
        %v3847 = vsel %vm3846, %v3839, %v3843
        %v3848 = vand.u32 2147483647, %v3838
        %vm3849 = vcmp.eq.f32.partialorder %v3848, 8.507059e+37
        %v3850 = vand.u32 %v3838, 2147483648
        %v3851 = vor.u32 1.1754944e-38, %v3850
        %v3852 = vsel %vm3849, %v3851, %v3847
        %v3853 = vmul.f32 %v3828, %v3852
        %v3854 = vmin.f32 %v3853, 1.0
        %v3855 = vmax.f32 %v3854, -1.0
        %v3856 = vmul.f32 %v3692, %v3692
        %v3857 = vmin.f32 16.0, %v3856
        %v3858 = vmul.f32 %v3857, 2.1237322e-06
        %v3859 = vadd.f32 %v3858, 0.00028619796
        %v3860 = vmul.f32 %v3857, %v3859
        %v3861 = vadd.f32 %v3860, 0.0036580483
        %v3862 = vmul.f32 %v3857, %v3861
        %v3863 = vadd.f32 %v3862, 0.05243302
        %v3864 = vmul.f32 %v3857, %v3863
        %v3865 = vadd.f32 %v3864, 0.18741608
        %v3866 = vmul.f32 %v3857, %v3865
        %v3867 = vadd.f32 %v3866, 1.1283791
        %v3868 = vmul.f32 %v3692, %v3867
        %v3869 = vmul.f32 %v3857, 3.8918573e-05
        %v3870 = vadd.f32 %v3869, 0.001143296
        %v3871 = vmul.f32 %v3857, %v3870
        %v3872 = vadd.f32 %v3871, 0.014752088
        %v3873 = vmul.f32 %v3857, %v3872
        %v3874 = vadd.f32 %v3873, 0.112945676
        %v3875 = vmul.f32 %v3857, %v3874
        %v3876 = vadd.f32 %v3875, 0.4994258
        %v3877 = vmul.f32 %v3857, %v3876
        %v3878 = vadd.f32 %v3877, 1.0
        %v3879 = vrcp.pop %v3878
        %v3880 = vmul.f32 %v3878, %v3879
        %v3881 = vsub.f32 1.0, %v3880
        %v3882 = vmul.f32 %v3879, %v3881
        %v3883 = vadd.f32 %v3879, %v3882
        %vm3884 = vweird.f32 %v3878
        %vm3885 = vweird.f32 %v3879
        %vm3886 = vmor %vm3884, %vm3885
        %v3887 = vsel %vm3886, %v3879, %v3883
        %v3888 = vand.u32 2147483647, %v3878
        %vm3889 = vcmp.eq.f32.partialorder %v3888, 8.507059e+37
        %v3890 = vand.u32 %v3878, 2147483648
        %v3891 = vor.u32 1.1754944e-38, %v3890
        %v3892 = vsel %vm3889, %v3891, %v3887
        %v3893 = vmul.f32 %v3868, %v3892
        %v3894 = vmin.f32 %v3893, 1.0
        %v3895 = vmax.f32 %v3894, -1.0
        %v3896 = vmul.f32 %v3693, %v3693
        %v3897 = vmin.f32 16.0, %v3896
        %v3898 = vmul.f32 %v3897, 2.1237322e-06
        %v3899 = vadd.f32 %v3898, 0.00028619796
        %v3900 = vmul.f32 %v3897, %v3899
        %v3901 = vadd.f32 %v3900, 0.0036580483
        %v3902 = vmul.f32 %v3897, %v3901
        %v3903 = vadd.f32 %v3902, 0.05243302
        %v3904 = vmul.f32 %v3897, %v3903
        %v3905 = vadd.f32 %v3904, 0.18741608
        %v3906 = vmul.f32 %v3897, %v3905
        %v3907 = vadd.f32 %v3906, 1.1283791
        %v3908 = vmul.f32 %v3693, %v3907
        %v3909 = vmul.f32 %v3897, 3.8918573e-05
        %v3910 = vadd.f32 %v3909, 0.001143296
        %v3911 = vmul.f32 %v3897, %v3910
        %v3912 = vadd.f32 %v3911, 0.014752088
        %v3913 = vmul.f32 %v3897, %v3912
        %v3914 = vadd.f32 %v3913, 0.112945676
        %v3915 = vmul.f32 %v3897, %v3914
        %v3916 = vadd.f32 %v3915, 0.4994258
        %v3917 = vmul.f32 %v3897, %v3916
        %v3918 = vadd.f32 %v3917, 1.0
        %v3919 = vrcp.pop %v3918
        %v3920 = vmul.f32 %v3918, %v3919
        %v3921 = vsub.f32 1.0, %v3920
        %v3922 = vmul.f32 %v3919, %v3921
        %v3923 = vadd.f32 %v3919, %v3922
        %vm3924 = vweird.f32 %v3918
        %vm3925 = vweird.f32 %v3919
        %vm3926 = vmor %vm3924, %vm3925
        %v3927 = vsel %vm3926, %v3919, %v3923
        %v3928 = vand.u32 2147483647, %v3918
        %vm3929 = vcmp.eq.f32.partialorder %v3928, 8.507059e+37
        %v3930 = vand.u32 %v3918, 2147483648
        %v3931 = vor.u32 1.1754944e-38, %v3930
        %v3932 = vsel %vm3929, %v3931, %v3927
        %v3933 = vmul.f32 %v3908, %v3932
        %v3934 = vmin.f32 %v3933, 1.0
        %v3935 = vmax.f32 %v3934, -1.0
        %v3936 = vmul.f32 %v3694, %v3694
        %v3937 = vmin.f32 16.0, %v3936
        %v3938 = vmul.f32 %v3937, 2.1237322e-06
        %v3939 = vadd.f32 %v3938, 0.00028619796
        %v3940 = vmul.f32 %v3937, %v3939
        %v3941 = vadd.f32 %v3940, 0.0036580483
        %v3942 = vmul.f32 %v3937, %v3941
        %v3943 = vadd.f32 %v3942, 0.05243302
        %v3944 = vmul.f32 %v3937, %v3943
        %v3945 = vadd.f32 %v3944, 0.18741608
        %v3946 = vmul.f32 %v3937, %v3945
        %v3947 = vadd.f32 %v3946, 1.1283791
        %v3948 = vmul.f32 %v3694, %v3947
        %v3949 = vmul.f32 %v3937, 3.8918573e-05
        %v3950 = vadd.f32 %v3949, 0.001143296
        %v3951 = vmul.f32 %v3937, %v3950
        %v3952 = vadd.f32 %v3951, 0.014752088
        %v3953 = vmul.f32 %v3937, %v3952
        %v3954 = vadd.f32 %v3953, 0.112945676
        %v3955 = vmul.f32 %v3937, %v3954
        %v3956 = vadd.f32 %v3955, 0.4994258
        %v3957 = vmul.f32 %v3937, %v3956
        %v3958 = vadd.f32 %v3957, 1.0
        %v3959 = vrcp.pop %v3958
        %v3960 = vmul.f32 %v3958, %v3959
        %v3961 = vsub.f32 1.0, %v3960
        %v3962 = vmul.f32 %v3959, %v3961
        %v3963 = vadd.f32 %v3959, %v3962
        %vm3964 = vweird.f32 %v3958
        %vm3965 = vweird.f32 %v3959
        %vm3966 = vmor %vm3964, %vm3965
        %v3967 = vsel %vm3966, %v3959, %v3963
        %v3968 = vand.u32 2147483647, %v3958
        %vm3969 = vcmp.eq.f32.partialorder %v3968, 8.507059e+37
        %v3970 = vand.u32 %v3958, 2147483648
        %v3971 = vor.u32 1.1754944e-38, %v3970
        %v3972 = vsel %vm3969, %v3971, %v3967
        %v3973 = vmul.f32 %v3948, %v3972
        %v3974 = vmin.f32 %v3973, 1.0
        %v3975 = vmax.f32 %v3974, -1.0
        %v3976 = vmul.f32 %v3695, %v3695
        %v3977 = vmin.f32 16.0, %v3976
        %v3978 = vmul.f32 %v3977, 2.1237322e-06
        %v3979 = vadd.f32 %v3978, 0.00028619796
        %v3980 = vmul.f32 %v3977, %v3979
        %v3981 = vadd.f32 %v3980, 0.0036580483
        %v3982 = vmul.f32 %v3977, %v3981
        %v3983 = vadd.f32 %v3982, 0.05243302
        %v3984 = vmul.f32 %v3977, %v3983
        %v3985 = vadd.f32 %v3984, 0.18741608
        %v3986 = vmul.f32 %v3977, %v3985
        %v3987 = vadd.f32 %v3986, 1.1283791
        %v3988 = vmul.f32 %v3695, %v3987
        %v3989 = vmul.f32 %v3977, 3.8918573e-05
        %v3990 = vadd.f32 %v3989, 0.001143296
        %v3991 = vmul.f32 %v3977, %v3990
        %v3992 = vadd.f32 %v3991, 0.014752088
        %v3993 = vmul.f32 %v3977, %v3992
        %v3994 = vadd.f32 %v3993, 0.112945676
        %v3995 = vmul.f32 %v3977, %v3994
        %v3996 = vadd.f32 %v3995, 0.4994258
        %v3997 = vmul.f32 %v3977, %v3996
        %v3998 = vadd.f32 %v3997, 1.0
        %v3999 = vrcp.pop %v3998
        %v4000 = vmul.f32 %v3998, %v3999
        %v4001 = vsub.f32 1.0, %v4000
        %v4002 = vmul.f32 %v3999, %v4001
        %v4003 = vadd.f32 %v3999, %v4002
        %vm4004 = vweird.f32 %v3998
        %vm4005 = vweird.f32 %v3999
        %vm4006 = vmor %vm4004, %vm4005
        %v4007 = vsel %vm4006, %v3999, %v4003
        %v4008 = vand.u32 2147483647, %v3998
        %vm4009 = vcmp.eq.f32.partialorder %v4008, 8.507059e+37
        %v4010 = vand.u32 %v3998, 2147483648
        %v4011 = vor.u32 1.1754944e-38, %v4010
        %v4012 = vsel %vm4009, %v4011, %v4007
        %v4013 = vmul.f32 %v3988, %v4012
        %v4014 = vmin.f32 %v4013, 1.0
        %v4015 = vmax.f32 %v4014, -1.0
        %v4016 = vadd.f32 %v3735, 1.0
        %v4017 = vadd.f32 %v3775, 1.0
        %v4018 = vadd.f32 %v3815, 1.0
        %v4019 = vadd.f32 %v3855, 1.0
        %v4020 = vadd.f32 %v3895, 1.0
        %v4021 = vadd.f32 %v3935, 1.0
        %v4022 = vadd.f32 %v3975, 1.0
        %v4023 = vadd.f32 %v4015, 1.0
        %v4024 = vmul.f32 %v3680, %v4016
        %v4025 = vmul.f32 %v3681, %v4017
        %v4026 = vmul.f32 %v3682, %v4018
        %v4027 = vmul.f32 %v3683, %v4019
        %v4028 = vmul.f32 %v3684, %v4020
        %v4029 = vmul.f32 %v3685, %v4021
        %v4030 = vmul.f32 %v3686, %v4022
        %v4031 = vmul.f32 %v3687, %v4023
        %v4048 = vrot.slane %v417, 2
        %v4049 = vrot.slane %v418, 2
        %v4050 = vsel %vm633, %v4048, %v4049
        %v4051 = vrot.slane %v419, 2
        %v4052 = vrot.slane %v420, 2
        %v4053 = vsel %vm633, %v4051, %v4052
        %v4054 = vrot.slane %v421, 2
        %v4055 = vrot.slane %v422, 2
        %v4056 = vsel %vm633, %v4054, %v4055
        %v4057 = vrot.slane %v423, 2
        %v4058 = vrot.slane %v424, 2
        %v4059 = vsel %vm633, %v4057, %v4058
        %v4060 = vrot.slane %v425, 2
        %v4061 = vrot.slane %v426, 2
        %v4062 = vsel %vm633, %v4060, %v4061
        %v4063 = vrot.slane %v427, 2
        %v4064 = vrot.slane %v428, 2
        %v4065 = vsel %vm633, %v4063, %v4064
        %v4066 = vrot.slane %v429, 2
        %v4067 = vrot.slane %v430, 2
        %v4068 = vsel %vm633, %v4066, %v4067
        %v4069 = vrot.slane %v431, 2
        %v4070 = vrot.slane %v432, 2
        %v4071 = vsel %vm633, %v4069, %v4070
        %v4080 = vpack.c.bf16 %v4025, %v4024
        %v4081 = vpack.c.bf16 %v4027, %v4026
        %v4082 = vpack.c.bf16 %v4029, %v4028
        %v4083 = vpack.c.bf16 %v4031, %v4030
        %v4084 = vld [vmem:[%s8] sm:$0xf]
        %v4085 = vld [vmem:[%s8 + $0x4] sm:$0xf]
        %v4086 = vld [vmem:[%s8 + $0x8] sm:$0xf]
        %v4087 = vld [vmem:[%s8 + $0xc] sm:$0xf]
        %v4088 = vld [vmem:[%s8 + $0x10] sm:$0xf]
        %v4089 = vld [vmem:[%s8 + $0x14] sm:$0xf]
        %v4090 = vld [vmem:[%s8 + $0x18] sm:$0xf]
        %v4091 = vld [vmem:[%s8 + $0x1c] sm:$0xf]
        %v4092 = vpack.c.bf16 %v4053, %v4050
        %v4093 = vpack.c.bf16 %v4059, %v4056
        %v4094 = vpack.c.bf16 %v4065, %v4062
        %v4095 = vpack.c.bf16 %v4071, %v4068
        %v4096 = vld [vmem:[%s9] sm:$0xf]
        %v4097 = vld [vmem:[%s9 + $0x4] sm:$0xf]
        %v4098 = vld [vmem:[%s9 + $0x8] sm:$0xf]
        %v4099 = vld [vmem:[%s9 + $0xc] sm:$0xf]
        %v4100 = vld [vmem:[%s9 + $0x10] sm:$0xf]
        %v4101 = vld [vmem:[%s9 + $0x14] sm:$0xf]
        %v4102 = vld [vmem:[%s9 + $0x18] sm:$0xf]
        %v4103 = vld [vmem:[%s9 + $0x1c] sm:$0xf]
        %v4112 = vunpack.c.l.b16 %v4096
        %v4113 = vunpack.c.l.b16 %v4097
        %v4114 = vunpack.c.l.b16 %v4098
        %v4115 = vunpack.c.l.b16 %v4099
        %v4116 = vunpack.c.l.b16 %v4100
        %v4117 = vunpack.c.l.b16 %v4101
        %v4118 = vunpack.c.l.b16 %v4102
        %v4119 = vunpack.c.l.b16 %v4103
        %v4120 = vpack.c.b16 %v4113, %v4112
        %v4121 = vpack.c.b16 %v4115, %v4114
        %v4122 = vpack.c.b16 %v4117, %v4116
        %v4123 = vpack.c.b16 %v4119, %v4118
        %v4129 = vsel %vm2931, %v4092, 0
        %v4132 = vsel %vm2931, %v4093, 0
        %v4135 = vsel %vm2931, %v4094, 0
        %v4138 = vsel %vm2931, %v4095, 0
        %4140 = vmatpush.bf16.msra.mxu0 0
        %4141 = vmatpush.bf16.msra.mxu0 0
        %4142 = vmatpush.bf16.msra.mxu0 0
        %4143 = vmatpush.bf16.msra.mxu0 0
        %4144 = vmatpush.bf16.msra.mxu0 %v4123
        %4145 = vmatpush.bf16.msra.mxu0 %v4122
        %4146 = vmatpush.bf16.msra.mxu0 %v4121
        %4147 = vmatpush.bf16.msra.mxu0 %v4120
        %4148 = vmatmul.bf16.gmra.mxu0 %v4129
        %v4149 = vpop.f32.mrf.mxu0
        %v4150 = vadd.f32 0.0, %v4149
        %v4151 = vpop.f32.mrf.mxu0
        %v4152 = vadd.f32 0.0, %v4151
        %4153 = vmatmul.bf16.gmra.mxu0 %v4132
        %v4154 = vpop.f32.mrf.mxu0
        %v4155 = vadd.f32 0.0, %v4154
        %v4156 = vpop.f32.mrf.mxu0
        %v4157 = vadd.f32 0.0, %v4156
        %4158 = vmatmul.bf16.gmra.mxu0 %v4135
        %v4159 = vpop.f32.mrf.mxu0
        %v4160 = vadd.f32 0.0, %v4159
        %v4161 = vpop.f32.mrf.mxu0
        %v4162 = vadd.f32 0.0, %v4161
        %4163 = vmatmul.bf16.gmra.mxu0 %v4138
        %v4164 = vpop.f32.mrf.mxu0
        %v4165 = vadd.f32 0.0, %v4164
        %v4166 = vpop.f32.mrf.mxu0
        %v4167 = vadd.f32 0.0, %v4166
        %4168 = vdwg.mxu0
        %v4177 = vunpack.c.l.b16 %v4084
        %v4178 = vunpack.c.l.b16 %v4085
        %v4179 = vunpack.c.l.b16 %v4086
        %v4180 = vunpack.c.l.b16 %v4087
        %v4181 = vunpack.c.l.b16 %v4088
        %v4182 = vunpack.c.l.b16 %v4089
        %v4183 = vunpack.c.l.b16 %v4090
        %v4184 = vunpack.c.l.b16 %v4091
        %v4185 = vpack.c.b16 %v4178, %v4177
        %v4186 = vpack.c.b16 %v4180, %v4179
        %v4187 = vpack.c.b16 %v4182, %v4181
        %v4188 = vpack.c.b16 %v4184, %v4183
        %v4194 = vsel %vm2931, %v4080, 0
        %v4197 = vsel %vm2931, %v4081, 0
        %v4200 = vsel %vm2931, %v4082, 0
        %v4203 = vsel %vm2931, %v4083, 0
        %4205 = vmatpush.bf16.msra.mxu0 0
        %4206 = vmatpush.bf16.msra.mxu0 0
        %4207 = vmatpush.bf16.msra.mxu0 0
        %4208 = vmatpush.bf16.msra.mxu0 0
        %4209 = vmatpush.bf16.msra.mxu0 %v4188
        %4210 = vmatpush.bf16.msra.mxu0 %v4187
        %4211 = vmatpush.bf16.msra.mxu0 %v4186
        %4212 = vmatpush.bf16.msra.mxu0 %v4185
        %4213 = vmatmul.bf16.gmra.mxu0 %v4194
        %v4214 = vpop.f32.mrf.mxu0
        %v4215 = vadd.f32 %v4150, %v4214
        %v4216 = vpop.f32.mrf.mxu0
        %v4217 = vadd.f32 %v4152, %v4216
        %4218 = vmatmul.bf16.gmra.mxu0 %v4197
        %v4219 = vpop.f32.mrf.mxu0
        %v4220 = vadd.f32 %v4155, %v4219
        %v4221 = vpop.f32.mrf.mxu0
        %v4222 = vadd.f32 %v4157, %v4221
        %4223 = vmatmul.bf16.gmra.mxu0 %v4200
        %v4224 = vpop.f32.mrf.mxu0
        %v4225 = vadd.f32 %v4160, %v4224
        %v4226 = vpop.f32.mrf.mxu0
        %v4227 = vadd.f32 %v4162, %v4226
        %4228 = vmatmul.bf16.gmra.mxu0 %v4203
        %v4229 = vpop.f32.mrf.mxu0
        %v4230 = vadd.f32 %v4165, %v4229
        %v4231 = vpop.f32.mrf.mxu0
        %v4232 = vadd.f32 %v4167, %v4231
        %4233 = vdwg.mxu0
        %v4234 = vld [vmem:[%s10] sm:$0x1]
        %v4236 = vperm.slane %v4234, 0
        %v4238 = vmul.f32 %v4215, %v4236
        %v4239 = vmul.f32 %v4217, %v4236
        %v4240 = vmul.f32 %v4220, %v4236
        %v4241 = vmul.f32 %v4222, %v4236
        %v4242 = vmul.f32 %v4225, %v4236
        %v4243 = vmul.f32 %v4227, %v4236
        %v4244 = vmul.f32 %v4230, %v4236
        %v4245 = vmul.f32 %v4232, %v4236
        %v4246 = vld [vmem:[%s11] sm:$0x1]
        %v4248 = vperm.slane %v4246, 0
        %v4250 = vadd.f32 %v4238, %v4248
        %v4251 = vadd.f32 %v4239, %v4248
        %v4252 = vadd.f32 %v4240, %v4248
        %v4253 = vadd.f32 %v4241, %v4248
        %v4254 = vadd.f32 %v4242, %v4248
        %v4255 = vadd.f32 %v4243, %v4248
        %v4256 = vadd.f32 %v4244, %v4248
        %v4257 = vadd.f32 %v4245, %v4248
        %v4258 = vmul.f32 %v4250, 0.5
        %v4259 = vmul.f32 %v4251, 0.5
        %v4260 = vmul.f32 %v4252, 0.5
        %v4261 = vmul.f32 %v4253, 0.5
        %v4262 = vmul.f32 %v4254, 0.5
        %v4263 = vmul.f32 %v4255, 0.5
        %v4264 = vmul.f32 %v4256, 0.5
        %v4265 = vmul.f32 %v4257, 0.5
        %v4266 = vmul.f32 %v4250, %v1280
        %v4267 = vmul.f32 %v4251, %v1280
        %v4268 = vmul.f32 %v4252, %v1280
        %v4269 = vmul.f32 %v4253, %v1280
        %v4270 = vmul.f32 %v4254, %v1280
        %v4271 = vmul.f32 %v4255, %v1280
        %v4272 = vmul.f32 %v4256, %v1280
        %v4273 = vmul.f32 %v4257, %v1280
        %v4274 = vmul.f32 %v4266, %v4266
        %v4275 = vmin.f32 16.0, %v4274
        %v4276 = vmul.f32 %v4275, 2.1237322e-06
        %v4277 = vadd.f32 %v4276, 0.00028619796
        %v4278 = vmul.f32 %v4275, %v4277
        %v4279 = vadd.f32 %v4278, 0.0036580483
        %v4280 = vmul.f32 %v4275, %v4279
        %v4281 = vadd.f32 %v4280, 0.05243302
        %v4282 = vmul.f32 %v4275, %v4281
        %v4283 = vadd.f32 %v4282, 0.18741608
        %v4284 = vmul.f32 %v4275, %v4283
        %v4285 = vadd.f32 %v4284, 1.1283791
        %v4286 = vmul.f32 %v4266, %v4285
        %v4287 = vmul.f32 %v4275, 3.8918573e-05
        %v4288 = vadd.f32 %v4287, 0.001143296
        %v4289 = vmul.f32 %v4275, %v4288
        %v4290 = vadd.f32 %v4289, 0.014752088
        %v4291 = vmul.f32 %v4275, %v4290
        %v4292 = vadd.f32 %v4291, 0.112945676
        %v4293 = vmul.f32 %v4275, %v4292
        %v4294 = vadd.f32 %v4293, 0.4994258
        %v4295 = vmul.f32 %v4275, %v4294
        %v4296 = vadd.f32 %v4295, 1.0
        %v4297 = vrcp.pop %v4296
        %v4298 = vmul.f32 %v4296, %v4297
        %v4299 = vsub.f32 1.0, %v4298
        %v4300 = vmul.f32 %v4297, %v4299
        %v4301 = vadd.f32 %v4297, %v4300
        %vm4302 = vweird.f32 %v4296
        %vm4303 = vweird.f32 %v4297
        %vm4304 = vmor %vm4302, %vm4303
        %v4305 = vsel %vm4304, %v4297, %v4301
        %v4306 = vand.u32 2147483647, %v4296
        %vm4307 = vcmp.eq.f32.partialorder %v4306, 8.507059e+37
        %v4308 = vand.u32 %v4296, 2147483648
        %v4309 = vor.u32 1.1754944e-38, %v4308
        %v4310 = vsel %vm4307, %v4309, %v4305
        %v4311 = vmul.f32 %v4286, %v4310
        %v4312 = vmin.f32 %v4311, 1.0
        %v4313 = vmax.f32 %v4312, -1.0
        %v4314 = vmul.f32 %v4267, %v4267
        %v4315 = vmin.f32 16.0, %v4314
        %v4316 = vmul.f32 %v4315, 2.1237322e-06
        %v4317 = vadd.f32 %v4316, 0.00028619796
        %v4318 = vmul.f32 %v4315, %v4317
        %v4319 = vadd.f32 %v4318, 0.0036580483
        %v4320 = vmul.f32 %v4315, %v4319
        %v4321 = vadd.f32 %v4320, 0.05243302
        %v4322 = vmul.f32 %v4315, %v4321
        %v4323 = vadd.f32 %v4322, 0.18741608
        %v4324 = vmul.f32 %v4315, %v4323
        %v4325 = vadd.f32 %v4324, 1.1283791
        %v4326 = vmul.f32 %v4267, %v4325
        %v4327 = vmul.f32 %v4315, 3.8918573e-05
        %v4328 = vadd.f32 %v4327, 0.001143296
        %v4329 = vmul.f32 %v4315, %v4328
        %v4330 = vadd.f32 %v4329, 0.014752088
        %v4331 = vmul.f32 %v4315, %v4330
        %v4332 = vadd.f32 %v4331, 0.112945676
        %v4333 = vmul.f32 %v4315, %v4332
        %v4334 = vadd.f32 %v4333, 0.4994258
        %v4335 = vmul.f32 %v4315, %v4334
        %v4336 = vadd.f32 %v4335, 1.0
        %v4337 = vrcp.pop %v4336
        %v4338 = vmul.f32 %v4336, %v4337
        %v4339 = vsub.f32 1.0, %v4338
        %v4340 = vmul.f32 %v4337, %v4339
        %v4341 = vadd.f32 %v4337, %v4340
        %vm4342 = vweird.f32 %v4336
        %vm4343 = vweird.f32 %v4337
        %vm4344 = vmor %vm4342, %vm4343
        %v4345 = vsel %vm4344, %v4337, %v4341
        %v4346 = vand.u32 2147483647, %v4336
        %vm4347 = vcmp.eq.f32.partialorder %v4346, 8.507059e+37
        %v4348 = vand.u32 %v4336, 2147483648
        %v4349 = vor.u32 1.1754944e-38, %v4348
        %v4350 = vsel %vm4347, %v4349, %v4345
        %v4351 = vmul.f32 %v4326, %v4350
        %v4352 = vmin.f32 %v4351, 1.0
        %v4353 = vmax.f32 %v4352, -1.0
        %v4354 = vmul.f32 %v4268, %v4268
        %v4355 = vmin.f32 16.0, %v4354
        %v4356 = vmul.f32 %v4355, 2.1237322e-06
        %v4357 = vadd.f32 %v4356, 0.00028619796
        %v4358 = vmul.f32 %v4355, %v4357
        %v4359 = vadd.f32 %v4358, 0.0036580483
        %v4360 = vmul.f32 %v4355, %v4359
        %v4361 = vadd.f32 %v4360, 0.05243302
        %v4362 = vmul.f32 %v4355, %v4361
        %v4363 = vadd.f32 %v4362, 0.18741608
        %v4364 = vmul.f32 %v4355, %v4363
        %v4365 = vadd.f32 %v4364, 1.1283791
        %v4366 = vmul.f32 %v4268, %v4365
        %v4367 = vmul.f32 %v4355, 3.8918573e-05
        %v4368 = vadd.f32 %v4367, 0.001143296
        %v4369 = vmul.f32 %v4355, %v4368
        %v4370 = vadd.f32 %v4369, 0.014752088
        %v4371 = vmul.f32 %v4355, %v4370
        %v4372 = vadd.f32 %v4371, 0.112945676
        %v4373 = vmul.f32 %v4355, %v4372
        %v4374 = vadd.f32 %v4373, 0.4994258
        %v4375 = vmul.f32 %v4355, %v4374
        %v4376 = vadd.f32 %v4375, 1.0
        %v4377 = vrcp.pop %v4376
        %v4378 = vmul.f32 %v4376, %v4377
        %v4379 = vsub.f32 1.0, %v4378
        %v4380 = vmul.f32 %v4377, %v4379
        %v4381 = vadd.f32 %v4377, %v4380
        %vm4382 = vweird.f32 %v4376
        %vm4383 = vweird.f32 %v4377
        %vm4384 = vmor %vm4382, %vm4383
        %v4385 = vsel %vm4384, %v4377, %v4381
        %v4386 = vand.u32 2147483647, %v4376
        %vm4387 = vcmp.eq.f32.partialorder %v4386, 8.507059e+37
        %v4388 = vand.u32 %v4376, 2147483648
        %v4389 = vor.u32 1.1754944e-38, %v4388
        %v4390 = vsel %vm4387, %v4389, %v4385
        %v4391 = vmul.f32 %v4366, %v4390
        %v4392 = vmin.f32 %v4391, 1.0
        %v4393 = vmax.f32 %v4392, -1.0
        %v4394 = vmul.f32 %v4269, %v4269
        %v4395 = vmin.f32 16.0, %v4394
        %v4396 = vmul.f32 %v4395, 2.1237322e-06
        %v4397 = vadd.f32 %v4396, 0.00028619796
        %v4398 = vmul.f32 %v4395, %v4397
        %v4399 = vadd.f32 %v4398, 0.0036580483
        %v4400 = vmul.f32 %v4395, %v4399
        %v4401 = vadd.f32 %v4400, 0.05243302
        %v4402 = vmul.f32 %v4395, %v4401
        %v4403 = vadd.f32 %v4402, 0.18741608
        %v4404 = vmul.f32 %v4395, %v4403
        %v4405 = vadd.f32 %v4404, 1.1283791
        %v4406 = vmul.f32 %v4269, %v4405
        %v4407 = vmul.f32 %v4395, 3.8918573e-05
        %v4408 = vadd.f32 %v4407, 0.001143296
        %v4409 = vmul.f32 %v4395, %v4408
        %v4410 = vadd.f32 %v4409, 0.014752088
        %v4411 = vmul.f32 %v4395, %v4410
        %v4412 = vadd.f32 %v4411, 0.112945676
        %v4413 = vmul.f32 %v4395, %v4412
        %v4414 = vadd.f32 %v4413, 0.4994258
        %v4415 = vmul.f32 %v4395, %v4414
        %v4416 = vadd.f32 %v4415, 1.0
        %v4417 = vrcp.pop %v4416
        %v4418 = vmul.f32 %v4416, %v4417
        %v4419 = vsub.f32 1.0, %v4418
        %v4420 = vmul.f32 %v4417, %v4419
        %v4421 = vadd.f32 %v4417, %v4420
        %vm4422 = vweird.f32 %v4416
        %vm4423 = vweird.f32 %v4417
        %vm4424 = vmor %vm4422, %vm4423
        %v4425 = vsel %vm4424, %v4417, %v4421
        %v4426 = vand.u32 2147483647, %v4416
        %vm4427 = vcmp.eq.f32.partialorder %v4426, 8.507059e+37
        %v4428 = vand.u32 %v4416, 2147483648
        %v4429 = vor.u32 1.1754944e-38, %v4428
        %v4430 = vsel %vm4427, %v4429, %v4425
        %v4431 = vmul.f32 %v4406, %v4430
        %v4432 = vmin.f32 %v4431, 1.0
        %v4433 = vmax.f32 %v4432, -1.0
        %v4434 = vmul.f32 %v4270, %v4270
        %v4435 = vmin.f32 16.0, %v4434
        %v4436 = vmul.f32 %v4435, 2.1237322e-06
        %v4437 = vadd.f32 %v4436, 0.00028619796
        %v4438 = vmul.f32 %v4435, %v4437
        %v4439 = vadd.f32 %v4438, 0.0036580483
        %v4440 = vmul.f32 %v4435, %v4439
        %v4441 = vadd.f32 %v4440, 0.05243302
        %v4442 = vmul.f32 %v4435, %v4441
        %v4443 = vadd.f32 %v4442, 0.18741608
        %v4444 = vmul.f32 %v4435, %v4443
        %v4445 = vadd.f32 %v4444, 1.1283791
        %v4446 = vmul.f32 %v4270, %v4445
        %v4447 = vmul.f32 %v4435, 3.8918573e-05
        %v4448 = vadd.f32 %v4447, 0.001143296
        %v4449 = vmul.f32 %v4435, %v4448
        %v4450 = vadd.f32 %v4449, 0.014752088
        %v4451 = vmul.f32 %v4435, %v4450
        %v4452 = vadd.f32 %v4451, 0.112945676
        %v4453 = vmul.f32 %v4435, %v4452
        %v4454 = vadd.f32 %v4453, 0.4994258
        %v4455 = vmul.f32 %v4435, %v4454
        %v4456 = vadd.f32 %v4455, 1.0
        %v4457 = vrcp.pop %v4456
        %v4458 = vmul.f32 %v4456, %v4457
        %v4459 = vsub.f32 1.0, %v4458
        %v4460 = vmul.f32 %v4457, %v4459
        %v4461 = vadd.f32 %v4457, %v4460
        %vm4462 = vweird.f32 %v4456
        %vm4463 = vweird.f32 %v4457
        %vm4464 = vmor %vm4462, %vm4463
        %v4465 = vsel %vm4464, %v4457, %v4461
        %v4466 = vand.u32 2147483647, %v4456
        %vm4467 = vcmp.eq.f32.partialorder %v4466, 8.507059e+37
        %v4468 = vand.u32 %v4456, 2147483648
        %v4469 = vor.u32 1.1754944e-38, %v4468
        %v4470 = vsel %vm4467, %v4469, %v4465
        %v4471 = vmul.f32 %v4446, %v4470
        %v4472 = vmin.f32 %v4471, 1.0
        %v4473 = vmax.f32 %v4472, -1.0
        %v4474 = vmul.f32 %v4271, %v4271
        %v4475 = vmin.f32 16.0, %v4474
        %v4476 = vmul.f32 %v4475, 2.1237322e-06
        %v4477 = vadd.f32 %v4476, 0.00028619796
        %v4478 = vmul.f32 %v4475, %v4477
        %v4479 = vadd.f32 %v4478, 0.0036580483
        %v4480 = vmul.f32 %v4475, %v4479
        %v4481 = vadd.f32 %v4480, 0.05243302
        %v4482 = vmul.f32 %v4475, %v4481
        %v4483 = vadd.f32 %v4482, 0.18741608
        %v4484 = vmul.f32 %v4475, %v4483
        %v4485 = vadd.f32 %v4484, 1.1283791
        %v4486 = vmul.f32 %v4271, %v4485
        %v4487 = vmul.f32 %v4475, 3.8918573e-05
        %v4488 = vadd.f32 %v4487, 0.001143296
        %v4489 = vmul.f32 %v4475, %v4488
        %v4490 = vadd.f32 %v4489, 0.014752088
        %v4491 = vmul.f32 %v4475, %v4490
        %v4492 = vadd.f32 %v4491, 0.112945676
        %v4493 = vmul.f32 %v4475, %v4492
        %v4494 = vadd.f32 %v4493, 0.4994258
        %v4495 = vmul.f32 %v4475, %v4494
        %v4496 = vadd.f32 %v4495, 1.0
        %v4497 = vrcp.pop %v4496
        %v4498 = vmul.f32 %v4496, %v4497
        %v4499 = vsub.f32 1.0, %v4498
        %v4500 = vmul.f32 %v4497, %v4499
        %v4501 = vadd.f32 %v4497, %v4500
        %vm4502 = vweird.f32 %v4496
        %vm4503 = vweird.f32 %v4497
        %vm4504 = vmor %vm4502, %vm4503
        %v4505 = vsel %vm4504, %v4497, %v4501
        %v4506 = vand.u32 2147483647, %v4496
        %vm4507 = vcmp.eq.f32.partialorder %v4506, 8.507059e+37
        %v4508 = vand.u32 %v4496, 2147483648
        %v4509 = vor.u32 1.1754944e-38, %v4508
        %v4510 = vsel %vm4507, %v4509, %v4505
        %v4511 = vmul.f32 %v4486, %v4510
        %v4512 = vmin.f32 %v4511, 1.0
        %v4513 = vmax.f32 %v4512, -1.0
        %v4514 = vmul.f32 %v4272, %v4272
        %v4515 = vmin.f32 16.0, %v4514
        %v4516 = vmul.f32 %v4515, 2.1237322e-06
        %v4517 = vadd.f32 %v4516, 0.00028619796
        %v4518 = vmul.f32 %v4515, %v4517
        %v4519 = vadd.f32 %v4518, 0.0036580483
        %v4520 = vmul.f32 %v4515, %v4519
        %v4521 = vadd.f32 %v4520, 0.05243302
        %v4522 = vmul.f32 %v4515, %v4521
        %v4523 = vadd.f32 %v4522, 0.18741608
        %v4524 = vmul.f32 %v4515, %v4523
        %v4525 = vadd.f32 %v4524, 1.1283791
        %v4526 = vmul.f32 %v4272, %v4525
        %v4527 = vmul.f32 %v4515, 3.8918573e-05
        %v4528 = vadd.f32 %v4527, 0.001143296
        %v4529 = vmul.f32 %v4515, %v4528
        %v4530 = vadd.f32 %v4529, 0.014752088
        %v4531 = vmul.f32 %v4515, %v4530
        %v4532 = vadd.f32 %v4531, 0.112945676
        %v4533 = vmul.f32 %v4515, %v4532
        %v4534 = vadd.f32 %v4533, 0.4994258
        %v4535 = vmul.f32 %v4515, %v4534
        %v4536 = vadd.f32 %v4535, 1.0
        %v4537 = vrcp.pop %v4536
        %v4538 = vmul.f32 %v4536, %v4537
        %v4539 = vsub.f32 1.0, %v4538
        %v4540 = vmul.f32 %v4537, %v4539
        %v4541 = vadd.f32 %v4537, %v4540
        %vm4542 = vweird.f32 %v4536
        %vm4543 = vweird.f32 %v4537
        %vm4544 = vmor %vm4542, %vm4543
        %v4545 = vsel %vm4544, %v4537, %v4541
        %v4546 = vand.u32 2147483647, %v4536
        %vm4547 = vcmp.eq.f32.partialorder %v4546, 8.507059e+37
        %v4548 = vand.u32 %v4536, 2147483648
        %v4549 = vor.u32 1.1754944e-38, %v4548
        %v4550 = vsel %vm4547, %v4549, %v4545
        %v4551 = vmul.f32 %v4526, %v4550
        %v4552 = vmin.f32 %v4551, 1.0
        %v4553 = vmax.f32 %v4552, -1.0
        %v4554 = vmul.f32 %v4273, %v4273
        %v4555 = vmin.f32 16.0, %v4554
        %v4556 = vmul.f32 %v4555, 2.1237322e-06
        %v4557 = vadd.f32 %v4556, 0.00028619796
        %v4558 = vmul.f32 %v4555, %v4557
        %v4559 = vadd.f32 %v4558, 0.0036580483
        %v4560 = vmul.f32 %v4555, %v4559
        %v4561 = vadd.f32 %v4560, 0.05243302
        %v4562 = vmul.f32 %v4555, %v4561
        %v4563 = vadd.f32 %v4562, 0.18741608
        %v4564 = vmul.f32 %v4555, %v4563
        %v4565 = vadd.f32 %v4564, 1.1283791
        %v4566 = vmul.f32 %v4273, %v4565
        %v4567 = vmul.f32 %v4555, 3.8918573e-05
        %v4568 = vadd.f32 %v4567, 0.001143296
        %v4569 = vmul.f32 %v4555, %v4568
        %v4570 = vadd.f32 %v4569, 0.014752088
        %v4571 = vmul.f32 %v4555, %v4570
        %v4572 = vadd.f32 %v4571, 0.112945676
        %v4573 = vmul.f32 %v4555, %v4572
        %v4574 = vadd.f32 %v4573, 0.4994258
        %v4575 = vmul.f32 %v4555, %v4574
        %v4576 = vadd.f32 %v4575, 1.0
        %v4577 = vrcp.pop %v4576
        %v4578 = vmul.f32 %v4576, %v4577
        %v4579 = vsub.f32 1.0, %v4578
        %v4580 = vmul.f32 %v4577, %v4579
        %v4581 = vadd.f32 %v4577, %v4580
        %vm4582 = vweird.f32 %v4576
        %vm4583 = vweird.f32 %v4577
        %vm4584 = vmor %vm4582, %vm4583
        %v4585 = vsel %vm4584, %v4577, %v4581
        %v4586 = vand.u32 2147483647, %v4576
        %vm4587 = vcmp.eq.f32.partialorder %v4586, 8.507059e+37
        %v4588 = vand.u32 %v4576, 2147483648
        %v4589 = vor.u32 1.1754944e-38, %v4588
        %v4590 = vsel %vm4587, %v4589, %v4585
        %v4591 = vmul.f32 %v4566, %v4590
        %v4592 = vmin.f32 %v4591, 1.0
        %v4593 = vmax.f32 %v4592, -1.0
        %v4594 = vadd.f32 %v4313, 1.0
        %v4595 = vadd.f32 %v4353, 1.0
        %v4596 = vadd.f32 %v4393, 1.0
        %v4597 = vadd.f32 %v4433, 1.0
        %v4598 = vadd.f32 %v4473, 1.0
        %v4599 = vadd.f32 %v4513, 1.0
        %v4600 = vadd.f32 %v4553, 1.0
        %v4601 = vadd.f32 %v4593, 1.0
        %v4602 = vmul.f32 %v4258, %v4594
        %v4603 = vmul.f32 %v4259, %v4595
        %v4604 = vmul.f32 %v4260, %v4596
        %v4605 = vmul.f32 %v4261, %v4597
        %v4606 = vmul.f32 %v4262, %v4598
        %v4607 = vmul.f32 %v4263, %v4599
        %v4608 = vmul.f32 %v4264, %v4600
        %v4609 = vmul.f32 %v4265, %v4601
        %4610 = vst.msk [vmem:[%s406] sm:$0xff] %vm2931, %v4602
        %4611 = vst.msk [vmem:[%s406 + $0x8] sm:$0xff] %vm2931, %v4603
        %4612 = vst.msk [vmem:[%s406 + $0x10] sm:$0xff] %vm2931, %v4604
        %4613 = vst.msk [vmem:[%s406 + $0x18] sm:$0xff] %vm2931, %v4605
        %4614 = vst.msk [vmem:[%s406 + $0x20] sm:$0xff] %vm2931, %v4606
        %4615 = vst.msk [vmem:[%s406 + $0x28] sm:$0xff] %vm2931, %v4607
        %4616 = vst.msk [vmem:[%s406 + $0x30] sm:$0xff] %vm2931, %v4608
        %4617 = vst.msk [vmem:[%s406 + $0x38] sm:$0xff] %vm2931, %v4609
        %s4618 = sand.u32 %s291, 1
        %s4619 = scalar_lea.sflag [#allocation3], %s4618
        %s4620 = sand.u32 %s291, 1
        %s4621 = smul.addr %s4620, 64
        %s4622 = scalar_lea.vmem [#allocation2], %s4621
        // Predicated region
        $region69: #{cee_forward.3} parent=67 // pred_check
          %p4623 = pneg %p301
        $region70: #{cee_forward.3} parent=67 // pred_check_branch
          %4625 = sbr.rel (%p4623) target = $region72
        $region71: #{cee_forward.3} parent=67 // pred_region
          %4627 = vsyncadd %s4619, 0
          %s4628 = smul.addr %s26, 8
          %s4629 = smul.addr %s4628, 8
          %s4630 = scalar_lea.hbm %s12, %s4629
          %s4631 = sshll.u32 %s4622, 4
          %s4632 = int_to_ptr.vmem [resolvable:$true] %s4631
          %s4633 = sshll.u32 %s4630, 4
          %s4634 = int_to_ptr.hbm [resolvable:$true] %s4633
          %4639 = dma.vmem_to_hbm [thread:$0]  %s4632, 1024, %s4634, %s4619, 128, 128, 8
        $region72: #{cee_forward.3} parent=67 // pred_fallthru
          _
      $region68: #{cee_forward.3} parent=5 // pred_fallthru
        _
      %p4640 = scmp.le.s32.totalorder 2, %s21
      // Predicated region
      $region73: #{cee_forward.3} parent=5 // pred_check
        %p4641 = pneg %p4640
      $region74: #{cee_forward.3} parent=5 // pred_check_branch
        %4643 = sbr.rel (%p4641) target = $region76
      $region75: #{cee_forward.3} parent=5 // pred_region
        %s4644 = ssub.s32 %s21, 2
        // Predicated region
        $region77: #{cee_forward.3} parent=75 // pred_check
          %p4645 = pneg %p307
        $region78: #{cee_forward.3} parent=75 // pred_check_branch
          %4647 = sbr.rel (%p4645) target = $region80
        $region79: #{cee_forward.3} parent=75 // pred_region
          %s4648 = sand.u32 %s292, 1
          %s4649 = scalar_lea.sflag [#allocation3], %s4648
          %s4650 = sand.u32 %s292, 1
          %s4651 = smul.addr %s4650, 64
          %s4652 = scalar_lea.vmem [#allocation2], %s4651
          %4654 = dma.done %s4649, 1024
        $region80: #{cee_forward.3} parent=75 // pred_fallthru
          _
      $region76: #{cee_forward.3} parent=5 // pred_fallthru
        _
    $region6: #{cee_forward.3} parent=1 // loop_footer
      %s25 = sadd.s32 1, %s21
    $region7: #{cee_forward.3} parent=1 // loop_footer_branch
      %20 = sbr.rel target = $region3
    $region8: #{cee_forward.3} parent=1 // loop_exit
      _
    %4655 = vsyncpa [#allocation3], 1
    %s4656 = scalar_lea.sflag [#allocation3], 1
    %4657 = vsyncpa %s4656, 1

</llo_original>
